<compile_context>
chip_gen: v7x
topology: tpu7x:2x2x1
jax: 0.10.0
libtpu: 0.0.40
codegen_flags: <defaults>
</compile_context>

<pallas_src>
import functools
import math

import jax
import jax.numpy as jnp
from jax.experimental import pallas as pl
from jax.experimental.pallas import tpu as pltpu


LAYER_KEYS = ('ln0_g', 'ln0_b', 'sa_wqkv', 'sa_bqkv', 'sa_wo', 'sa_bo',
              'ln1_g', 'ln1_b', 'ca_wq', 'ca_bq', 'ca_wkv', 'ca_bkv',
              'ca_wo', 'ca_bo',
              'ln2_g', 'ln2_b', 'ff_w1', 'ff_b1', 'ff_w2', 'ff_b2')
FINAL_KEYS = ('norm_g', 'norm_b', 'p_w1', 'p_b1', 'p_w2', 'p_b2')


# ----------------------------- in-kernel helpers ------------------------------

def _ln(x, g, b, eps):
    """Custom LayerNorm: g*(x-mean)/(std_unbiased + eps) + b (torch.std semantics)."""
    mean = jnp.mean(x, axis=-1, keepdims=True)
    xc = x - mean
    var = jnp.sum(xc * xc, axis=-1, keepdims=True) / (x.shape[-1] - 1)
    return g * xc / (jnp.sqrt(var) + eps) + b


def _split_heads(x2d, nhead):
    """(T, H*dk) f32 -> (H, T, dk) bf16 (leading-axis stack of lane slices)."""
    T, D = x2d.shape
    dk = D // nhead
    hs = jnp.stack([x2d[:, h * dk:(h + 1) * dk] for h in range(nhead)], axis=0)
    return hs.astype(jnp.bfloat16)


def _mha(q, k, v, mask, scale):
    """Head-batched masked softmax attention.

    q: (H, T, dk) bf16, k/v: (H, S, dk) bf16, mask: (T, S) or (1, S) int.
    Returns (H, T, dk) f32.
    """
    s = jnp.einsum('htd,hsd->hts', q, k,
                   preferred_element_type=jnp.float32) * scale
    s = jnp.where(mask[None, :, :] != 0, s, jnp.float32(-1e9))
    m = jnp.max(s, axis=-1, keepdims=True)
    e = jnp.exp(s - m)
    p = e * pl.reciprocal(jnp.sum(e, axis=-1, keepdims=True), approx=True)
    return jnp.einsum('hts,hsd->htd', p.astype(jnp.bfloat16), v,
                      preferred_element_type=jnp.float32)


def _attn_out(o_heads, attn_scr, wo, bo):
    """Merge heads into a (T, D) VMEM scratch at lane offsets, then ONE Wo dot."""
    nhead, _, dk = o_heads.shape
    for h in range(nhead):
        attn_scr[:, h * dk:(h + 1) * dk] = o_heads[h]
    return (jnp.dot(attn_scr[...].astype(jnp.bfloat16), wo,
                    preferred_element_type=jnp.float32) + bo)


# ----------------------------- fused stack kernel ------------------------------

def _decoder_stack_kernel(x_in_ref, mem_ref, tgt_ref, src_ref, *rest,
                          nhead, eps, scale):
    (ln0_g, ln0_b, sa_wqkv, sa_bqkv, sa_wo, sa_bo,
     ln1_g, ln1_b, ca_wq, ca_bq, ca_wkv, ca_bkv, ca_wo, ca_bo,
     ln2_g, ln2_b, ff_w1, ff_b1, ff_w2, ff_b2,
     norm_g, norm_b, p_w1, p_b1, p_w2, p_b2,
     hid_ref, proj_ref, attn_scr) = rest

    layer = pl.program_id(1)
    last = pl.num_programs(1) - 1

    # seed the VMEM-resident residual stream from the input embeddings
    @pl.when(layer == 0)
    def _():
        hid_ref[0] = x_in_ref[0]

    x = hid_ref[0]                                   # (T, D) f32, VMEM-resident
    T, D = x.shape
    mem = mem_ref[0]                                 # (S, D) bf16
    tgt_mask = tgt_ref[0]                            # (T, T) int32
    src_mask = src_ref[0]                            # (1, S) int32

    # ---- sublayer 0: pre-LN masked self-attention + residual ----
    xn = _ln(x, ln0_g[0], ln0_b[0], eps).astype(jnp.bfloat16)
    qkv = (jnp.dot(xn, sa_wqkv[0], preferred_element_type=jnp.float32)
           + sa_bqkv[0])                             # (T, 3D) f32
    q = _split_heads(qkv[:, :D], nhead)
    k = _split_heads(qkv[:, D:2 * D], nhead)
    v = _split_heads(qkv[:, 2 * D:], nhead)
    o_heads = _mha(q, k, v, tgt_mask, scale)         # (H, T, dk) f32
    x = x + _attn_out(o_heads, attn_scr, sa_wo[0], sa_bo[0])

    # ---- sublayer 1: pre-LN cross attention over memory + residual ----
    xn = _ln(x, ln1_g[0], ln1_b[0], eps).astype(jnp.bfloat16)
    q_all = (jnp.dot(xn, ca_wq[0], preferred_element_type=jnp.float32)
             + ca_bq[0])                             # (T, D)
    kvm = (jnp.dot(mem, ca_wkv[0], preferred_element_type=jnp.float32)
           + ca_bkv[0])                              # (S, 2D)
    qh = _split_heads(q_all, nhead)
    kh = _split_heads(kvm[:, :D], nhead)
    vh = _split_heads(kvm[:, D:], nhead)
    o_heads = _mha(qh, kh, vh, src_mask, scale)
    x = x + _attn_out(o_heads, attn_scr, ca_wo[0], ca_bo[0])

    # ---- sublayer 2: pre-LN position-wise feed forward + residual ----
    xn = _ln(x, ln2_g[0], ln2_b[0], eps).astype(jnp.bfloat16)
    h1 = jnp.maximum(jnp.dot(xn, ff_w1[0], preferred_element_type=jnp.float32)
                     + ff_b1[0], 0.0)
    x = x + (jnp.dot(h1.astype(jnp.bfloat16), ff_w2[0],
                     preferred_element_type=jnp.float32) + ff_b2[0])

    hid_ref[0] = x                                   # stays resident across layers

    # ---- final LayerNorm + Linear -> Tanh -> Linear head (last layer only) ----
    @pl.when(layer == last)
    def _():
        hn = _ln(x, norm_g[...], norm_b[...], eps)
        hid_ref[0] = hn
        t = jnp.tanh(jnp.dot(hn.astype(jnp.bfloat16), p_w1[...],
                             preferred_element_type=jnp.float32) + p_b1[...])
        proj_ref[0] = (jnp.dot(t.astype(jnp.bfloat16), p_w2[...],
                               preferred_element_type=jnp.float32) + p_b2[...])


# ----------------------------- wrapper ------------------------------

def molecular_decoder_forward(params, input_embeds, memory, src_mask, tgt_mask,
                              nhead, eps=1e-6):
    B, T, D = input_embeds.shape
    S = memory.shape[1]
    L = params['layers']['ln0_g'].shape[0]
    V = params['p_w1'].shape[-1]
    scale = 1.0 / math.sqrt(D // nhead)

    x = input_embeds.astype(jnp.float32)
    mem = memory.astype(jnp.bfloat16)                     # bf16 transport (MXU input)
    tgt_m = tgt_mask.astype(jnp.int32).reshape(B, T, T)   # loaded once / batch
    src_m = src_mask.astype(jnp.int32).reshape(B, 1, S)

    stacked = [params['layers'][k] for k in LAYER_KEYS]   # (L, ...) per-layer weights
    finals = [params[k] for k in FINAL_KEYS]

    def batch_resident(a):          # resident across layer axis, one block per batch
        n = a.ndim
        return pl.BlockSpec((1,) + a.shape[1:], lambda b, l: (b,) + (0,) * (n - 1))

    def per_layer(a):               # streamed along the layer axis
        n = a.ndim
        return pl.BlockSpec((1,) + a.shape[1:], lambda b, l: (l,) + (0,) * (n - 1))

    def replicated(a):              # grid-invariant (DMA'd once)
        n = a.ndim
        return pl.BlockSpec(a.shape, lambda b, l: (0,) * n)

    in_specs = ([batch_resident(x), batch_resident(mem),
                 batch_resident(tgt_m), batch_resident(src_m)]
                + [per_layer(a) for a in stacked]
                + [replicated(a) for a in finals])

    out_shape = (jax.ShapeDtypeStruct((B, T, D), jnp.float32),
                 jax.ShapeDtypeStruct((B, T, V), jnp.float32))
    out_specs = (pl.BlockSpec((1, T, D), lambda b, l: (b, 0, 0)),
                 pl.BlockSpec((1, T, V), lambda b, l: (b, 0, 0)))

    hidden, proj = pl.pallas_call(
        functools.partial(_decoder_stack_kernel, nhead=nhead, eps=eps, scale=scale),
        out_shape=out_shape,
        grid=(B, L),
        in_specs=in_specs,
        out_specs=out_specs,
        scratch_shapes=[pltpu.VMEM((T, D), jnp.float32)],   # head-merge scratch
        compiler_params=pltpu.CompilerParams(
            dimension_semantics=("parallel", "arbitrary")),
    )(x, mem, tgt_m, src_m, *stacked, *finals)

    return {'hidden_states': hidden, 'proj_output': proj, 'mask': tgt_mask}


# ----------------------------- parameter setup ------------------------------

def init_params(key, d_model, nhead, d_ff, nlayer, vocab_size):
    def dense(k, din, dout, scl=0.02):
        kw, kb = jax.random.split(k)
        w = scl * jax.random.normal(kw, (din, dout), jnp.float32)
        b = scl * jax.random.normal(kb, (1, dout), jnp.float32)
        return w, b

    bf16 = lambda a: a.astype(jnp.bfloat16)   # matmul weights stored bf16 (MXU-native)

    per_layer = {k: [] for k in LAYER_KEYS}
    keys = jax.random.split(key, nlayer + 1)
    for li in range(nlayer):
        ks = jax.random.split(keys[li], 10)
        wq, bq = dense(ks[0], d_model, d_model)
        wk, bk = dense(ks[1], d_model, d_model)
        wv, bv = dense(ks[2], d_model, d_model)
        wo, bo = dense(ks[3], d_model, d_model)
        cwq, cbq = dense(ks[4], d_model, d_model)
        cwk, cbk = dense(ks[5], d_model, d_model)
        cwv, cbv = dense(ks[6], d_model, d_model)
        cwo, cbo = dense(ks[7], d_model, d_model)
        w1, b1 = dense(ks[8], d_model, d_ff)
        w2, b2 = dense(ks[9], d_ff, d_model)
        vals = {
            'sa_wqkv': bf16(jnp.concatenate([wq, wk, wv], axis=1)),
            'sa_bqkv': jnp.concatenate([bq, bk, bv], axis=1),
            'sa_wo': bf16(wo), 'sa_bo': bo,
            'ca_wq': bf16(cwq), 'ca_bq': cbq,
            'ca_wkv': bf16(jnp.concatenate([cwk, cwv], axis=1)),
            'ca_bkv': jnp.concatenate([cbk, cbv], axis=1),
            'ca_wo': bf16(cwo), 'ca_bo': cbo,
            'ff_w1': bf16(w1), 'ff_b1': b1,
            'ff_w2': bf16(w2), 'ff_b2': b2,
            'ln0_g': jnp.ones((1, d_model), jnp.float32),
            'ln0_b': jnp.zeros((1, d_model), jnp.float32),
            'ln1_g': jnp.ones((1, d_model), jnp.float32),
            'ln1_b': jnp.zeros((1, d_model), jnp.float32),
            'ln2_g': jnp.ones((1, d_model), jnp.float32),
            'ln2_b': jnp.zeros((1, d_model), jnp.float32),
        }
        for k in LAYER_KEYS:
            per_layer[k].append(vals[k])

    layers = {k: jnp.stack(v, axis=0) for k, v in per_layer.items()}

    pkeys = jax.random.split(keys[-1], 2)
    pw1, pb1 = dense(pkeys[0], d_model, vocab_size)
    pw2, pb2 = dense(pkeys[1], vocab_size, vocab_size)
    return {
        'layers': layers,
        'norm_g': jnp.ones((1, d_model), jnp.float32),
        'norm_b': jnp.zeros((1, d_model), jnp.float32),
        'p_w1': bf16(pw1), 'p_b1': pb1,
        'p_w2': bf16(pw2), 'p_b2': pb2,
    }


# ----------------------------- main ------------------------------

if __name__ == "__main__":
    # small shapes consistent with the module's forward
    B, T, S = 2, 8, 8
    D_MODEL, NHEAD, D_FF, NLAYER, VOCAB = 32, 4, 64, 2, 16

    key = jax.random.PRNGKey(0)
    k_params, k_x, k_mem = jax.random.split(key, 3)

    params = init_params(k_params, D_MODEL, NHEAD, D_FF, NLAYER, VOCAB)

    input_embeds = jax.random.normal(k_x, (B, T, D_MODEL), jnp.float32)
    memory = jax.random.normal(k_mem, (B, S, D_MODEL), jnp.float32)
    src_mask = jnp.ones((B, 1, S), jnp.int32)                       # encoder padding mask
    tgt_mask = jnp.broadcast_to(
        jnp.tril(jnp.ones((T, T), jnp.int32)), (B, T, T))           # causal decoder mask

    fwd = jax.jit(molecular_decoder_forward, static_argnames=('nhead',))
    out = fwd(params, input_embeds, memory, src_mask, tgt_mask, nhead=NHEAD)
    jax.block_until_ready(out['hidden_states'])
    jax.block_until_ready(out['proj_output'])

    assert out['hidden_states'].shape == (B, T, D_MODEL)
    assert out['proj_output'].shape == (B, T, VOCAB)
    assert bool(jnp.all(jnp.isfinite(out['hidden_states'])))
    assert bool(jnp.all(jnp.isfinite(out['proj_output'])))
    print("KERNEL_OK")
</pallas_src>

<mosaic_0001>
module attributes {stable_mosaic.version = 11 : i64} {
  func.func @_decoder_stack_kernel(%arg0: i32, %arg1: i32, %arg2: memref<1x8x32xf32, #tpu.memory_space<vmem>>, %arg3: memref<1x8x32xbf16, #tpu.memory_space<vmem>>, %arg4: memref<1x8x8xi32, #tpu.memory_space<vmem>>, %arg5: memref<1x1x8xi32, #tpu.memory_space<vmem>>, %arg6: memref<1x1x32xf32, #tpu.memory_space<vmem>>, %arg7: memref<1x1x32xf32, #tpu.memory_space<vmem>>, %arg8: memref<1x32x96xbf16, #tpu.memory_space<vmem>>, %arg9: memref<1x1x96xf32, #tpu.memory_space<vmem>>, %arg10: memref<1x32x32xbf16, #tpu.memory_space<vmem>>, %arg11: memref<1x1x32xf32, #tpu.memory_space<vmem>>, %arg12: memref<1x1x32xf32, #tpu.memory_space<vmem>>, %arg13: memref<1x1x32xf32, #tpu.memory_space<vmem>>, %arg14: memref<1x32x32xbf16, #tpu.memory_space<vmem>>, %arg15: memref<1x1x32xf32, #tpu.memory_space<vmem>>, %arg16: memref<1x32x64xbf16, #tpu.memory_space<vmem>>, %arg17: memref<1x1x64xf32, #tpu.memory_space<vmem>>, %arg18: memref<1x32x32xbf16, #tpu.memory_space<vmem>>, %arg19: memref<1x1x32xf32, #tpu.memory_space<vmem>>, %arg20: memref<1x1x32xf32, #tpu.memory_space<vmem>>, %arg21: memref<1x1x32xf32, #tpu.memory_space<vmem>>, %arg22: memref<1x32x64xbf16, #tpu.memory_space<vmem>>, %arg23: memref<1x1x64xf32, #tpu.memory_space<vmem>>, %arg24: memref<1x64x32xbf16, #tpu.memory_space<vmem>>, %arg25: memref<1x1x32xf32, #tpu.memory_space<vmem>>, %arg26: memref<1x32xf32, #tpu.memory_space<vmem>>, %arg27: memref<1x32xf32, #tpu.memory_space<vmem>>, %arg28: memref<32x16xbf16, #tpu.memory_space<vmem>>, %arg29: memref<1x16xf32, #tpu.memory_space<vmem>>, %arg30: memref<16x16xbf16, #tpu.memory_space<vmem>>, %arg31: memref<1x16xf32, #tpu.memory_space<vmem>>, %arg32: memref<1x8x32xf32, #tpu.memory_space<vmem>>, %arg33: memref<1x8x16xf32, #tpu.memory_space<vmem>>, %arg34: memref<8x32xf32, #tpu.memory_space<vmem>>) attributes {dimension_semantics = [#tpu.dimension_semantics<parallel>, #tpu.dimension_semantics<arbitrary>], iteration_bounds = array<i64: 2, 2>, scalar_prefetch = 0 : i64, scratch_operands = 1 : i64, tpu.core_type = #tpu.core_type<tc>, window_params = [{transform_indices = @transform_0, window_bounds = array<i64: 1, 8, 32>}, {transform_indices = @transform_1, window_bounds = array<i64: 1, 8, 32>}, {transform_indices = @transform_2, window_bounds = array<i64: 1, 8, 8>}, {transform_indices = @transform_3, window_bounds = array<i64: 1, 1, 8>}, {transform_indices = @transform_4, window_bounds = array<i64: 1, 1, 32>}, {transform_indices = @transform_5, window_bounds = array<i64: 1, 1, 32>}, {transform_indices = @transform_6, window_bounds = array<i64: 1, 32, 96>}, {transform_indices = @transform_7, window_bounds = array<i64: 1, 1, 96>}, {transform_indices = @transform_8, window_bounds = array<i64: 1, 32, 32>}, {transform_indices = @transform_9, window_bounds = array<i64: 1, 1, 32>}, {transform_indices = @transform_10, window_bounds = array<i64: 1, 1, 32>}, {transform_indices = @transform_11, window_bounds = array<i64: 1, 1, 32>}, {transform_indices = @transform_12, window_bounds = array<i64: 1, 32, 32>}, {transform_indices = @transform_13, window_bounds = array<i64: 1, 1, 32>}, {transform_indices = @transform_14, window_bounds = array<i64: 1, 32, 64>}, {transform_indices = @transform_15, window_bounds = array<i64: 1, 1, 64>}, {transform_indices = @transform_16, window_bounds = array<i64: 1, 32, 32>}, {transform_indices = @transform_17, window_bounds = array<i64: 1, 1, 32>}, {transform_indices = @transform_18, window_bounds = array<i64: 1, 1, 32>}, {transform_indices = @transform_19, window_bounds = array<i64: 1, 1, 32>}, {transform_indices = @transform_20, window_bounds = array<i64: 1, 32, 64>}, {transform_indices = @transform_21, window_bounds = array<i64: 1, 1, 64>}, {transform_indices = @transform_22, window_bounds = array<i64: 1, 64, 32>}, {transform_indices = @transform_23, window_bounds = array<i64: 1, 1, 32>}, {pipeline_mode = #tpu.pipeline_mode<synchronous>, transform_indices = @transform_24, window_bounds = array<i64: 1, 32>}, {pipeline_mode = #tpu.pipeline_mode<synchronous>, transform_indices = @transform_25, window_bounds = array<i64: 1, 32>}, {pipeline_mode = #tpu.pipeline_mode<synchronous>, transform_indices = @transform_26, window_bounds = array<i64: 32, 16>}, {pipeline_mode = #tpu.pipeline_mode<synchronous>, transform_indices = @transform_27, window_bounds = array<i64: 1, 16>}, {pipeline_mode = #tpu.pipeline_mode<synchronous>, transform_indices = @transform_28, window_bounds = array<i64: 16, 16>}, {pipeline_mode = #tpu.pipeline_mode<synchronous>, transform_indices = @transform_29, window_bounds = array<i64: 1, 16>}, {transform_indices = @transform_30, window_bounds = array<i64: 1, 8, 32>}, {transform_indices = @transform_31, window_bounds = array<i64: 1, 8, 16>}]} {
    %c0_i32 = arith.constant 0 : i32
    %0 = arith.cmpi eq, %arg1, %c0_i32 : i32
    %1 = arith.extui %0 : i1 to i32
    %c0_i32_0 = arith.constant 0 : i32
    %2 = arith.cmpi ne, %1, %c0_i32_0 : i32
    scf.if %2 {
      %c0_129 = arith.constant 0 : index
      %c0_130 = arith.constant 0 : index
      %c0_131 = arith.constant 0 : index
      %284 = vector.load %arg2[%c0_129, %c0_130, %c0_131] : memref<1x8x32xf32, #tpu.memory_space<vmem>>, vector<1x8x32xf32>
      %285 = vector.shape_cast %284 : vector<1x8x32xf32> to vector<8x32xf32>
      %c0_132 = arith.constant 0 : index
      %c0_133 = arith.constant 0 : index
      %c0_134 = arith.constant 0 : index
      %286 = vector.load %arg32[%c0_132, %c0_133, %c0_134] : memref<1x8x32xf32, #tpu.memory_space<vmem>>, vector<1x8x32xf32>
      %287 = vector.shape_cast %286 : vector<1x8x32xf32> to vector<8x32xf32>
      %288 = vector.shape_cast %285 : vector<8x32xf32> to vector<1x8x32xf32>
      tpu.vector_store %arg32[%c0_132, %c0_133, %c0_134], %288 {strides = array<i32>} : memref<1x8x32xf32, #tpu.memory_space<vmem>>, vector<1x8x32xf32>,
    } else {
    }
    %c0 = arith.constant 0 : index
    %c0_1 = arith.constant 0 : index
    %c0_2 = arith.constant 0 : index
    %3 = vector.load %arg32[%c0, %c0_1, %c0_2] : memref<1x8x32xf32, #tpu.memory_space<vmem>>, vector<1x8x32xf32>
    %4 = vector.shape_cast %3 : vector<1x8x32xf32> to vector<8x32xf32>
    %c0_3 = arith.constant 0 : index
    %c0_4 = arith.constant 0 : index
    %c0_5 = arith.constant 0 : index
    %5 = vector.load %arg3[%c0_3, %c0_4, %c0_5] : memref<1x8x32xbf16, #tpu.memory_space<vmem>>, vector<1x8x32xbf16>
    %6 = vector.shape_cast %5 : vector<1x8x32xbf16> to vector<8x32xbf16>
    %c0_6 = arith.constant 0 : index
    %c0_7 = arith.constant 0 : index
    %c0_8 = arith.constant 0 : index
    %7 = vector.load %arg4[%c0_6, %c0_7, %c0_8] : memref<1x8x8xi32, #tpu.memory_space<vmem>>, vector<1x8x8xi32>
    %8 = vector.shape_cast %7 : vector<1x8x8xi32> to vector<8x8xi32>
    %c0_9 = arith.constant 0 : index
    %c0_10 = arith.constant 0 : index
    %c0_11 = arith.constant 0 : index
    %9 = vector.load %arg5[%c0_9, %c0_10, %c0_11] : memref<1x1x8xi32, #tpu.memory_space<vmem>>, vector<1x1x8xi32>
    %10 = vector.shape_cast %9 : vector<1x1x8xi32> to vector<1x8xi32>
    %c0_12 = arith.constant 0 : index
    %c0_13 = arith.constant 0 : index
    %c0_14 = arith.constant 0 : index
    %11 = vector.load %arg6[%c0_12, %c0_13, %c0_14] : memref<1x1x32xf32, #tpu.memory_space<vmem>>, vector<1x1x32xf32>
    %12 = vector.shape_cast %11 : vector<1x1x32xf32> to vector<1x32xf32>
    %c0_15 = arith.constant 0 : index
    %c0_16 = arith.constant 0 : index
    %c0_17 = arith.constant 0 : index
    %13 = vector.load %arg7[%c0_15, %c0_16, %c0_17] : memref<1x1x32xf32, #tpu.memory_space<vmem>>, vector<1x1x32xf32>
    %14 = vector.shape_cast %13 : vector<1x1x32xf32> to vector<1x32xf32>
    %cst = arith.constant dense<0.000000e+00> : vector<8xf32>
    %15 = vector.multi_reduction <add>, %4, %cst [1] : vector<8x32xf32> to vector<8xf32>
    %16 = vector.shape_cast %15 : vector<8xf32> to vector<8x1xf32>
    %cst_18 = arith.constant 3.200000e+01 : f32
    %17 = vector.broadcast %cst_18 : f32 to vector<8x1xf32>
    %18 = arith.divf %16, %17 : vector<8x1xf32>
    %19 = vector.broadcast %18 : vector<8x1xf32> to vector<8x32xf32>
    %20 = arith.subf %4, %19 : vector<8x32xf32>
    %21 = arith.mulf %20, %20 : vector<8x32xf32>
    %cst_19 = arith.constant dense<0.000000e+00> : vector<8xf32>
    %22 = vector.multi_reduction <add>, %21, %cst_19 [1] : vector<8x32xf32> to vector<8xf32>
    %23 = vector.shape_cast %22 : vector<8xf32> to vector<8x1xf32>
    %cst_20 = arith.constant 3.100000e+01 : f32
    %24 = vector.broadcast %cst_20 : f32 to vector<8x1xf32>
    %25 = arith.divf %23, %24 : vector<8x1xf32>
    %26 = vector.broadcast %12 : vector<1x32xf32> to vector<8x32xf32>
    %27 = arith.mulf %26, %20 : vector<8x32xf32>
    %28 = math.sqrt %25 : vector<8x1xf32>
    %cst_21 = arith.constant 9.99999997E-7 : f32
    %29 = vector.broadcast %cst_21 : f32 to vector<8x1xf32>
    %30 = arith.addf %28, %29 : vector<8x1xf32>
    %31 = vector.broadcast %30 : vector<8x1xf32> to vector<8x32xf32>
    %32 = arith.divf %27, %31 : vector<8x32xf32>
    %33 = vector.broadcast %14 : vector<1x32xf32> to vector<8x32xf32>
    %34 = arith.addf %32, %33 : vector<8x32xf32>
    %35 = arith.truncf %34 : vector<8x32xf32> to vector<8x32xbf16>
    %c0_22 = arith.constant 0 : index
    %c0_23 = arith.constant 0 : index
    %c0_24 = arith.constant 0 : index
    %36 = vector.load %arg8[%c0_22, %c0_23, %c0_24] : memref<1x32x96xbf16, #tpu.memory_space<vmem>>, vector<1x32x96xbf16>
    %37 = vector.shape_cast %36 : vector<1x32x96xbf16> to vector<32x96xbf16>
    %cst_25 = arith.constant dense<0.000000e+00> : vector<8x96xf32>
    %38 = tpu.matmul %35, %37, %cst_25 {dimension_numbers = #tpu.dot_dimension_numbers<[1], [0], [0], [1], [0, 0, 1, 1], [], []>} : vector<8x32xbf16>, vector<32x96xbf16>, vector<8x96xf32> -> vector<8x96xf32>
    %c0_26 = arith.constant 0 : index
    %c0_27 = arith.constant 0 : index
    %c0_28 = arith.constant 0 : index
    %39 = vector.load %arg9[%c0_26, %c0_27, %c0_28] : memref<1x1x96xf32, #tpu.memory_space<vmem>>, vector<1x1x96xf32>
    %40 = vector.shape_cast %39 : vector<1x1x96xf32> to vector<1x96xf32>
    %41 = vector.broadcast %40 : vector<1x96xf32> to vector<8x96xf32>
    %42 = arith.addf %38, %41 : vector<8x96xf32>
    %43 = vector.extract_strided_slice %42 {offsets = [0, 0], sizes = [8, 32], strides = [1, 1]} : vector<8x96xf32> to vector<8x32xf32>
    %44 = vector.extract_strided_slice %43 {offsets = [0, 0], sizes = [8, 8], strides = [1, 1]} : vector<8x32xf32> to vector<8x8xf32>
    %45 = vector.extract_strided_slice %43 {offsets = [0, 8], sizes = [8, 8], strides = [1, 1]} : vector<8x32xf32> to vector<8x8xf32>
    %46 = vector.extract_strided_slice %43 {offsets = [0, 16], sizes = [8, 8], strides = [1, 1]} : vector<8x32xf32> to vector<8x8xf32>
    %47 = vector.extract_strided_slice %43 {offsets = [0, 24], sizes = [8, 8], strides = [1, 1]} : vector<8x32xf32> to vector<8x8xf32>
    %48 = vector.shape_cast %44 : vector<8x8xf32> to vector<1x8x8xf32>
    %49 = vector.shape_cast %45 : vector<8x8xf32> to vector<1x8x8xf32>
    %50 = vector.shape_cast %46 : vector<8x8xf32> to vector<1x8x8xf32>
    %51 = vector.shape_cast %47 : vector<8x8xf32> to vector<1x8x8xf32>
    %52 = tpu.concatenate %48, %49, %50, %51 in 0 : vector<1x8x8xf32>, vector<1x8x8xf32>, vector<1x8x8xf32>, vector<1x8x8xf32> -> vector<4x8x8xf32>
    %53 = arith.truncf %52 : vector<4x8x8xf32> to vector<4x8x8xbf16>
    %54 = vector.extract_strided_slice %42 {offsets = [0, 32], sizes = [8, 32], strides = [1, 1]} : vector<8x96xf32> to vector<8x32xf32>
    %55 = vector.extract_strided_slice %54 {offsets = [0, 0], sizes = [8, 8], strides = [1, 1]} : vector<8x32xf32> to vector<8x8xf32>
    %56 = vector.extract_strided_slice %54 {offsets = [0, 8], sizes = [8, 8], strides = [1, 1]} : vector<8x32xf32> to vector<8x8xf32>
    %57 = vector.extract_strided_slice %54 {offsets = [0, 16], sizes = [8, 8], strides = [1, 1]} : vector<8x32xf32> to vector<8x8xf32>
    %58 = vector.extract_strided_slice %54 {offsets = [0, 24], sizes = [8, 8], strides = [1, 1]} : vector<8x32xf32> to vector<8x8xf32>
    %59 = vector.shape_cast %55 : vector<8x8xf32> to vector<1x8x8xf32>
    %60 = vector.shape_cast %56 : vector<8x8xf32> to vector<1x8x8xf32>
    %61 = vector.shape_cast %57 : vector<8x8xf32> to vector<1x8x8xf32>
    %62 = vector.shape_cast %58 : vector<8x8xf32> to vector<1x8x8xf32>
    %63 = tpu.concatenate %59, %60, %61, %62 in 0 : vector<1x8x8xf32>, vector<1x8x8xf32>, vector<1x8x8xf32>, vector<1x8x8xf32> -> vector<4x8x8xf32>
    %64 = arith.truncf %63 : vector<4x8x8xf32> to vector<4x8x8xbf16>
    %65 = vector.extract_strided_slice %42 {offsets = [0, 64], sizes = [8, 32], strides = [1, 1]} : vector<8x96xf32> to vector<8x32xf32>
    %66 = vector.extract_strided_slice %65 {offsets = [0, 0], sizes = [8, 8], strides = [1, 1]} : vector<8x32xf32> to vector<8x8xf32>
    %67 = vector.extract_strided_slice %65 {offsets = [0, 8], sizes = [8, 8], strides = [1, 1]} : vector<8x32xf32> to vector<8x8xf32>
    %68 = vector.extract_strided_slice %65 {offsets = [0, 16], sizes = [8, 8], strides = [1, 1]} : vector<8x32xf32> to vector<8x8xf32>
    %69 = vector.extract_strided_slice %65 {offsets = [0, 24], sizes = [8, 8], strides = [1, 1]} : vector<8x32xf32> to vector<8x8xf32>
    %70 = vector.shape_cast %66 : vector<8x8xf32> to vector<1x8x8xf32>
    %71 = vector.shape_cast %67 : vector<8x8xf32> to vector<1x8x8xf32>
    %72 = vector.shape_cast %68 : vector<8x8xf32> to vector<1x8x8xf32>
    %73 = vector.shape_cast %69 : vector<8x8xf32> to vector<1x8x8xf32>
    %74 = tpu.concatenate %70, %71, %72, %73 in 0 : vector<1x8x8xf32>, vector<1x8x8xf32>, vector<1x8x8xf32>, vector<1x8x8xf32> -> vector<4x8x8xf32>
    %75 = arith.truncf %74 : vector<4x8x8xf32> to vector<4x8x8xbf16>
    "tpu.trace_start"() <{level = 10 : i32, message = "htd,hsd->hts"}> : () -> ()
    %cst_29 = arith.constant dense<0.000000e+00> : vector<4x8x8xf32>
    %76 = tpu.matmul %53, %64, %cst_29 {dimension_numbers = #tpu.dot_dimension_numbers<[2], [2], [1], [1], [0, 0, 0, 1, 1, 1], [0], [0]>} : vector<4x8x8xbf16>, vector<4x8x8xbf16>, vector<4x8x8xf32> -> vector<4x8x8xf32>
    "tpu.trace_stop"() : () -> ()
    %cst_30 = arith.constant 0.353553385 : f32
    %77 = vector.broadcast %cst_30 : f32 to vector<4x8x8xf32>
    %78 = arith.mulf %76, %77 : vector<4x8x8xf32>
    %79 = vector.shape_cast %8 : vector<8x8xi32> to vector<1x8x8xi32>
    %c0_i32_31 = arith.constant 0 : i32
    %80 = vector.broadcast %c0_i32_31 : i32 to vector<1x8x8xi32>
    %81 = arith.cmpi ne, %79, %80 : vector<1x8x8xi32>
    %cst_32 = arith.constant -1.000000e+09 : f32
    %82 = vector.shape_cast %81 : vector<1x8x8xi1> to vector<1x8x8xi1>
    %83 = vector.broadcast %82 : vector<1x8x8xi1> to vector<4x8x8xi1>
    %84 = vector.broadcast %cst_32 : f32 to vector<4x8x8xf32>
    %85 = arith.select %83, %78, %84 : vector<4x8x8xi1>, vector<4x8x8xf32>
    %cst_33 = arith.constant dense<0xFF800000> : vector<4x8xf32>
    %86 = vector.multi_reduction <maximumf>, %85, %cst_33 [2] : vector<4x8x8xf32> to vector<4x8xf32>
    %87 = vector.shape_cast %86 : vector<4x8xf32> to vector<4x8x1xf32>
    %88 = vector.broadcast %87 : vector<4x8x1xf32> to vector<4x8x8xf32>
    %89 = arith.subf %85, %88 : vector<4x8x8xf32>
    %90 = math.exp %89 : vector<4x8x8xf32>
    %cst_34 = arith.constant dense<0.000000e+00> : vector<4x8xf32>
    %91 = vector.multi_reduction <add>, %90, %cst_34 [2] : vector<4x8x8xf32> to vector<4x8xf32>
    %92 = vector.shape_cast %91 : vector<4x8xf32> to vector<4x8x1xf32>
    %93 = tpu.reciprocal %92 {approx = true} : vector<4x8x1xf32> -> vector<4x8x1xf32>
    %94 = vector.broadcast %93 : vector<4x8x1xf32> to vector<4x8x8xf32>
    %95 = arith.mulf %90, %94 : vector<4x8x8xf32>
    %96 = arith.truncf %95 : vector<4x8x8xf32> to vector<4x8x8xbf16>
    "tpu.trace_start"() <{level = 10 : i32, message = "hts,hsd->htd"}> : () -> ()
    %cst_35 = arith.constant dense<0.000000e+00> : vector<4x8x8xf32>
    %97 = tpu.matmul %96, %75, %cst_35 {dimension_numbers = #tpu.dot_dimension_numbers<[2], [1], [1], [2], [0, 0, 0, 1, 1, 2], [0], [0]>} : vector<4x8x8xbf16>, vector<4x8x8xbf16>, vector<4x8x8xf32> -> vector<4x8x8xf32>
    "tpu.trace_stop"() : () -> ()
    %c0_36 = arith.constant 0 : index
    %c0_37 = arith.constant 0 : index
    %c0_38 = arith.constant 0 : index
    %98 = vector.load %arg10[%c0_36, %c0_37, %c0_38] : memref<1x32x32xbf16, #tpu.memory_space<vmem>>, vector<1x32x32xbf16>
    %99 = vector.shape_cast %98 : vector<1x32x32xbf16> to vector<32x32xbf16>
    %c0_39 = arith.constant 0 : index
    %c0_40 = arith.constant 0 : index
    %c0_41 = arith.constant 0 : index
    %100 = vector.load %arg11[%c0_39, %c0_40, %c0_41] : memref<1x1x32xf32, #tpu.memory_space<vmem>>, vector<1x1x32xf32>
    %101 = vector.shape_cast %100 : vector<1x1x32xf32> to vector<1x32xf32>
    %102 = vector.extract_strided_slice %97 {offsets = [0, 0, 0], sizes = [1, 8, 8], strides = [1, 1, 1]} : vector<4x8x8xf32> to vector<1x8x8xf32>
    %103 = vector.shape_cast %102 : vector<1x8x8xf32> to vector<8x8xf32>
    %c0_42 = arith.constant 0 : index
    %c0_43 = arith.constant 0 : index
    %104 = vector.load %arg34[%c0_42, %c0_43] : memref<8x32xf32, #tpu.memory_space<vmem>>, vector<8x8xf32>
    tpu.vector_store %arg34[%c0_42, %c0_43], %103 {strides = array<i32>} : memref<8x32xf32, #tpu.memory_space<vmem>>, vector<8x8xf32>,
    %105 = vector.extract_strided_slice %97 {offsets = [1, 0, 0], sizes = [1, 8, 8], strides = [1, 1, 1]} : vector<4x8x8xf32> to vector<1x8x8xf32>
    %106 = vector.shape_cast %105 : vector<1x8x8xf32> to vector<8x8xf32>
    %c0_44 = arith.constant 0 : index
    %c8 = arith.constant 8 : index
    %107 = vector.load %arg34[%c0_44, %c8] : memref<8x32xf32, #tpu.memory_space<vmem>>, vector<8x8xf32>
    tpu.vector_store %arg34[%c0_44, %c8], %106 {strides = array<i32>} : memref<8x32xf32, #tpu.memory_space<vmem>>, vector<8x8xf32>,
    %108 = vector.extract_strided_slice %97 {offsets = [2, 0, 0], sizes = [1, 8, 8], strides = [1, 1, 1]} : vector<4x8x8xf32> to vector<1x8x8xf32>
    %109 = vector.shape_cast %108 : vector<1x8x8xf32> to vector<8x8xf32>
    %c0_45 = arith.constant 0 : index
    %c16 = arith.constant 16 : index
    %110 = vector.load %arg34[%c0_45, %c16] : memref<8x32xf32, #tpu.memory_space<vmem>>, vector<8x8xf32>
    tpu.vector_store %arg34[%c0_45, %c16], %109 {strides = array<i32>} : memref<8x32xf32, #tpu.memory_space<vmem>>, vector<8x8xf32>,
    %111 = vector.extract_strided_slice %97 {offsets = [3, 0, 0], sizes = [1, 8, 8], strides = [1, 1, 1]} : vector<4x8x8xf32> to vector<1x8x8xf32>
    %112 = vector.shape_cast %111 : vector<1x8x8xf32> to vector<8x8xf32>
    %c0_46 = arith.constant 0 : index
    %c24 = arith.constant 24 : index
    %113 = vector.load %arg34[%c0_46, %c24] : memref<8x32xf32, #tpu.memory_space<vmem>>, vector<8x8xf32>
    tpu.vector_store %arg34[%c0_46, %c24], %112 {strides = array<i32>} : memref<8x32xf32, #tpu.memory_space<vmem>>, vector<8x8xf32>,
    %c0_47 = arith.constant 0 : index
    %c0_48 = arith.constant 0 : index
    %114 = vector.load %arg34[%c0_47, %c0_48] : memref<8x32xf32, #tpu.memory_space<vmem>>, vector<8x32xf32>
    %115 = arith.truncf %114 : vector<8x32xf32> to vector<8x32xbf16>
    %cst_49 = arith.constant dense<0.000000e+00> : vector<8x32xf32>
    %116 = tpu.matmul %115, %99, %cst_49 {dimension_numbers = #tpu.dot_dimension_numbers<[1], [0], [0], [1], [0, 0, 1, 1], [], []>} : vector<8x32xbf16>, vector<32x32xbf16>, vector<8x32xf32> -> vector<8x32xf32>
    %117 = vector.broadcast %101 : vector<1x32xf32> to vector<8x32xf32>
    %118 = arith.addf %116, %117 : vector<8x32xf32>
    %119 = arith.addf %4, %118 : vector<8x32xf32>
    %c0_50 = arith.constant 0 : index
    %c0_51 = arith.constant 0 : index
    %c0_52 = arith.constant 0 : index
    %120 = vector.load %arg12[%c0_50, %c0_51, %c0_52] : memref<1x1x32xf32, #tpu.memory_space<vmem>>, vector<1x1x32xf32>
    %121 = vector.shape_cast %120 : vector<1x1x32xf32> to vector<1x32xf32>
    %c0_53 = arith.constant 0 : index
    %c0_54 = arith.constant 0 : index
    %c0_55 = arith.constant 0 : index
    %122 = vector.load %arg13[%c0_53, %c0_54, %c0_55] : memref<1x1x32xf32, #tpu.memory_space<vmem>>, vector<1x1x32xf32>
    %123 = vector.shape_cast %122 : vector<1x1x32xf32> to vector<1x32xf32>
    %cst_56 = arith.constant dense<0.000000e+00> : vector<8xf32>
    %124 = vector.multi_reduction <add>, %119, %cst_56 [1] : vector<8x32xf32> to vector<8xf32>
    %125 = vector.shape_cast %124 : vector<8xf32> to vector<8x1xf32>
    %cst_57 = arith.constant 3.200000e+01 : f32
    %126 = vector.broadcast %cst_57 : f32 to vector<8x1xf32>
    %127 = arith.divf %125, %126 : vector<8x1xf32>
    %128 = vector.broadcast %127 : vector<8x1xf32> to vector<8x32xf32>
    %129 = arith.subf %119, %128 : vector<8x32xf32>
    %130 = arith.mulf %129, %129 : vector<8x32xf32>
    %cst_58 = arith.constant dense<0.000000e+00> : vector<8xf32>
    %131 = vector.multi_reduction <add>, %130, %cst_58 [1] : vector<8x32xf32> to vector<8xf32>
    %132 = vector.shape_cast %131 : vector<8xf32> to vector<8x1xf32>
    %cst_59 = arith.constant 3.100000e+01 : f32
    %133 = vector.broadcast %cst_59 : f32 to vector<8x1xf32>
    %134 = arith.divf %132, %133 : vector<8x1xf32>
    %135 = vector.broadcast %121 : vector<1x32xf32> to vector<8x32xf32>
    %136 = arith.mulf %135, %129 : vector<8x32xf32>
    %137 = math.sqrt %134 : vector<8x1xf32>
    %cst_60 = arith.constant 9.99999997E-7 : f32
    %138 = vector.broadcast %cst_60 : f32 to vector<8x1xf32>
    %139 = arith.addf %137, %138 : vector<8x1xf32>
    %140 = vector.broadcast %139 : vector<8x1xf32> to vector<8x32xf32>
    %141 = arith.divf %136, %140 : vector<8x32xf32>
    %142 = vector.broadcast %123 : vector<1x32xf32> to vector<8x32xf32>
    %143 = arith.addf %141, %142 : vector<8x32xf32>
    %144 = arith.truncf %143 : vector<8x32xf32> to vector<8x32xbf16>
    %c0_61 = arith.constant 0 : index
    %c0_62 = arith.constant 0 : index
    %c0_63 = arith.constant 0 : index
    %145 = vector.load %arg14[%c0_61, %c0_62, %c0_63] : memref<1x32x32xbf16, #tpu.memory_space<vmem>>, vector<1x32x32xbf16>
    %146 = vector.shape_cast %145 : vector<1x32x32xbf16> to vector<32x32xbf16>
    %cst_64 = arith.constant dense<0.000000e+00> : vector<8x32xf32>
    %147 = tpu.matmul %144, %146, %cst_64 {dimension_numbers = #tpu.dot_dimension_numbers<[1], [0], [0], [1], [0, 0, 1, 1], [], []>} : vector<8x32xbf16>, vector<32x32xbf16>, vector<8x32xf32> -> vector<8x32xf32>
    %c0_65 = arith.constant 0 : index
    %c0_66 = arith.constant 0 : index
    %c0_67 = arith.constant 0 : index
    %148 = vector.load %arg15[%c0_65, %c0_66, %c0_67] : memref<1x1x32xf32, #tpu.memory_space<vmem>>, vector<1x1x32xf32>
    %149 = vector.shape_cast %148 : vector<1x1x32xf32> to vector<1x32xf32>
    %150 = vector.broadcast %149 : vector<1x32xf32> to vector<8x32xf32>
    %151 = arith.addf %147, %150 : vector<8x32xf32>
    %c0_68 = arith.constant 0 : index
    %c0_69 = arith.constant 0 : index
    %c0_70 = arith.constant 0 : index
    %152 = vector.load %arg16[%c0_68, %c0_69, %c0_70] : memref<1x32x64xbf16, #tpu.memory_space<vmem>>, vector<1x32x64xbf16>
    %153 = vector.shape_cast %152 : vector<1x32x64xbf16> to vector<32x64xbf16>
    %cst_71 = arith.constant dense<0.000000e+00> : vector<8x64xf32>
    %154 = tpu.matmul %6, %153, %cst_71 {dimension_numbers = #tpu.dot_dimension_numbers<[1], [0], [0], [1], [0, 0, 1, 1], [], []>} : vector<8x32xbf16>, vector<32x64xbf16>, vector<8x64xf32> -> vector<8x64xf32>
    %c0_72 = arith.constant 0 : index
    %c0_73 = arith.constant 0 : index
    %c0_74 = arith.constant 0 : index
    %155 = vector.load %arg17[%c0_72, %c0_73, %c0_74] : memref<1x1x64xf32, #tpu.memory_space<vmem>>, vector<1x1x64xf32>
    %156 = vector.shape_cast %155 : vector<1x1x64xf32> to vector<1x64xf32>
    %157 = vector.broadcast %156 : vector<1x64xf32> to vector<8x64xf32>
    %158 = arith.addf %154, %157 : vector<8x64xf32>
    %159 = vector.extract_strided_slice %151 {offsets = [0, 0], sizes = [8, 8], strides = [1, 1]} : vector<8x32xf32> to vector<8x8xf32>
    %160 = vector.extract_strided_slice %151 {offsets = [0, 8], sizes = [8, 8], strides = [1, 1]} : vector<8x32xf32> to vector<8x8xf32>
    %161 = vector.extract_strided_slice %151 {offsets = [0, 16], sizes = [8, 8], strides = [1, 1]} : vector<8x32xf32> to vector<8x8xf32>
    %162 = vector.extract_strided_slice %151 {offsets = [0, 24], sizes = [8, 8], strides = [1, 1]} : vector<8x32xf32> to vector<8x8xf32>
    %163 = vector.shape_cast %159 : vector<8x8xf32> to vector<1x8x8xf32>
    %164 = vector.shape_cast %160 : vector<8x8xf32> to vector<1x8x8xf32>
    %165 = vector.shape_cast %161 : vector<8x8xf32> to vector<1x8x8xf32>
    %166 = vector.shape_cast %162 : vector<8x8xf32> to vector<1x8x8xf32>
    %167 = tpu.concatenate %163, %164, %165, %166 in 0 : vector<1x8x8xf32>, vector<1x8x8xf32>, vector<1x8x8xf32>, vector<1x8x8xf32> -> vector<4x8x8xf32>
    %168 = arith.truncf %167 : vector<4x8x8xf32> to vector<4x8x8xbf16>
    %169 = vector.extract_strided_slice %158 {offsets = [0, 0], sizes = [8, 32], strides = [1, 1]} : vector<8x64xf32> to vector<8x32xf32>
    %170 = vector.extract_strided_slice %169 {offsets = [0, 0], sizes = [8, 8], strides = [1, 1]} : vector<8x32xf32> to vector<8x8xf32>
    %171 = vector.extract_strided_slice %169 {offsets = [0, 8], sizes = [8, 8], strides = [1, 1]} : vector<8x32xf32> to vector<8x8xf32>
    %172 = vector.extract_strided_slice %169 {offsets = [0, 16], sizes = [8, 8], strides = [1, 1]} : vector<8x32xf32> to vector<8x8xf32>
    %173 = vector.extract_strided_slice %169 {offsets = [0, 24], sizes = [8, 8], strides = [1, 1]} : vector<8x32xf32> to vector<8x8xf32>
    %174 = vector.shape_cast %170 : vector<8x8xf32> to vector<1x8x8xf32>
    %175 = vector.shape_cast %171 : vector<8x8xf32> to vector<1x8x8xf32>
    %176 = vector.shape_cast %172 : vector<8x8xf32> to vector<1x8x8xf32>
    %177 = vector.shape_cast %173 : vector<8x8xf32> to vector<1x8x8xf32>
    %178 = tpu.concatenate %174, %175, %176, %177 in 0 : vector<1x8x8xf32>, vector<1x8x8xf32>, vector<1x8x8xf32>, vector<1x8x8xf32> -> vector<4x8x8xf32>
    %179 = arith.truncf %178 : vector<4x8x8xf32> to vector<4x8x8xbf16>
    %180 = vector.extract_strided_slice %158 {offsets = [0, 32], sizes = [8, 32], strides = [1, 1]} : vector<8x64xf32> to vector<8x32xf32>
    %181 = vector.extract_strided_slice %180 {offsets = [0, 0], sizes = [8, 8], strides = [1, 1]} : vector<8x32xf32> to vector<8x8xf32>
    %182 = vector.extract_strided_slice %180 {offsets = [0, 8], sizes = [8, 8], strides = [1, 1]} : vector<8x32xf32> to vector<8x8xf32>
    %183 = vector.extract_strided_slice %180 {offsets = [0, 16], sizes = [8, 8], strides = [1, 1]} : vector<8x32xf32> to vector<8x8xf32>
    %184 = vector.extract_strided_slice %180 {offsets = [0, 24], sizes = [8, 8], strides = [1, 1]} : vector<8x32xf32> to vector<8x8xf32>
    %185 = vector.shape_cast %181 : vector<8x8xf32> to vector<1x8x8xf32>
    %186 = vector.shape_cast %182 : vector<8x8xf32> to vector<1x8x8xf32>
    %187 = vector.shape_cast %183 : vector<8x8xf32> to vector<1x8x8xf32>
    %188 = vector.shape_cast %184 : vector<8x8xf32> to vector<1x8x8xf32>
    %189 = tpu.concatenate %185, %186, %187, %188 in 0 : vector<1x8x8xf32>, vector<1x8x8xf32>, vector<1x8x8xf32>, vector<1x8x8xf32> -> vector<4x8x8xf32>
    %190 = arith.truncf %189 : vector<4x8x8xf32> to vector<4x8x8xbf16>
    "tpu.trace_start"() <{level = 10 : i32, message = "htd,hsd->hts"}> : () -> ()
    %cst_75 = arith.constant dense<0.000000e+00> : vector<4x8x8xf32>
    %191 = tpu.matmul %168, %179, %cst_75 {dimension_numbers = #tpu.dot_dimension_numbers<[2], [2], [1], [1], [0, 0, 0, 1, 1, 1], [0], [0]>} : vector<4x8x8xbf16>, vector<4x8x8xbf16>, vector<4x8x8xf32> -> vector<4x8x8xf32>
    "tpu.trace_stop"() : () -> ()
    %cst_76 = arith.constant 0.353553385 : f32
    %192 = vector.broadcast %cst_76 : f32 to vector<4x8x8xf32>
    %193 = arith.mulf %191, %192 : vector<4x8x8xf32>
    %194 = vector.shape_cast %10 : vector<1x8xi32> to vector<1x1x8xi32>
    %c0_i32_77 = arith.constant 0 : i32
    %195 = vector.broadcast %c0_i32_77 : i32 to vector<1x1x8xi32>
    %196 = arith.cmpi ne, %194, %195 : vector<1x1x8xi32>
    %cst_78 = arith.constant -1.000000e+09 : f32
    %197 = vector.shape_cast %196 : vector<1x1x8xi1> to vector<1x1x8xi1>
    %198 = vector.broadcast %197 : vector<1x1x8xi1> to vector<4x8x8xi1>
    %199 = vector.broadcast %cst_78 : f32 to vector<4x8x8xf32>
    %200 = arith.select %198, %193, %199 : vector<4x8x8xi1>, vector<4x8x8xf32>
    %cst_79 = arith.constant dense<0xFF800000> : vector<4x8xf32>
    %201 = vector.multi_reduction <maximumf>, %200, %cst_79 [2] : vector<4x8x8xf32> to vector<4x8xf32>
    %202 = vector.shape_cast %201 : vector<4x8xf32> to vector<4x8x1xf32>
    %203 = vector.broadcast %202 : vector<4x8x1xf32> to vector<4x8x8xf32>
    %204 = arith.subf %200, %203 : vector<4x8x8xf32>
    %205 = math.exp %204 : vector<4x8x8xf32>
    %cst_80 = arith.constant dense<0.000000e+00> : vector<4x8xf32>
    %206 = vector.multi_reduction <add>, %205, %cst_80 [2] : vector<4x8x8xf32> to vector<4x8xf32>
    %207 = vector.shape_cast %206 : vector<4x8xf32> to vector<4x8x1xf32>
    %208 = tpu.reciprocal %207 {approx = true} : vector<4x8x1xf32> -> vector<4x8x1xf32>
    %209 = vector.broadcast %208 : vector<4x8x1xf32> to vector<4x8x8xf32>
    %210 = arith.mulf %205, %209 : vector<4x8x8xf32>
    %211 = arith.truncf %210 : vector<4x8x8xf32> to vector<4x8x8xbf16>
    "tpu.trace_start"() <{level = 10 : i32, message = "hts,hsd->htd"}> : () -> ()
    %cst_81 = arith.constant dense<0.000000e+00> : vector<4x8x8xf32>
    %212 = tpu.matmul %211, %190, %cst_81 {dimension_numbers = #tpu.dot_dimension_numbers<[2], [1], [1], [2], [0, 0, 0, 1, 1, 2], [0], [0]>} : vector<4x8x8xbf16>, vector<4x8x8xbf16>, vector<4x8x8xf32> -> vector<4x8x8xf32>
    "tpu.trace_stop"() : () -> ()
    %c0_82 = arith.constant 0 : index
    %c0_83 = arith.constant 0 : index
    %c0_84 = arith.constant 0 : index
    %213 = vector.load %arg18[%c0_82, %c0_83, %c0_84] : memref<1x32x32xbf16, #tpu.memory_space<vmem>>, vector<1x32x32xbf16>
    %214 = vector.shape_cast %213 : vector<1x32x32xbf16> to vector<32x32xbf16>
    %c0_85 = arith.constant 0 : index
    %c0_86 = arith.constant 0 : index
    %c0_87 = arith.constant 0 : index
    %215 = vector.load %arg19[%c0_85, %c0_86, %c0_87] : memref<1x1x32xf32, #tpu.memory_space<vmem>>, vector<1x1x32xf32>
    %216 = vector.shape_cast %215 : vector<1x1x32xf32> to vector<1x32xf32>
    %217 = vector.extract_strided_slice %212 {offsets = [0, 0, 0], sizes = [1, 8, 8], strides = [1, 1, 1]} : vector<4x8x8xf32> to vector<1x8x8xf32>
    %218 = vector.shape_cast %217 : vector<1x8x8xf32> to vector<8x8xf32>
    %c0_88 = arith.constant 0 : index
    %c0_89 = arith.constant 0 : index
    %219 = vector.load %arg34[%c0_88, %c0_89] : memref<8x32xf32, #tpu.memory_space<vmem>>, vector<8x8xf32>
    tpu.vector_store %arg34[%c0_88, %c0_89], %218 {strides = array<i32>} : memref<8x32xf32, #tpu.memory_space<vmem>>, vector<8x8xf32>,
    %220 = vector.extract_strided_slice %212 {offsets = [1, 0, 0], sizes = [1, 8, 8], strides = [1, 1, 1]} : vector<4x8x8xf32> to vector<1x8x8xf32>
    %221 = vector.shape_cast %220 : vector<1x8x8xf32> to vector<8x8xf32>
    %c0_90 = arith.constant 0 : index
    %c8_91 = arith.constant 8 : index
    %222 = vector.load %arg34[%c0_90, %c8_91] : memref<8x32xf32, #tpu.memory_space<vmem>>, vector<8x8xf32>
    tpu.vector_store %arg34[%c0_90, %c8_91], %221 {strides = array<i32>} : memref<8x32xf32, #tpu.memory_space<vmem>>, vector<8x8xf32>,
    %223 = vector.extract_strided_slice %212 {offsets = [2, 0, 0], sizes = [1, 8, 8], strides = [1, 1, 1]} : vector<4x8x8xf32> to vector<1x8x8xf32>
    %224 = vector.shape_cast %223 : vector<1x8x8xf32> to vector<8x8xf32>
    %c0_92 = arith.constant 0 : index
    %c16_93 = arith.constant 16 : index
    %225 = vector.load %arg34[%c0_92, %c16_93] : memref<8x32xf32, #tpu.memory_space<vmem>>, vector<8x8xf32>
    tpu.vector_store %arg34[%c0_92, %c16_93], %224 {strides = array<i32>} : memref<8x32xf32, #tpu.memory_space<vmem>>, vector<8x8xf32>,
    %226 = vector.extract_strided_slice %212 {offsets = [3, 0, 0], sizes = [1, 8, 8], strides = [1, 1, 1]} : vector<4x8x8xf32> to vector<1x8x8xf32>
    %227 = vector.shape_cast %226 : vector<1x8x8xf32> to vector<8x8xf32>
    %c0_94 = arith.constant 0 : index
    %c24_95 = arith.constant 24 : index
    %228 = vector.load %arg34[%c0_94, %c24_95] : memref<8x32xf32, #tpu.memory_space<vmem>>, vector<8x8xf32>
    tpu.vector_store %arg34[%c0_94, %c24_95], %227 {strides = array<i32>} : memref<8x32xf32, #tpu.memory_space<vmem>>, vector<8x8xf32>,
    %c0_96 = arith.constant 0 : index
    %c0_97 = arith.constant 0 : index
    %229 = vector.load %arg34[%c0_96, %c0_97] : memref<8x32xf32, #tpu.memory_space<vmem>>, vector<8x32xf32>
    %230 = arith.truncf %229 : vector<8x32xf32> to vector<8x32xbf16>
    %cst_98 = arith.constant dense<0.000000e+00> : vector<8x32xf32>
    %231 = tpu.matmul %230, %214, %cst_98 {dimension_numbers = #tpu.dot_dimension_numbers<[1], [0], [0], [1], [0, 0, 1, 1], [], []>} : vector<8x32xbf16>, vector<32x32xbf16>, vector<8x32xf32> -> vector<8x32xf32>
    %232 = vector.broadcast %216 : vector<1x32xf32> to vector<8x32xf32>
    %233 = arith.addf %231, %232 : vector<8x32xf32>
    %234 = arith.addf %119, %233 : vector<8x32xf32>
    %c0_99 = arith.constant 0 : index
    %c0_100 = arith.constant 0 : index
    %c0_101 = arith.constant 0 : index
    %235 = vector.load %arg20[%c0_99, %c0_100, %c0_101] : memref<1x1x32xf32, #tpu.memory_space<vmem>>, vector<1x1x32xf32>
    %236 = vector.shape_cast %235 : vector<1x1x32xf32> to vector<1x32xf32>
    %c0_102 = arith.constant 0 : index
    %c0_103 = arith.constant 0 : index
    %c0_104 = arith.constant 0 : index
    %237 = vector.load %arg21[%c0_102, %c0_103, %c0_104] : memref<1x1x32xf32, #tpu.memory_space<vmem>>, vector<1x1x32xf32>
    %238 = vector.shape_cast %237 : vector<1x1x32xf32> to vector<1x32xf32>
    %cst_105 = arith.constant dense<0.000000e+00> : vector<8xf32>
    %239 = vector.multi_reduction <add>, %234, %cst_105 [1] : vector<8x32xf32> to vector<8xf32>
    %240 = vector.shape_cast %239 : vector<8xf32> to vector<8x1xf32>
    %cst_106 = arith.constant 3.200000e+01 : f32
    %241 = vector.broadcast %cst_106 : f32 to vector<8x1xf32>
    %242 = arith.divf %240, %241 : vector<8x1xf32>
    %243 = vector.broadcast %242 : vector<8x1xf32> to vector<8x32xf32>
    %244 = arith.subf %234, %243 : vector<8x32xf32>
    %245 = arith.mulf %244, %244 : vector<8x32xf32>
    %cst_107 = arith.constant dense<0.000000e+00> : vector<8xf32>
    %246 = vector.multi_reduction <add>, %245, %cst_107 [1] : vector<8x32xf32> to vector<8xf32>
    %247 = vector.shape_cast %246 : vector<8xf32> to vector<8x1xf32>
    %cst_108 = arith.constant 3.100000e+01 : f32
    %248 = vector.broadcast %cst_108 : f32 to vector<8x1xf32>
    %249 = arith.divf %247, %248 : vector<8x1xf32>
    %250 = vector.broadcast %236 : vector<1x32xf32> to vector<8x32xf32>
    %251 = arith.mulf %250, %244 : vector<8x32xf32>
    %252 = math.sqrt %249 : vector<8x1xf32>
    %cst_109 = arith.constant 9.99999997E-7 : f32
    %253 = vector.broadcast %cst_109 : f32 to vector<8x1xf32>
    %254 = arith.addf %252, %253 : vector<8x1xf32>
    %255 = vector.broadcast %254 : vector<8x1xf32> to vector<8x32xf32>
    %256 = arith.divf %251, %255 : vector<8x32xf32>
    %257 = vector.broadcast %238 : vector<1x32xf32> to vector<8x32xf32>
    %258 = arith.addf %256, %257 : vector<8x32xf32>
    %259 = arith.truncf %258 : vector<8x32xf32> to vector<8x32xbf16>
    %c0_110 = arith.constant 0 : index
    %c0_111 = arith.constant 0 : index
    %c0_112 = arith.constant 0 : index
    %260 = vector.load %arg22[%c0_110, %c0_111, %c0_112] : memref<1x32x64xbf16, #tpu.memory_space<vmem>>, vector<1x32x64xbf16>
    %261 = vector.shape_cast %260 : vector<1x32x64xbf16> to vector<32x64xbf16>
    %cst_113 = arith.constant dense<0.000000e+00> : vector<8x64xf32>
    %262 = tpu.matmul %259, %261, %cst_113 {dimension_numbers = #tpu.dot_dimension_numbers<[1], [0], [0], [1], [0, 0, 1, 1], [], []>} : vector<8x32xbf16>, vector<32x64xbf16>, vector<8x64xf32> -> vector<8x64xf32>
    %c0_114 = arith.constant 0 : index
    %c0_115 = arith.constant 0 : index
    %c0_116 = arith.constant 0 : index
    %263 = vector.load %arg23[%c0_114, %c0_115, %c0_116] : memref<1x1x64xf32, #tpu.memory_space<vmem>>, vector<1x1x64xf32>
    %264 = vector.shape_cast %263 : vector<1x1x64xf32> to vector<1x64xf32>
    %265 = vector.broadcast %264 : vector<1x64xf32> to vector<8x64xf32>
    %266 = arith.addf %262, %265 : vector<8x64xf32>
    %cst_117 = arith.constant 0.000000e+00 : f32
    %267 = vector.broadcast %cst_117 : f32 to vector<8x64xf32>
    %268 = arith.maximumf %266, %267 : vector<8x64xf32>
    %269 = arith.truncf %268 : vector<8x64xf32> to vector<8x64xbf16>
    %c0_118 = arith.constant 0 : index
    %c0_119 = arith.constant 0 : index
    %c0_120 = arith.constant 0 : index
    %270 = vector.load %arg24[%c0_118, %c0_119, %c0_120] : memref<1x64x32xbf16, #tpu.memory_space<vmem>>, vector<1x64x32xbf16>
    %271 = vector.shape_cast %270 : vector<1x64x32xbf16> to vector<64x32xbf16>
    %cst_121 = arith.constant dense<0.000000e+00> : vector<8x32xf32>
    %272 = tpu.matmul %269, %271, %cst_121 {dimension_numbers = #tpu.dot_dimension_numbers<[1], [0], [0], [1], [0, 0, 1, 1], [], []>} : vector<8x64xbf16>, vector<64x32xbf16>, vector<8x32xf32> -> vector<8x32xf32>
    %c0_122 = arith.constant 0 : index
    %c0_123 = arith.constant 0 : index
    %c0_124 = arith.constant 0 : index
    %273 = vector.load %arg25[%c0_122, %c0_123, %c0_124] : memref<1x1x32xf32, #tpu.memory_space<vmem>>, vector<1x1x32xf32>
    %274 = vector.shape_cast %273 : vector<1x1x32xf32> to vector<1x32xf32>
    %275 = vector.broadcast %274 : vector<1x32xf32> to vector<8x32xf32>
    %276 = arith.addf %272, %275 : vector<8x32xf32>
    %277 = arith.addf %234, %276 : vector<8x32xf32>
    %c0_125 = arith.constant 0 : index
    %c0_126 = arith.constant 0 : index
    %c0_127 = arith.constant 0 : index
    %278 = vector.load %arg32[%c0_125, %c0_126, %c0_127] : memref<1x8x32xf32, #tpu.memory_space<vmem>>, vector<1x8x32xf32>
    %279 = vector.shape_cast %278 : vector<1x8x32xf32> to vector<8x32xf32>
    %280 = vector.shape_cast %277 : vector<8x32xf32> to vector<1x8x32xf32>
    tpu.vector_store %arg32[%c0_125, %c0_126, %c0_127], %280 {strides = array<i32>} : memref<1x8x32xf32, #tpu.memory_space<vmem>>, vector<1x8x32xf32>,
    %c1_i32 = arith.constant 1 : i32
    %281 = arith.cmpi eq, %arg1, %c1_i32 : i32
    %282 = arith.extui %281 : i1 to i32
    %c0_i32_128 = arith.constant 0 : i32
    %283 = arith.cmpi ne, %282, %c0_i32_128 : i32
    scf.if %283 {
      %c0_129 = arith.constant 0 : index
      %c0_130 = arith.constant 0 : index
      %284 = vector.load %arg26[%c0_129, %c0_130] : memref<1x32xf32, #tpu.memory_space<vmem>>, vector<1x32xf32>
      %c0_131 = arith.constant 0 : index
      %c0_132 = arith.constant 0 : index
      %285 = vector.load %arg27[%c0_131, %c0_132] : memref<1x32xf32, #tpu.memory_space<vmem>>, vector<1x32xf32>
      %cst_133 = arith.constant dense<0.000000e+00> : vector<8xf32>
      %286 = vector.multi_reduction <add>, %277, %cst_133 [1] : vector<8x32xf32> to vector<8xf32>
      %287 = vector.shape_cast %286 : vector<8xf32> to vector<8x1xf32>
      %cst_134 = arith.constant 3.200000e+01 : f32
      %288 = vector.broadcast %cst_134 : f32 to vector<8x1xf32>
      %289 = arith.divf %287, %288 : vector<8x1xf32>
      %290 = vector.broadcast %289 : vector<8x1xf32> to vector<8x32xf32>
      %291 = arith.subf %277, %290 : vector<8x32xf32>
      %292 = arith.mulf %291, %291 : vector<8x32xf32>
      %cst_135 = arith.constant dense<0.000000e+00> : vector<8xf32>
      %293 = vector.multi_reduction <add>, %292, %cst_135 [1] : vector<8x32xf32> to vector<8xf32>
      %294 = vector.shape_cast %293 : vector<8xf32> to vector<8x1xf32>
      %cst_136 = arith.constant 3.100000e+01 : f32
      %295 = vector.broadcast %cst_136 : f32 to vector<8x1xf32>
      %296 = arith.divf %294, %295 : vector<8x1xf32>
      %297 = vector.broadcast %284 : vector<1x32xf32> to vector<8x32xf32>
      %298 = arith.mulf %297, %291 : vector<8x32xf32>
      %299 = math.sqrt %296 : vector<8x1xf32>
      %cst_137 = arith.constant 9.99999997E-7 : f32
      %300 = vector.broadcast %cst_137 : f32 to vector<8x1xf32>
      %301 = arith.addf %299, %300 : vector<8x1xf32>
      %302 = vector.broadcast %301 : vector<8x1xf32> to vector<8x32xf32>
      %303 = arith.divf %298, %302 : vector<8x32xf32>
      %304 = vector.broadcast %285 : vector<1x32xf32> to vector<8x32xf32>
      %305 = arith.addf %303, %304 : vector<8x32xf32>
      %c0_138 = arith.constant 0 : index
      %c0_139 = arith.constant 0 : index
      %c0_140 = arith.constant 0 : index
      %306 = vector.load %arg32[%c0_138, %c0_139, %c0_140] : memref<1x8x32xf32, #tpu.memory_space<vmem>>, vector<1x8x32xf32>
      %307 = vector.shape_cast %306 : vector<1x8x32xf32> to vector<8x32xf32>
      %308 = vector.shape_cast %305 : vector<8x32xf32> to vector<1x8x32xf32>
      tpu.vector_store %arg32[%c0_138, %c0_139, %c0_140], %308 {strides = array<i32>} : memref<1x8x32xf32, #tpu.memory_space<vmem>>, vector<1x8x32xf32>,
      %309 = arith.truncf %305 : vector<8x32xf32> to vector<8x32xbf16>
      %c0_141 = arith.constant 0 : index
      %c0_142 = arith.constant 0 : index
      %310 = vector.load %arg28[%c0_141, %c0_142] : memref<32x16xbf16, #tpu.memory_space<vmem>>, vector<32x16xbf16>
      %cst_143 = arith.constant dense<0.000000e+00> : vector<8x16xf32>
      %311 = tpu.matmul %309, %310, %cst_143 {dimension_numbers = #tpu.dot_dimension_numbers<[1], [0], [0], [1], [0, 0, 1, 1], [], []>} : vector<8x32xbf16>, vector<32x16xbf16>, vector<8x16xf32> -> vector<8x16xf32>
      %c0_144 = arith.constant 0 : index
      %c0_145 = arith.constant 0 : index
      %312 = vector.load %arg29[%c0_144, %c0_145] : memref<1x16xf32, #tpu.memory_space<vmem>>, vector<1x16xf32>
      %313 = vector.broadcast %312 : vector<1x16xf32> to vector<8x16xf32>
      %314 = arith.addf %311, %313 : vector<8x16xf32>
      %315 = math.tanh %314 : vector<8x16xf32>
      %316 = arith.truncf %315 : vector<8x16xf32> to vector<8x16xbf16>
      %c0_146 = arith.constant 0 : index
      %c0_147 = arith.constant 0 : index
      %317 = vector.load %arg30[%c0_146, %c0_147] : memref<16x16xbf16, #tpu.memory_space<vmem>>, vector<16x16xbf16>
      %cst_148 = arith.constant dense<0.000000e+00> : vector<8x16xf32>
      %318 = tpu.matmul %316, %317, %cst_148 {dimension_numbers = #tpu.dot_dimension_numbers<[1], [0], [0], [1], [0, 0, 1, 1], [], []>} : vector<8x16xbf16>, vector<16x16xbf16>, vector<8x16xf32> -> vector<8x16xf32>
      %c0_149 = arith.constant 0 : index
      %c0_150 = arith.constant 0 : index
      %319 = vector.load %arg31[%c0_149, %c0_150] : memref<1x16xf32, #tpu.memory_space<vmem>>, vector<1x16xf32>
      %320 = vector.broadcast %319 : vector<1x16xf32> to vector<8x16xf32>
      %321 = arith.addf %318, %320 : vector<8x16xf32>
      %c0_151 = arith.constant 0 : index
      %c0_152 = arith.constant 0 : index
      %c0_153 = arith.constant 0 : index
      %322 = vector.load %arg33[%c0_151, %c0_152, %c0_153] : memref<1x8x16xf32, #tpu.memory_space<vmem>>, vector<1x8x16xf32>
      %323 = vector.shape_cast %322 : vector<1x8x16xf32> to vector<8x16xf32>
      %324 = vector.shape_cast %321 : vector<8x16xf32> to vector<1x8x16xf32>
      tpu.vector_store %arg33[%c0_151, %c0_152, %c0_153], %324 {strides = array<i32>} : memref<1x8x16xf32, #tpu.memory_space<vmem>>, vector<1x8x16xf32>,
    } else {
    }
    return
  }
  func.func @transform_0(%arg0: i32, %arg1: i32) -> (i32, i32, i32) {
    %c0_i32 = arith.constant 0 : i32
    %c0_i32_0 = arith.constant 0 : i32
    %c0_i32_1 = arith.constant 0 : i32
    return %arg0, %c0_i32, %c0_i32_0 : i32, i32, i32
  }
  func.func @transform_1(%arg0: i32, %arg1: i32) -> (i32, i32, i32) {
    %c0_i32 = arith.constant 0 : i32
    %c0_i32_0 = arith.constant 0 : i32
    %c0_i32_1 = arith.constant 0 : i32
    return %arg0, %c0_i32, %c0_i32_0 : i32, i32, i32
  }
  func.func @transform_2(%arg0: i32, %arg1: i32) -> (i32, i32, i32) {
    %c0_i32 = arith.constant 0 : i32
    %c0_i32_0 = arith.constant 0 : i32
    %c0_i32_1 = arith.constant 0 : i32
    return %arg0, %c0_i32, %c0_i32_0 : i32, i32, i32
  }
  func.func @transform_3(%arg0: i32, %arg1: i32) -> (i32, i32, i32) {
    %c0_i32 = arith.constant 0 : i32
    %c0_i32_0 = arith.constant 0 : i32
    %c0_i32_1 = arith.constant 0 : i32
    return %arg0, %c0_i32, %c0_i32_0 : i32, i32, i32
  }
  func.func @transform_4(%arg0: i32, %arg1: i32) -> (i32, i32, i32) {
    %c0_i32 = arith.constant 0 : i32
    %c0_i32_0 = arith.constant 0 : i32
    %c0_i32_1 = arith.constant 0 : i32
    return %arg1, %c0_i32, %c0_i32_0 : i32, i32, i32
  }
  func.func @transform_5(%arg0: i32, %arg1: i32) -> (i32, i32, i32) {
    %c0_i32 = arith.constant 0 : i32
    %c0_i32_0 = arith.constant 0 : i32
    %c0_i32_1 = arith.constant 0 : i32
    return %arg1, %c0_i32, %c0_i32_0 : i32, i32, i32
  }
  func.func @transform_6(%arg0: i32, %arg1: i32) -> (i32, i32, i32) {
    %c0_i32 = arith.constant 0 : i32
    %c0_i32_0 = arith.constant 0 : i32
    %c0_i32_1 = arith.constant 0 : i32
    return %arg1, %c0_i32, %c0_i32_0 : i32, i32, i32
  }
  func.func @transform_7(%arg0: i32, %arg1: i32) -> (i32, i32, i32) {
    %c0_i32 = arith.constant 0 : i32
    %c0_i32_0 = arith.constant 0 : i32
    %c0_i32_1 = arith.constant 0 : i32
    return %arg1, %c0_i32, %c0_i32_0 : i32, i32, i32
  }
  func.func @transform_8(%arg0: i32, %arg1: i32) -> (i32, i32, i32) {
    %c0_i32 = arith.constant 0 : i32
    %c0_i32_0 = arith.constant 0 : i32
    %c0_i32_1 = arith.constant 0 : i32
    return %arg1, %c0_i32, %c0_i32_0 : i32, i32, i32
  }
  func.func @transform_9(%arg0: i32, %arg1: i32) -> (i32, i32, i32) {
    %c0_i32 = arith.constant 0 : i32
    %c0_i32_0 = arith.constant 0 : i32
    %c0_i32_1 = arith.constant 0 : i32
    return %arg1, %c0_i32, %c0_i32_0 : i32, i32, i32
  }
  func.func @transform_10(%arg0: i32, %arg1: i32) -> (i32, i32, i32) {
    %c0_i32 = arith.constant 0 : i32
    %c0_i32_0 = arith.constant 0 : i32
    %c0_i32_1 = arith.constant 0 : i32
    return %arg1, %c0_i32, %c0_i32_0 : i32, i32, i32
  }
  func.func @transform_11(%arg0: i32, %arg1: i32) -> (i32, i32, i32) {
    %c0_i32 = arith.constant 0 : i32
    %c0_i32_0 = arith.constant 0 : i32
    %c0_i32_1 = arith.constant 0 : i32
    return %arg1, %c0_i32, %c0_i32_0 : i32, i32, i32
  }
  func.func @transform_12(%arg0: i32, %arg1: i32) -> (i32, i32, i32) {
    %c0_i32 = arith.constant 0 : i32
    %c0_i32_0 = arith.constant 0 : i32
    %c0_i32_1 = arith.constant 0 : i32
    return %arg1, %c0_i32, %c0_i32_0 : i32, i32, i32
  }
  func.func @transform_13(%arg0: i32, %arg1: i32) -> (i32, i32, i32) {
    %c0_i32 = arith.constant 0 : i32
    %c0_i32_0 = arith.constant 0 : i32
    %c0_i32_1 = arith.constant 0 : i32
    return %arg1, %c0_i32, %c0_i32_0 : i32, i32, i32
  }
  func.func @transform_14(%arg0: i32, %arg1: i32) -> (i32, i32, i32) {
    %c0_i32 = arith.constant 0 : i32
    %c0_i32_0 = arith.constant 0 : i32
    %c0_i32_1 = arith.constant 0 : i32
    return %arg1, %c0_i32, %c0_i32_0 : i32, i32, i32
  }
  func.func @transform_15(%arg0: i32, %arg1: i32) -> (i32, i32, i32) {
    %c0_i32 = arith.constant 0 : i32
    %c0_i32_0 = arith.constant 0 : i32
    %c0_i32_1 = arith.constant 0 : i32
    return %arg1, %c0_i32, %c0_i32_0 : i32, i32, i32
  }
  func.func @transform_16(%arg0: i32, %arg1: i32) -> (i32, i32, i32) {
    %c0_i32 = arith.constant 0 : i32
    %c0_i32_0 = arith.constant 0 : i32
    %c0_i32_1 = arith.constant 0 : i32
    return %arg1, %c0_i32, %c0_i32_0 : i32, i32, i32
  }
  func.func @transform_17(%arg0: i32, %arg1: i32) -> (i32, i32, i32) {
    %c0_i32 = arith.constant 0 : i32
    %c0_i32_0 = arith.constant 0 : i32
    %c0_i32_1 = arith.constant 0 : i32
    return %arg1, %c0_i32, %c0_i32_0 : i32, i32, i32
  }
  func.func @transform_18(%arg0: i32, %arg1: i32) -> (i32, i32, i32) {
    %c0_i32 = arith.constant 0 : i32
    %c0_i32_0 = arith.constant 0 : i32
    %c0_i32_1 = arith.constant 0 : i32
    return %arg1, %c0_i32, %c0_i32_0 : i32, i32, i32
  }
  func.func @transform_19(%arg0: i32, %arg1: i32) -> (i32, i32, i32) {
    %c0_i32 = arith.constant 0 : i32
    %c0_i32_0 = arith.constant 0 : i32
    %c0_i32_1 = arith.constant 0 : i32
    return %arg1, %c0_i32, %c0_i32_0 : i32, i32, i32
  }
  func.func @transform_20(%arg0: i32, %arg1: i32) -> (i32, i32, i32) {
    %c0_i32 = arith.constant 0 : i32
    %c0_i32_0 = arith.constant 0 : i32
    %c0_i32_1 = arith.constant 0 : i32
    return %arg1, %c0_i32, %c0_i32_0 : i32, i32, i32
  }
  func.func @transform_21(%arg0: i32, %arg1: i32) -> (i32, i32, i32) {
    %c0_i32 = arith.constant 0 : i32
    %c0_i32_0 = arith.constant 0 : i32
    %c0_i32_1 = arith.constant 0 : i32
    return %arg1, %c0_i32, %c0_i32_0 : i32, i32, i32
  }
  func.func @transform_22(%arg0: i32, %arg1: i32) -> (i32, i32, i32) {
    %c0_i32 = arith.constant 0 : i32
    %c0_i32_0 = arith.constant 0 : i32
    %c0_i32_1 = arith.constant 0 : i32
    return %arg1, %c0_i32, %c0_i32_0 : i32, i32, i32
  }
  func.func @transform_23(%arg0: i32, %arg1: i32) -> (i32, i32, i32) {
    %c0_i32 = arith.constant 0 : i32
    %c0_i32_0 = arith.constant 0 : i32
    %c0_i32_1 = arith.constant 0 : i32
    return %arg1, %c0_i32, %c0_i32_0 : i32, i32, i32
  }
  func.func @transform_24(%arg0: i32, %arg1: i32) -> (i32, i32) {
    %c0_i32 = arith.constant 0 : i32
    %c0_i32_0 = arith.constant 0 : i32
    %c0_i32_1 = arith.constant 0 : i32
    return %c0_i32, %c0_i32_0 : i32, i32
  }
  func.func @transform_25(%arg0: i32, %arg1: i32) -> (i32, i32) {
    %c0_i32 = arith.constant 0 : i32
    %c0_i32_0 = arith.constant 0 : i32
    %c0_i32_1 = arith.constant 0 : i32
    return %c0_i32, %c0_i32_0 : i32, i32
  }
  func.func @transform_26(%arg0: i32, %arg1: i32) -> (i32, i32) {
    %c0_i32 = arith.constant 0 : i32
    %c0_i32_0 = arith.constant 0 : i32
    %c0_i32_1 = arith.constant 0 : i32
    return %c0_i32, %c0_i32_0 : i32, i32
  }
  func.func @transform_27(%arg0: i32, %arg1: i32) -> (i32, i32) {
    %c0_i32 = arith.constant 0 : i32
    %c0_i32_0 = arith.constant 0 : i32
    %c0_i32_1 = arith.constant 0 : i32
    return %c0_i32, %c0_i32_0 : i32, i32
  }
  func.func @transform_28(%arg0: i32, %arg1: i32) -> (i32, i32) {
    %c0_i32 = arith.constant 0 : i32
    %c0_i32_0 = arith.constant 0 : i32
    %c0_i32_1 = arith.constant 0 : i32
    return %c0_i32, %c0_i32_0 : i32, i32
  }
  func.func @transform_29(%arg0: i32, %arg1: i32) -> (i32, i32) {
    %c0_i32 = arith.constant 0 : i32
    %c0_i32_0 = arith.constant 0 : i32
    %c0_i32_1 = arith.constant 0 : i32
    return %c0_i32, %c0_i32_0 : i32, i32
  }
  func.func @transform_30(%arg0: i32, %arg1: i32) -> (i32, i32, i32) {
    %c0_i32 = arith.constant 0 : i32
    %c0_i32_0 = arith.constant 0 : i32
    %c0_i32_1 = arith.constant 0 : i32
    return %arg0, %c0_i32, %c0_i32_0 : i32, i32, i32
  }
  func.func @transform_31(%arg0: i32, %arg1: i32) -> (i32, i32, i32) {
    %c0_i32 = arith.constant 0 : i32
    %c0_i32_0 = arith.constant 0 : i32
    %c0_i32_1 = arith.constant 0 : i32
    return %arg0, %c0_i32, %c0_i32_0 : i32, i32, i32
  }
}

</mosaic_0001>

<llo_original>
// kernel: molecular_decoder_forward.1
$region0: #{molecular_decoder_forward.1}
  #allocation0 [shape = 'u32[]', space=smem, size = 0x4, offset = 0x4, fixed_abs, tag = 'smem constant byte address 0x4 - core index']
  #allocation1 [shape = 'u32[144,128]{1,0:T(1,128)}', space=vmem, size = 0x12000, scoped, tag = 'internal scratch']
  #allocation2 [shape = 'f32[8,32]{1,0:T(8,128)}', space=vmem, size = 0x1000, scoped, tag = 'scratch operand']
  %s0 = inlined_call_operand.smem [shape: u32[32], index: -1, kind: input, shape index: {}]
  %s1 = sld [smem:[%s0]]
  %s2 = scalar_lea.smem %s0, 1
  %s3 = sld [smem:[%s2]]
  %s4 = scalar_lea.smem %s0, 2
  %s5 = sld [smem:[%s4]]
  %s6 = scalar_lea.smem %s0, 3
  %s7 = sld [smem:[%s6]]
  %s8 = scalar_lea.smem %s0, 4
  %s9 = sld [smem:[%s8]]
  %s10 = scalar_lea.smem %s0, 5
  %s11 = sld [smem:[%s10]]
  %s12 = scalar_lea.smem %s0, 6
  %s13 = sld [smem:[%s12]]
  %s14 = scalar_lea.smem %s0, 7
  %s15 = sld [smem:[%s14]]
  %s16 = scalar_lea.smem %s0, 8
  %s17 = sld [smem:[%s16]]
  %s18 = scalar_lea.smem %s0, 9
  %s19 = sld [smem:[%s18]]
  %s20 = scalar_lea.smem %s0, 10
  %s21 = sld [smem:[%s20]]
  %s22 = scalar_lea.smem %s0, 11
  %s23 = sld [smem:[%s22]]
  %s24 = scalar_lea.smem %s0, 12
  %s25 = sld [smem:[%s24]]
  %s26 = scalar_lea.smem %s0, 13
  %s27 = sld [smem:[%s26]]
  %s28 = scalar_lea.smem %s0, 14
  %s29 = sld [smem:[%s28]]
  %s30 = scalar_lea.smem %s0, 15
  %s31 = sld [smem:[%s30]]
  %s32 = scalar_lea.smem %s0, 16
  %s33 = sld [smem:[%s32]]
  %s34 = scalar_lea.smem %s0, 17
  %s35 = sld [smem:[%s34]]
  %s36 = scalar_lea.smem %s0, 18
  %s37 = sld [smem:[%s36]]
  %s38 = scalar_lea.smem %s0, 19
  %s39 = sld [smem:[%s38]]
  %s40 = scalar_lea.smem %s0, 20
  %s41 = sld [smem:[%s40]]
  %s42 = scalar_lea.smem %s0, 21
  %s43 = sld [smem:[%s42]]
  %s44 = scalar_lea.smem %s0, 22
  %s45 = sld [smem:[%s44]]
  %s46 = scalar_lea.smem %s0, 23
  %s47 = sld [smem:[%s46]]
  %s48 = scalar_lea.smem %s0, 24
  %s49 = sld [smem:[%s48]]
  %s50 = scalar_lea.smem %s0, 25
  %s51 = sld [smem:[%s50]]
  %s52 = scalar_lea.smem %s0, 26
  %s53 = sld [smem:[%s52]]
  %s54 = scalar_lea.smem %s0, 27
  %s55 = sld [smem:[%s54]]
  %s56 = scalar_lea.smem %s0, 28
  %s57 = sld [smem:[%s56]]
  %s58 = scalar_lea.smem %s0, 29
  %s59 = sld [smem:[%s58]]
  %s60 = scalar_lea.smem %s0, 30
  %s61 = sld [smem:[%s60]]
  %s62 = scalar_lea.smem %s0, 31
  %s63 = sld [smem:[%s62]]
  %64 = xla_tuple %s61, %s63
  %s65 = sld [smem:[#allocation0]]
  $region249: #{molecular_decoder_forward.1} parent=0
    _
  %s67 = ssub.s32 1, %s65
  %s68 = scalar_select 0, %s67, %s65
  $region1: #{molecular_decoder_forward.1} parent=0
    #allocation3 [shape = 'u8[1024]{0}', space=vmem, size = 0x400, scoped, tag = 'input window, operand 3']
    #allocation4 [shape = 's32[2]{0}', space=sflag, size = 0x8, scoped, tag = 'scoped memory for molecular_decoder_forward.1']
    #allocation5 [shape = 's32[2]{0}', space=sflag, size = 0x8, scoped, tag = 'scoped memory for molecular_decoder_forward.1']
    #allocation6 [shape = 'u8[1024]{0}', space=vmem, size = 0x400, scoped, tag = 'input window, operand 4']
    #allocation7 [shape = 's32[2]{0}', space=sflag, size = 0x8, scoped, tag = 'scoped memory for molecular_decoder_forward.1']
    #allocation8 [shape = 'u8[1024]{0}', space=vmem, size = 0x400, scoped, tag = 'input window, operand 5']
    #allocation9 [shape = 'u8[1024]{0}', space=vmem, size = 0x400, scoped, tag = 'input window, operand 7']
    #allocation10 [shape = 's32[2]{0}', space=sflag, size = 0x8, scoped, tag = 'scoped memory for molecular_decoder_forward.1']
    #allocation11 [shape = 'u8[1024]{0}', space=vmem, size = 0x400, scoped, tag = 'input window, operand 9']
    #allocation12 [shape = 'u8[1024]{0}', space=vmem, size = 0x400, scoped, tag = 'input window, operand 10']
    #allocation13 [shape = 's32[2]{0}', space=sflag, size = 0x8, scoped, tag = 'scoped memory for molecular_decoder_forward.1']
    #allocation14 [shape = 'u8[1024]{0}', space=vmem, size = 0x400, scoped, tag = 'input window, operand 11']
    #allocation15 [shape = 'u8[1024]{0}', space=vmem, size = 0x400, scoped, tag = 'input window, operand 13']
    #allocation16 [shape = 's32[2]{0}', space=sflag, size = 0x8, scoped, tag = 'scoped memory for molecular_decoder_forward.1']
    #allocation17 [shape = 'u8[1024]{0}', space=vmem, size = 0x400, scoped, tag = 'input window, operand 15']
    #allocation18 [shape = 'u8[1024]{0}', space=vmem, size = 0x400, scoped, tag = 'input window, operand 17']
    #allocation19 [shape = 's32[2]{0}', space=sflag, size = 0x8, scoped, tag = 'scoped memory for molecular_decoder_forward.1']
    #allocation20 [shape = 'u8[1024]{0}', space=vmem, size = 0x400, scoped, tag = 'input window, operand 18']
    #allocation21 [shape = 'u8[1024]{0}', space=vmem, size = 0x400, scoped, tag = 'input window, operand 19']
    #allocation22 [shape = 's32[2]{0}', space=sflag, size = 0x8, scoped, tag = 'scoped memory for molecular_decoder_forward.1']
    #allocation23 [shape = 'u8[16384]{0}', space=vmem, size = 0x4000, scoped, tag = 'input window, operand 20']
    #allocation24 [shape = 'u8[1024]{0}', space=vmem, size = 0x400, scoped, tag = 'input window, operand 21']
    #allocation25 [shape = 's32[2]{0}', space=sflag, size = 0x8, scoped, tag = 'scoped memory for molecular_decoder_forward.1']
    #allocation26 [shape = 'u8[1024]{0}', space=vmem, size = 0x400, scoped, tag = 'input window, operand 23']
    #allocation27 [shape = 'u8[512]{0}', space=vmem, size = 0x400, scoped, tag = 'input window, operand 24, single buffered']
    #allocation28 [shape = 's32[1]{0}', space=sflag, size = 0x4, scoped, tag = 'scoped memory for molecular_decoder_forward.1']
    #allocation29 [shape = 'u8[512]{0}', space=vmem, size = 0x400, scoped, tag = 'input window, operand 25, single buffered']
    #allocation30 [shape = 'u8[512]{0}', space=vmem, size = 0x400, scoped, tag = 'input window, operand 27, single buffered']
    #allocation31 [shape = 's32[1]{0}', space=sflag, size = 0x4, scoped, tag = 'scoped memory for molecular_decoder_forward.1']
    #allocation32 [shape = 'u8[4096]{0}', space=vmem, size = 0x1000, scoped, tag = 'input window, operand 28, single buffered']
    #allocation33 [shape = 'u8[512]{0}', space=vmem, size = 0x400, scoped, tag = 'input window, operand 29, single buffered']
    #allocation34 [shape = 's32[1]{0}', space=sflag, size = 0x4, scoped, tag = 'scoped memory for molecular_decoder_forward.1']
    #allocation35 [shape = 'u8[8192]{0}', space=vmem, size = 0x2000, scoped, tag = 'output window, operand 0']
    #allocation36 [shape = 'u8[8192]{0}', space=vmem, size = 0x2000, scoped, tag = 'output window, operand 1']
    #allocation37 [shape = 's32[2]{0}', space=sflag, size = 0x8, scoped, tag = 'scoped memory for molecular_decoder_forward.1']
    %69 = vsyncpa [#allocation4], 0
    %s70 = scalar_lea.sflag [#allocation4], 1
    %71 = vsyncpa %s70, 0
    %72 = vsyncpa [#allocation7], 0
    %s73 = scalar_lea.sflag [#allocation7], 1
    %74 = vsyncpa %s73, 0
    %75 = vsyncpa [#allocation10], 0
    %s76 = scalar_lea.sflag [#allocation10], 1
    %77 = vsyncpa %s76, 0
    %78 = vsyncpa [#allocation13], 0
    %s79 = scalar_lea.sflag [#allocation13], 1
    %80 = vsyncpa %s79, 0
    %81 = vsyncpa [#allocation16], 0
    %s82 = scalar_lea.sflag [#allocation16], 1
    %83 = vsyncpa %s82, 0
    %84 = vsyncpa [#allocation19], 0
    %s85 = scalar_lea.sflag [#allocation19], 1
    %86 = vsyncpa %s85, 0
    %87 = vsyncpa [#allocation22], 0
    %s88 = scalar_lea.sflag [#allocation22], 1
    %89 = vsyncpa %s88, 0
    %90 = vsyncpa [#allocation25], 0
    %s91 = scalar_lea.sflag [#allocation25], 1
    %92 = vsyncpa %s91, 0
    %93 = vsyncpa [#allocation28], 0
    %94 = vsyncpa [#allocation31], 0
    %95 = vsyncpa [#allocation34], 0
    %96 = vsyncpa [#allocation5], 0
    %s97 = scalar_lea.sflag [#allocation5], 1
    %98 = vsyncpa %s97, 0
    %99 = vsyncpa [#allocation37], 0
    %s100 = scalar_lea.sflag [#allocation37], 1
    %101 = vsyncpa %s100, 0
    loop: start=0, step=1, limit=6
    $region2: #{molecular_decoder_forward.1} parent=1 // loop_pre_header
      _
    $region3: #{molecular_decoder_forward.1} parent=1 // loop_header
      %s103 = sphi 0, %s107
      %p104 = scmp.ge.s32.totalorder %s103, 6
      %s110 = sphi 0, %s122
      %s111 = sphi 0, %s118
      %s112 = sphi 0, %s110
      %s113 = sphi 0, %s111
      %s114 = sphi 0, %s112
      %s115 = sphi 0, %s113
      %s125 = sphi 0, %s127
      %s128 = sphi 0, %s125
      %s129 = sphi 0, %s128
      %s145 = sphi 0, %s129
      %s151 = sphi 0, %s153
      %s154 = sphi 0, %s151
      %s155 = sphi 0, %s154
      %s171 = sphi 0, %s155
      %s177 = sphi 0, %s179
      %s180 = sphi 0, %s177
      %s181 = sphi 0, %s180
      %s197 = sphi 0, %s181
      %s203 = sphi 0, %s205
      %s206 = sphi 0, %s203
      %s207 = sphi 0, %s206
      %s223 = sphi 0, %s207
      %s229 = sphi 0, %s231
      %s232 = sphi 0, %s229
      %s233 = sphi 0, %s232
      %s249 = sphi 0, %s233
      %s255 = sphi 0, %s257
      %s258 = sphi 0, %s255
      %s259 = sphi 0, %s258
      %s275 = sphi 0, %s259
      %s281 = sphi 0, %s283
      %s284 = sphi 0, %s281
      %s285 = sphi 0, %s284
      %s301 = sphi 0, %s285
      %s307 = sphi 0, %s309
      %s310 = sphi 0, %s307
      %s311 = sphi 0, %s310
      %s327 = sphi 0, %s311
      %s333 = sphi 0, %s335
      %s336 = sphi 0, %s333
      %s337 = sphi 0, %s336
      %s353 = sphi 0, %s337
      %s359 = sphi 0, %s361
      %s362 = sphi 0, %s359
      %s363 = sphi 0, %s362
      %s379 = sphi 0, %s363
      %s385 = sphi 0, %s387
      %s388 = sphi 0, %s385
      %s389 = sphi 0, %s388
      %s405 = sphi 0, %s389
      %s411 = sphi 0, %s413
      %s414 = sphi 0, %s411
      %s415 = sphi 0, %s414
      %s431 = sphi 0, %s415
      %s437 = sphi 0, %s439
      %s440 = sphi 0, %s437
      %s441 = sphi 0, %s440
      %s457 = sphi 0, %s441
      %s463 = sphi 0, %s465
      %s466 = sphi 0, %s463
      %s467 = sphi 0, %s466
      %s483 = sphi 0, %s467
      %s489 = sphi 0, %s491
      %s492 = sphi 0, %s489
      %s493 = sphi 0, %s492
      %s509 = sphi 0, %s493
      %s515 = sphi 0, %s517
      %s518 = sphi 0, %s515
      %s519 = sphi 0, %s518
      %s535 = sphi 0, %s519
      %s541 = sphi 0, %s543
      %s544 = sphi 0, %s541
      %s545 = sphi 0, %s544
      %s561 = sphi 0, %s545
      %s567 = sphi 0, %s569
      %s570 = sphi 0, %s567
      %s571 = sphi 0, %s570
      %s587 = sphi 0, %s571
      %s593 = sphi 0, %s595
      %s596 = sphi 0, %s593
      %s597 = sphi 0, %s596
      %s613 = sphi 0, %s597
      %s619 = sphi 0, %s621
      %s622 = sphi 0, %s619
      %s623 = sphi 0, %s622
      %s639 = sphi 0, %s623
      %s645 = sphi 0, %s647
      %s648 = sphi 0, %s645
      %s649 = sphi 0, %s648
      %s665 = sphi 0, %s649
      %s671 = sphi 0, %s673
      %s674 = sphi 0, %s671
      %s675 = sphi 0, %s674
      %s691 = sphi 0, %s675
      %s697 = sphi 0, %s699
      %s700 = sphi 0, %s697
      %s701 = sphi 0, %s700
      %s717 = sphi 0, %s701
      %s723 = sphi 0, %s725
      %s726 = sphi 0, %s723
      %s727 = sphi 0, %s726
      %s743 = sphi 0, %s727
      %s747 = sphi 0, %s747
      %s749 = sphi 0, %s747
      %s750 = sphi 0, %s749
      %s764 = sphi 0, %s750
      %s768 = sphi 0, %s768
      %s770 = sphi 0, %s768
      %s771 = sphi 0, %s770
      %s785 = sphi 0, %s771
      %s789 = sphi 0, %s789
      %s791 = sphi 0, %s789
      %s792 = sphi 0, %s791
      %s806 = sphi 0, %s792
      %s810 = sphi 0, %s810
      %s812 = sphi 0, %s810
      %s813 = sphi 0, %s812
      %s827 = sphi 0, %s813
      %s831 = sphi 0, %s831
      %s833 = sphi 0, %s831
      %s834 = sphi 0, %s833
      %s848 = sphi 0, %s834
      %s852 = sphi 0, %s852
      %s854 = sphi 0, %s852
      %s855 = sphi 0, %s854
      %s869 = sphi 0, %s855
      %s875 = sphi 0, %s877
      %s878 = sphi 0, %s875
      %s879 = sphi 0, %s878
      %s895 = sphi 0, %s879
      %s901 = sphi 0, %s903
      %s904 = sphi 0, %s901
      %s905 = sphi 0, %s904
      %s921 = sphi 0, %s905
    $region4: #{molecular_decoder_forward.1} parent=1 // loop_header_branch
      %106 = sbr.rel (%p104) target = $region8
    $region5: #{molecular_decoder_forward.1} parent=1 // loop_body
      %s108 = ssub.s32 %s103, 1
      %s109 = ssub.s32 %s103, 2
      %s116 = sadd.s32 1, %s111
      %p117 = scmp.ge.s32.totalorder %s116, 2
      %s118 = scalar_select %p117, 0, %s116
      %s119 = sadd.s32 1, %s110
      %s120 = scalar_select %p117, %s119, %s110
      %p121 = scmp.ge.s32.totalorder %s120, 2
      %s122 = scalar_select %p121, 0, %s120
      %s123 = ssub.s32 %s110, %s122
      %p124 = scmp.eq.s32.totalorder %s123, 0
      %s126 = sadd.s32 %s125, 1
      %s127 = scalar_select %p124, %s125, %s126
      %p130 = pneg %p124
      %p131 = scmp.eq.s32.totalorder %s103, 3
      %p132 = por %p130, %p131
      %p133 = scmp.ne.s32.totalorder %s125, %s128
      %p134 = scmp.eq.s32.totalorder %s103, 0
      %p135 = por %p133, %p134
      %p136 = scmp.ne.s32.totalorder %s125, %s128
      %p137 = scmp.eq.s32.totalorder %s108, 3
      %p138 = por %p136, %p137
      %p139 = scmp.ne.s32.totalorder %s128, %s129
      %p140 = scmp.eq.s32.totalorder %s108, 0
      %p141 = por %p139, %p140
      %p142 = scmp.ne.s32.totalorder %s128, %s129
      %p143 = scmp.eq.s32.totalorder %s109, 3
      %p144 = por %p142, %p143
      %p146 = scmp.ne.s32.totalorder %s129, %s145
      %p147 = scmp.eq.s32.totalorder %s109, 0
      %p148 = por %p146, %p147
      %s149 = ssub.s32 %s110, %s122
      %p150 = scmp.eq.s32.totalorder %s149, 0
      %s152 = sadd.s32 %s151, 1
      %s153 = scalar_select %p150, %s151, %s152
      %p156 = pneg %p150
      %p157 = scmp.eq.s32.totalorder %s103, 3
      %p158 = por %p156, %p157
      %p159 = scmp.ne.s32.totalorder %s151, %s154
      %p160 = scmp.eq.s32.totalorder %s103, 0
      %p161 = por %p159, %p160
      %p162 = scmp.ne.s32.totalorder %s151, %s154
      %p163 = scmp.eq.s32.totalorder %s108, 3
      %p164 = por %p162, %p163
      %p165 = scmp.ne.s32.totalorder %s154, %s155
      %p166 = scmp.eq.s32.totalorder %s108, 0
      %p167 = por %p165, %p166
      %p168 = scmp.ne.s32.totalorder %s154, %s155
      %p169 = scmp.eq.s32.totalorder %s109, 3
      %p170 = por %p168, %p169
      %p172 = scmp.ne.s32.totalorder %s155, %s171
      %p173 = scmp.eq.s32.totalorder %s109, 0
      %p174 = por %p172, %p173
      %s175 = ssub.s32 %s110, %s122
      %p176 = scmp.eq.s32.totalorder %s175, 0
      %s178 = sadd.s32 %s177, 1
      %s179 = scalar_select %p176, %s177, %s178
      %p182 = pneg %p176
      %p183 = scmp.eq.s32.totalorder %s103, 3
      %p184 = por %p182, %p183
      %p185 = scmp.ne.s32.totalorder %s177, %s180
      %p186 = scmp.eq.s32.totalorder %s103, 0
      %p187 = por %p185, %p186
      %p188 = scmp.ne.s32.totalorder %s177, %s180
      %p189 = scmp.eq.s32.totalorder %s108, 3
      %p190 = por %p188, %p189
      %p191 = scmp.ne.s32.totalorder %s180, %s181
      %p192 = scmp.eq.s32.totalorder %s108, 0
      %p193 = por %p191, %p192
      %p194 = scmp.ne.s32.totalorder %s180, %s181
      %p195 = scmp.eq.s32.totalorder %s109, 3
      %p196 = por %p194, %p195
      %p198 = scmp.ne.s32.totalorder %s181, %s197
      %p199 = scmp.eq.s32.totalorder %s109, 0
      %p200 = por %p198, %p199
      %s201 = ssub.s32 %s110, %s122
      %p202 = scmp.eq.s32.totalorder %s201, 0
      %s204 = sadd.s32 %s203, 1
      %s205 = scalar_select %p202, %s203, %s204
      %p208 = pneg %p202
      %p209 = scmp.eq.s32.totalorder %s103, 3
      %p210 = por %p208, %p209
      %p211 = scmp.ne.s32.totalorder %s203, %s206
      %p212 = scmp.eq.s32.totalorder %s103, 0
      %p213 = por %p211, %p212
      %p214 = scmp.ne.s32.totalorder %s203, %s206
      %p215 = scmp.eq.s32.totalorder %s108, 3
      %p216 = por %p214, %p215
      %p217 = scmp.ne.s32.totalorder %s206, %s207
      %p218 = scmp.eq.s32.totalorder %s108, 0
      %p219 = por %p217, %p218
      %p220 = scmp.ne.s32.totalorder %s206, %s207
      %p221 = scmp.eq.s32.totalorder %s109, 3
      %p222 = por %p220, %p221
      %p224 = scmp.ne.s32.totalorder %s207, %s223
      %p225 = scmp.eq.s32.totalorder %s109, 0
      %p226 = por %p224, %p225
      %s227 = ssub.s32 %s111, %s118
      %p228 = scmp.eq.s32.totalorder %s227, 0
      %s230 = sadd.s32 %s229, 1
      %s231 = scalar_select %p228, %s229, %s230
      %p234 = pneg %p228
      %p235 = scmp.eq.s32.totalorder %s103, 3
      %p236 = por %p234, %p235
      %p237 = scmp.ne.s32.totalorder %s229, %s232
      %p238 = scmp.eq.s32.totalorder %s103, 0
      %p239 = por %p237, %p238
      %p240 = scmp.ne.s32.totalorder %s229, %s232
      %p241 = scmp.eq.s32.totalorder %s108, 3
      %p242 = por %p240, %p241
      %p243 = scmp.ne.s32.totalorder %s232, %s233
      %p244 = scmp.eq.s32.totalorder %s108, 0
      %p245 = por %p243, %p244
      %p246 = scmp.ne.s32.totalorder %s232, %s233
      %p247 = scmp.eq.s32.totalorder %s109, 3
      %p248 = por %p246, %p247
      %p250 = scmp.ne.s32.totalorder %s233, %s249
      %p251 = scmp.eq.s32.totalorder %s109, 0
      %p252 = por %p250, %p251
      %s253 = ssub.s32 %s111, %s118
      %p254 = scmp.eq.s32.totalorder %s253, 0
      %s256 = sadd.s32 %s255, 1
      %s257 = scalar_select %p254, %s255, %s256
      %p260 = pneg %p254
      %p261 = scmp.eq.s32.totalorder %s103, 3
      %p262 = por %p260, %p261
      %p263 = scmp.ne.s32.totalorder %s255, %s258
      %p264 = scmp.eq.s32.totalorder %s103, 0
      %p265 = por %p263, %p264
      %p266 = scmp.ne.s32.totalorder %s255, %s258
      %p267 = scmp.eq.s32.totalorder %s108, 3
      %p268 = por %p266, %p267
      %p269 = scmp.ne.s32.totalorder %s258, %s259
      %p270 = scmp.eq.s32.totalorder %s108, 0
      %p271 = por %p269, %p270
      %p272 = scmp.ne.s32.totalorder %s258, %s259
      %p273 = scmp.eq.s32.totalorder %s109, 3
      %p274 = por %p272, %p273
      %p276 = scmp.ne.s32.totalorder %s259, %s275
      %p277 = scmp.eq.s32.totalorder %s109, 0
      %p278 = por %p276, %p277
      %s279 = ssub.s32 %s111, %s118
      %p280 = scmp.eq.s32.totalorder %s279, 0
      %s282 = sadd.s32 %s281, 1
      %s283 = scalar_select %p280, %s281, %s282
      %p286 = pneg %p280
      %p287 = scmp.eq.s32.totalorder %s103, 3
      %p288 = por %p286, %p287
      %p289 = scmp.ne.s32.totalorder %s281, %s284
      %p290 = scmp.eq.s32.totalorder %s103, 0
      %p291 = por %p289, %p290
      %p292 = scmp.ne.s32.totalorder %s281, %s284
      %p293 = scmp.eq.s32.totalorder %s108, 3
      %p294 = por %p292, %p293
      %p295 = scmp.ne.s32.totalorder %s284, %s285
      %p296 = scmp.eq.s32.totalorder %s108, 0
      %p297 = por %p295, %p296
      %p298 = scmp.ne.s32.totalorder %s284, %s285
      %p299 = scmp.eq.s32.totalorder %s109, 3
      %p300 = por %p298, %p299
      %p302 = scmp.ne.s32.totalorder %s285, %s301
      %p303 = scmp.eq.s32.totalorder %s109, 0
      %p304 = por %p302, %p303
      %s305 = ssub.s32 %s111, %s118
      %p306 = scmp.eq.s32.totalorder %s305, 0
      %s308 = sadd.s32 %s307, 1
      %s309 = scalar_select %p306, %s307, %s308
      %p312 = pneg %p306
      %p313 = scmp.eq.s32.totalorder %s103, 3
      %p314 = por %p312, %p313
      %p315 = scmp.ne.s32.totalorder %s307, %s310
      %p316 = scmp.eq.s32.totalorder %s103, 0
      %p317 = por %p315, %p316
      %p318 = scmp.ne.s32.totalorder %s307, %s310
      %p319 = scmp.eq.s32.totalorder %s108, 3
      %p320 = por %p318, %p319
      %p321 = scmp.ne.s32.totalorder %s310, %s311
      %p322 = scmp.eq.s32.totalorder %s108, 0
      %p323 = por %p321, %p322
      %p324 = scmp.ne.s32.totalorder %s310, %s311
      %p325 = scmp.eq.s32.totalorder %s109, 3
      %p326 = por %p324, %p325
      %p328 = scmp.ne.s32.totalorder %s311, %s327
      %p329 = scmp.eq.s32.totalorder %s109, 0
      %p330 = por %p328, %p329
      %s331 = ssub.s32 %s111, %s118
      %p332 = scmp.eq.s32.totalorder %s331, 0
      %s334 = sadd.s32 %s333, 1
      %s335 = scalar_select %p332, %s333, %s334
      %p338 = pneg %p332
      %p339 = scmp.eq.s32.totalorder %s103, 3
      %p340 = por %p338, %p339
      %p341 = scmp.ne.s32.totalorder %s333, %s336
      %p342 = scmp.eq.s32.totalorder %s103, 0
      %p343 = por %p341, %p342
      %p344 = scmp.ne.s32.totalorder %s333, %s336
      %p345 = scmp.eq.s32.totalorder %s108, 3
      %p346 = por %p344, %p345
      %p347 = scmp.ne.s32.totalorder %s336, %s337
      %p348 = scmp.eq.s32.totalorder %s108, 0
      %p349 = por %p347, %p348
      %p350 = scmp.ne.s32.totalorder %s336, %s337
      %p351 = scmp.eq.s32.totalorder %s109, 3
      %p352 = por %p350, %p351
      %p354 = scmp.ne.s32.totalorder %s337, %s353
      %p355 = scmp.eq.s32.totalorder %s109, 0
      %p356 = por %p354, %p355
      %s357 = ssub.s32 %s111, %s118
      %p358 = scmp.eq.s32.totalorder %s357, 0
      %s360 = sadd.s32 %s359, 1
      %s361 = scalar_select %p358, %s359, %s360
      %p364 = pneg %p358
      %p365 = scmp.eq.s32.totalorder %s103, 3
      %p366 = por %p364, %p365
      %p367 = scmp.ne.s32.totalorder %s359, %s362
      %p368 = scmp.eq.s32.totalorder %s103, 0
      %p369 = por %p367, %p368
      %p370 = scmp.ne.s32.totalorder %s359, %s362
      %p371 = scmp.eq.s32.totalorder %s108, 3
      %p372 = por %p370, %p371
      %p373 = scmp.ne.s32.totalorder %s362, %s363
      %p374 = scmp.eq.s32.totalorder %s108, 0
      %p375 = por %p373, %p374
      %p376 = scmp.ne.s32.totalorder %s362, %s363
      %p377 = scmp.eq.s32.totalorder %s109, 3
      %p378 = por %p376, %p377
      %p380 = scmp.ne.s32.totalorder %s363, %s379
      %p381 = scmp.eq.s32.totalorder %s109, 0
      %p382 = por %p380, %p381
      %s383 = ssub.s32 %s111, %s118
      %p384 = scmp.eq.s32.totalorder %s383, 0
      %s386 = sadd.s32 %s385, 1
      %s387 = scalar_select %p384, %s385, %s386
      %p390 = pneg %p384
      %p391 = scmp.eq.s32.totalorder %s103, 3
      %p392 = por %p390, %p391
      %p393 = scmp.ne.s32.totalorder %s385, %s388
      %p394 = scmp.eq.s32.totalorder %s103, 0
      %p395 = por %p393, %p394
      %p396 = scmp.ne.s32.totalorder %s385, %s388
      %p397 = scmp.eq.s32.totalorder %s108, 3
      %p398 = por %p396, %p397
      %p399 = scmp.ne.s32.totalorder %s388, %s389
      %p400 = scmp.eq.s32.totalorder %s108, 0
      %p401 = por %p399, %p400
      %p402 = scmp.ne.s32.totalorder %s388, %s389
      %p403 = scmp.eq.s32.totalorder %s109, 3
      %p404 = por %p402, %p403
      %p406 = scmp.ne.s32.totalorder %s389, %s405
      %p407 = scmp.eq.s32.totalorder %s109, 0
      %p408 = por %p406, %p407
      %s409 = ssub.s32 %s111, %s118
      %p410 = scmp.eq.s32.totalorder %s409, 0
      %s412 = sadd.s32 %s411, 1
      %s413 = scalar_select %p410, %s411, %s412
      %p416 = pneg %p410
      %p417 = scmp.eq.s32.totalorder %s103, 3
      %p418 = por %p416, %p417
      %p419 = scmp.ne.s32.totalorder %s411, %s414
      %p420 = scmp.eq.s32.totalorder %s103, 0
      %p421 = por %p419, %p420
      %p422 = scmp.ne.s32.totalorder %s411, %s414
      %p423 = scmp.eq.s32.totalorder %s108, 3
      %p424 = por %p422, %p423
      %p425 = scmp.ne.s32.totalorder %s414, %s415
      %p426 = scmp.eq.s32.totalorder %s108, 0
      %p427 = por %p425, %p426
      %p428 = scmp.ne.s32.totalorder %s414, %s415
      %p429 = scmp.eq.s32.totalorder %s109, 3
      %p430 = por %p428, %p429
      %p432 = scmp.ne.s32.totalorder %s415, %s431
      %p433 = scmp.eq.s32.totalorder %s109, 0
      %p434 = por %p432, %p433
      %s435 = ssub.s32 %s111, %s118
      %p436 = scmp.eq.s32.totalorder %s435, 0
      %s438 = sadd.s32 %s437, 1
      %s439 = scalar_select %p436, %s437, %s438
      %p442 = pneg %p436
      %p443 = scmp.eq.s32.totalorder %s103, 3
      %p444 = por %p442, %p443
      %p445 = scmp.ne.s32.totalorder %s437, %s440
      %p446 = scmp.eq.s32.totalorder %s103, 0
      %p447 = por %p445, %p446
      %p448 = scmp.ne.s32.totalorder %s437, %s440
      %p449 = scmp.eq.s32.totalorder %s108, 3
      %p450 = por %p448, %p449
      %p451 = scmp.ne.s32.totalorder %s440, %s441
      %p452 = scmp.eq.s32.totalorder %s108, 0
      %p453 = por %p451, %p452
      %p454 = scmp.ne.s32.totalorder %s440, %s441
      %p455 = scmp.eq.s32.totalorder %s109, 3
      %p456 = por %p454, %p455
      %p458 = scmp.ne.s32.totalorder %s441, %s457
      %p459 = scmp.eq.s32.totalorder %s109, 0
      %p460 = por %p458, %p459
      %s461 = ssub.s32 %s111, %s118
      %p462 = scmp.eq.s32.totalorder %s461, 0
      %s464 = sadd.s32 %s463, 1
      %s465 = scalar_select %p462, %s463, %s464
      %p468 = pneg %p462
      %p469 = scmp.eq.s32.totalorder %s103, 3
      %p470 = por %p468, %p469
      %p471 = scmp.ne.s32.totalorder %s463, %s466
      %p472 = scmp.eq.s32.totalorder %s103, 0
      %p473 = por %p471, %p472
      %p474 = scmp.ne.s32.totalorder %s463, %s466
      %p475 = scmp.eq.s32.totalorder %s108, 3
      %p476 = por %p474, %p475
      %p477 = scmp.ne.s32.totalorder %s466, %s467
      %p478 = scmp.eq.s32.totalorder %s108, 0
      %p479 = por %p477, %p478
      %p480 = scmp.ne.s32.totalorder %s466, %s467
      %p481 = scmp.eq.s32.totalorder %s109, 3
      %p482 = por %p480, %p481
      %p484 = scmp.ne.s32.totalorder %s467, %s483
      %p485 = scmp.eq.s32.totalorder %s109, 0
      %p486 = por %p484, %p485
      %s487 = ssub.s32 %s111, %s118
      %p488 = scmp.eq.s32.totalorder %s487, 0
      %s490 = sadd.s32 %s489, 1
      %s491 = scalar_select %p488, %s489, %s490
      %p494 = pneg %p488
      %p495 = scmp.eq.s32.totalorder %s103, 3
      %p496 = por %p494, %p495
      %p497 = scmp.ne.s32.totalorder %s489, %s492
      %p498 = scmp.eq.s32.totalorder %s103, 0
      %p499 = por %p497, %p498
      %p500 = scmp.ne.s32.totalorder %s489, %s492
      %p501 = scmp.eq.s32.totalorder %s108, 3
      %p502 = por %p500, %p501
      %p503 = scmp.ne.s32.totalorder %s492, %s493
      %p504 = scmp.eq.s32.totalorder %s108, 0
      %p505 = por %p503, %p504
      %p506 = scmp.ne.s32.totalorder %s492, %s493
      %p507 = scmp.eq.s32.totalorder %s109, 3
      %p508 = por %p506, %p507
      %p510 = scmp.ne.s32.totalorder %s493, %s509
      %p511 = scmp.eq.s32.totalorder %s109, 0
      %p512 = por %p510, %p511
      %s513 = ssub.s32 %s111, %s118
      %p514 = scmp.eq.s32.totalorder %s513, 0
      %s516 = sadd.s32 %s515, 1
      %s517 = scalar_select %p514, %s515, %s516
      %p520 = pneg %p514
      %p521 = scmp.eq.s32.totalorder %s103, 3
      %p522 = por %p520, %p521
      %p523 = scmp.ne.s32.totalorder %s515, %s518
      %p524 = scmp.eq.s32.totalorder %s103, 0
      %p525 = por %p523, %p524
      %p526 = scmp.ne.s32.totalorder %s515, %s518
      %p527 = scmp.eq.s32.totalorder %s108, 3
      %p528 = por %p526, %p527
      %p529 = scmp.ne.s32.totalorder %s518, %s519
      %p530 = scmp.eq.s32.totalorder %s108, 0
      %p531 = por %p529, %p530
      %p532 = scmp.ne.s32.totalorder %s518, %s519
      %p533 = scmp.eq.s32.totalorder %s109, 3
      %p534 = por %p532, %p533
      %p536 = scmp.ne.s32.totalorder %s519, %s535
      %p537 = scmp.eq.s32.totalorder %s109, 0
      %p538 = por %p536, %p537
      %s539 = ssub.s32 %s111, %s118
      %p540 = scmp.eq.s32.totalorder %s539, 0
      %s542 = sadd.s32 %s541, 1
      %s543 = scalar_select %p540, %s541, %s542
      %p546 = pneg %p540
      %p547 = scmp.eq.s32.totalorder %s103, 3
      %p548 = por %p546, %p547
      %p549 = scmp.ne.s32.totalorder %s541, %s544
      %p550 = scmp.eq.s32.totalorder %s103, 0
      %p551 = por %p549, %p550
      %p552 = scmp.ne.s32.totalorder %s541, %s544
      %p553 = scmp.eq.s32.totalorder %s108, 3
      %p554 = por %p552, %p553
      %p555 = scmp.ne.s32.totalorder %s544, %s545
      %p556 = scmp.eq.s32.totalorder %s108, 0
      %p557 = por %p555, %p556
      %p558 = scmp.ne.s32.totalorder %s544, %s545
      %p559 = scmp.eq.s32.totalorder %s109, 3
      %p560 = por %p558, %p559
      %p562 = scmp.ne.s32.totalorder %s545, %s561
      %p563 = scmp.eq.s32.totalorder %s109, 0
      %p564 = por %p562, %p563
      %s565 = ssub.s32 %s111, %s118
      %p566 = scmp.eq.s32.totalorder %s565, 0
      %s568 = sadd.s32 %s567, 1
      %s569 = scalar_select %p566, %s567, %s568
      %p572 = pneg %p566
      %p573 = scmp.eq.s32.totalorder %s103, 3
      %p574 = por %p572, %p573
      %p575 = scmp.ne.s32.totalorder %s567, %s570
      %p576 = scmp.eq.s32.totalorder %s103, 0
      %p577 = por %p575, %p576
      %p578 = scmp.ne.s32.totalorder %s567, %s570
      %p579 = scmp.eq.s32.totalorder %s108, 3
      %p580 = por %p578, %p579
      %p581 = scmp.ne.s32.totalorder %s570, %s571
      %p582 = scmp.eq.s32.totalorder %s108, 0
      %p583 = por %p581, %p582
      %p584 = scmp.ne.s32.totalorder %s570, %s571
      %p585 = scmp.eq.s32.totalorder %s109, 3
      %p586 = por %p584, %p585
      %p588 = scmp.ne.s32.totalorder %s571, %s587
      %p589 = scmp.eq.s32.totalorder %s109, 0
      %p590 = por %p588, %p589
      %s591 = ssub.s32 %s111, %s118
      %p592 = scmp.eq.s32.totalorder %s591, 0
      %s594 = sadd.s32 %s593, 1
      %s595 = scalar_select %p592, %s593, %s594
      %p598 = pneg %p592
      %p599 = scmp.eq.s32.totalorder %s103, 3
      %p600 = por %p598, %p599
      %p601 = scmp.ne.s32.totalorder %s593, %s596
      %p602 = scmp.eq.s32.totalorder %s103, 0
      %p603 = por %p601, %p602
      %p604 = scmp.ne.s32.totalorder %s593, %s596
      %p605 = scmp.eq.s32.totalorder %s108, 3
      %p606 = por %p604, %p605
      %p607 = scmp.ne.s32.totalorder %s596, %s597
      %p608 = scmp.eq.s32.totalorder %s108, 0
      %p609 = por %p607, %p608
      %p610 = scmp.ne.s32.totalorder %s596, %s597
      %p611 = scmp.eq.s32.totalorder %s109, 3
      %p612 = por %p610, %p611
      %p614 = scmp.ne.s32.totalorder %s597, %s613
      %p615 = scmp.eq.s32.totalorder %s109, 0
      %p616 = por %p614, %p615
      %s617 = ssub.s32 %s111, %s118
      %p618 = scmp.eq.s32.totalorder %s617, 0
      %s620 = sadd.s32 %s619, 1
      %s621 = scalar_select %p618, %s619, %s620
      %p624 = pneg %p618
      %p625 = scmp.eq.s32.totalorder %s103, 3
      %p626 = por %p624, %p625
      %p627 = scmp.ne.s32.totalorder %s619, %s622
      %p628 = scmp.eq.s32.totalorder %s103, 0
      %p629 = por %p627, %p628
      %p630 = scmp.ne.s32.totalorder %s619, %s622
      %p631 = scmp.eq.s32.totalorder %s108, 3
      %p632 = por %p630, %p631
      %p633 = scmp.ne.s32.totalorder %s622, %s623
      %p634 = scmp.eq.s32.totalorder %s108, 0
      %p635 = por %p633, %p634
      %p636 = scmp.ne.s32.totalorder %s622, %s623
      %p637 = scmp.eq.s32.totalorder %s109, 3
      %p638 = por %p636, %p637
      %p640 = scmp.ne.s32.totalorder %s623, %s639
      %p641 = scmp.eq.s32.totalorder %s109, 0
      %p642 = por %p640, %p641
      %s643 = ssub.s32 %s111, %s118
      %p644 = scmp.eq.s32.totalorder %s643, 0
      %s646 = sadd.s32 %s645, 1
      %s647 = scalar_select %p644, %s645, %s646
      %p650 = pneg %p644
      %p651 = scmp.eq.s32.totalorder %s103, 3
      %p652 = por %p650, %p651
      %p653 = scmp.ne.s32.totalorder %s645, %s648
      %p654 = scmp.eq.s32.totalorder %s103, 0
      %p655 = por %p653, %p654
      %p656 = scmp.ne.s32.totalorder %s645, %s648
      %p657 = scmp.eq.s32.totalorder %s108, 3
      %p658 = por %p656, %p657
      %p659 = scmp.ne.s32.totalorder %s648, %s649
      %p660 = scmp.eq.s32.totalorder %s108, 0
      %p661 = por %p659, %p660
      %p662 = scmp.ne.s32.totalorder %s648, %s649
      %p663 = scmp.eq.s32.totalorder %s109, 3
      %p664 = por %p662, %p663
      %p666 = scmp.ne.s32.totalorder %s649, %s665
      %p667 = scmp.eq.s32.totalorder %s109, 0
      %p668 = por %p666, %p667
      %s669 = ssub.s32 %s111, %s118
      %p670 = scmp.eq.s32.totalorder %s669, 0
      %s672 = sadd.s32 %s671, 1
      %s673 = scalar_select %p670, %s671, %s672
      %p676 = pneg %p670
      %p677 = scmp.eq.s32.totalorder %s103, 3
      %p678 = por %p676, %p677
      %p679 = scmp.ne.s32.totalorder %s671, %s674
      %p680 = scmp.eq.s32.totalorder %s103, 0
      %p681 = por %p679, %p680
      %p682 = scmp.ne.s32.totalorder %s671, %s674
      %p683 = scmp.eq.s32.totalorder %s108, 3
      %p684 = por %p682, %p683
      %p685 = scmp.ne.s32.totalorder %s674, %s675
      %p686 = scmp.eq.s32.totalorder %s108, 0
      %p687 = por %p685, %p686
      %p688 = scmp.ne.s32.totalorder %s674, %s675
      %p689 = scmp.eq.s32.totalorder %s109, 3
      %p690 = por %p688, %p689
      %p692 = scmp.ne.s32.totalorder %s675, %s691
      %p693 = scmp.eq.s32.totalorder %s109, 0
      %p694 = por %p692, %p693
      %s695 = ssub.s32 %s111, %s118
      %p696 = scmp.eq.s32.totalorder %s695, 0
      %s698 = sadd.s32 %s697, 1
      %s699 = scalar_select %p696, %s697, %s698
      %p702 = pneg %p696
      %p703 = scmp.eq.s32.totalorder %s103, 3
      %p704 = por %p702, %p703
      %p705 = scmp.ne.s32.totalorder %s697, %s700
      %p706 = scmp.eq.s32.totalorder %s103, 0
      %p707 = por %p705, %p706
      %p708 = scmp.ne.s32.totalorder %s697, %s700
      %p709 = scmp.eq.s32.totalorder %s108, 3
      %p710 = por %p708, %p709
      %p711 = scmp.ne.s32.totalorder %s700, %s701
      %p712 = scmp.eq.s32.totalorder %s108, 0
      %p713 = por %p711, %p712
      %p714 = scmp.ne.s32.totalorder %s700, %s701
      %p715 = scmp.eq.s32.totalorder %s109, 3
      %p716 = por %p714, %p715
      %p718 = scmp.ne.s32.totalorder %s701, %s717
      %p719 = scmp.eq.s32.totalorder %s109, 0
      %p720 = por %p718, %p719
      %s721 = ssub.s32 %s111, %s118
      %p722 = scmp.eq.s32.totalorder %s721, 0
      %s724 = sadd.s32 %s723, 1
      %s725 = scalar_select %p722, %s723, %s724
      %p728 = pneg %p722
      %p729 = scmp.eq.s32.totalorder %s103, 3
      %p730 = por %p728, %p729
      %p731 = scmp.ne.s32.totalorder %s723, %s726
      %p732 = scmp.eq.s32.totalorder %s103, 0
      %p733 = por %p731, %p732
      %p734 = scmp.ne.s32.totalorder %s723, %s726
      %p735 = scmp.eq.s32.totalorder %s108, 3
      %p736 = por %p734, %p735
      %p737 = scmp.ne.s32.totalorder %s726, %s727
      %p738 = scmp.eq.s32.totalorder %s108, 0
      %p739 = por %p737, %p738
      %p740 = scmp.ne.s32.totalorder %s726, %s727
      %p741 = scmp.eq.s32.totalorder %s109, 3
      %p742 = por %p740, %p741
      %p744 = scmp.ne.s32.totalorder %s727, %s743
      %p745 = scmp.eq.s32.totalorder %s109, 0
      %p746 = por %p744, %p745
      %s748 = sadd.s32 %s747, 1
      %p751 = scmp.eq.s32.totalorder %s103, 3
      %p752 = scmp.ne.s32.totalorder %s747, %s749
      %p753 = scmp.eq.s32.totalorder %s103, 0
      %p754 = por %p752, %p753
      %p755 = scmp.ne.s32.totalorder %s747, %s749
      %p756 = scmp.eq.s32.totalorder %s108, 3
      %p757 = por %p755, %p756
      %p758 = scmp.ne.s32.totalorder %s749, %s750
      %p759 = scmp.eq.s32.totalorder %s108, 0
      %p760 = por %p758, %p759
      %p761 = scmp.ne.s32.totalorder %s749, %s750
      %p762 = scmp.eq.s32.totalorder %s109, 3
      %p763 = por %p761, %p762
      %p765 = scmp.ne.s32.totalorder %s750, %s764
      %p766 = scmp.eq.s32.totalorder %s109, 0
      %p767 = por %p765, %p766
      %s769 = sadd.s32 %s768, 1
      %p772 = scmp.eq.s32.totalorder %s103, 3
      %p773 = scmp.ne.s32.totalorder %s768, %s770
      %p774 = scmp.eq.s32.totalorder %s103, 0
      %p775 = por %p773, %p774
      %p776 = scmp.ne.s32.totalorder %s768, %s770
      %p777 = scmp.eq.s32.totalorder %s108, 3
      %p778 = por %p776, %p777
      %p779 = scmp.ne.s32.totalorder %s770, %s771
      %p780 = scmp.eq.s32.totalorder %s108, 0
      %p781 = por %p779, %p780
      %p782 = scmp.ne.s32.totalorder %s770, %s771
      %p783 = scmp.eq.s32.totalorder %s109, 3
      %p784 = por %p782, %p783
      %p786 = scmp.ne.s32.totalorder %s771, %s785
      %p787 = scmp.eq.s32.totalorder %s109, 0
      %p788 = por %p786, %p787
      %s790 = sadd.s32 %s789, 1
      %p793 = scmp.eq.s32.totalorder %s103, 3
      %p794 = scmp.ne.s32.totalorder %s789, %s791
      %p795 = scmp.eq.s32.totalorder %s103, 0
      %p796 = por %p794, %p795
      %p797 = scmp.ne.s32.totalorder %s789, %s791
      %p798 = scmp.eq.s32.totalorder %s108, 3
      %p799 = por %p797, %p798
      %p800 = scmp.ne.s32.totalorder %s791, %s792
      %p801 = scmp.eq.s32.totalorder %s108, 0
      %p802 = por %p800, %p801
      %p803 = scmp.ne.s32.totalorder %s791, %s792
      %p804 = scmp.eq.s32.totalorder %s109, 3
      %p805 = por %p803, %p804
      %p807 = scmp.ne.s32.totalorder %s792, %s806
      %p808 = scmp.eq.s32.totalorder %s109, 0
      %p809 = por %p807, %p808
      %s811 = sadd.s32 %s810, 1
      %p814 = scmp.eq.s32.totalorder %s103, 3
      %p815 = scmp.ne.s32.totalorder %s810, %s812
      %p816 = scmp.eq.s32.totalorder %s103, 0
      %p817 = por %p815, %p816
      %p818 = scmp.ne.s32.totalorder %s810, %s812
      %p819 = scmp.eq.s32.totalorder %s108, 3
      %p820 = por %p818, %p819
      %p821 = scmp.ne.s32.totalorder %s812, %s813
      %p822 = scmp.eq.s32.totalorder %s108, 0
      %p823 = por %p821, %p822
      %p824 = scmp.ne.s32.totalorder %s812, %s813
      %p825 = scmp.eq.s32.totalorder %s109, 3
      %p826 = por %p824, %p825
      %p828 = scmp.ne.s32.totalorder %s813, %s827
      %p829 = scmp.eq.s32.totalorder %s109, 0
      %p830 = por %p828, %p829
      %s832 = sadd.s32 %s831, 1
      %p835 = scmp.eq.s32.totalorder %s103, 3
      %p836 = scmp.ne.s32.totalorder %s831, %s833
      %p837 = scmp.eq.s32.totalorder %s103, 0
      %p838 = por %p836, %p837
      %p839 = scmp.ne.s32.totalorder %s831, %s833
      %p840 = scmp.eq.s32.totalorder %s108, 3
      %p841 = por %p839, %p840
      %p842 = scmp.ne.s32.totalorder %s833, %s834
      %p843 = scmp.eq.s32.totalorder %s108, 0
      %p844 = por %p842, %p843
      %p845 = scmp.ne.s32.totalorder %s833, %s834
      %p846 = scmp.eq.s32.totalorder %s109, 3
      %p847 = por %p845, %p846
      %p849 = scmp.ne.s32.totalorder %s834, %s848
      %p850 = scmp.eq.s32.totalorder %s109, 0
      %p851 = por %p849, %p850
      %s853 = sadd.s32 %s852, 1
      %p856 = scmp.eq.s32.totalorder %s103, 3
      %p857 = scmp.ne.s32.totalorder %s852, %s854
      %p858 = scmp.eq.s32.totalorder %s103, 0
      %p859 = por %p857, %p858
      %p860 = scmp.ne.s32.totalorder %s852, %s854
      %p861 = scmp.eq.s32.totalorder %s108, 3
      %p862 = por %p860, %p861
      %p863 = scmp.ne.s32.totalorder %s854, %s855
      %p864 = scmp.eq.s32.totalorder %s108, 0
      %p865 = por %p863, %p864
      %p866 = scmp.ne.s32.totalorder %s854, %s855
      %p867 = scmp.eq.s32.totalorder %s109, 3
      %p868 = por %p866, %p867
      %p870 = scmp.ne.s32.totalorder %s855, %s869
      %p871 = scmp.eq.s32.totalorder %s109, 0
      %p872 = por %p870, %p871
      %s873 = ssub.s32 %s110, %s122
      %p874 = scmp.eq.s32.totalorder %s873, 0
      %s876 = sadd.s32 %s875, 1
      %s877 = scalar_select %p874, %s875, %s876
      %p880 = pneg %p874
      %p881 = scmp.eq.s32.totalorder %s103, 3
      %p882 = por %p880, %p881
      %p883 = scmp.ne.s32.totalorder %s875, %s878
      %p884 = scmp.eq.s32.totalorder %s103, 0
      %p885 = por %p883, %p884
      %p886 = scmp.ne.s32.totalorder %s875, %s878
      %p887 = scmp.eq.s32.totalorder %s108, 3
      %p888 = por %p886, %p887
      %p889 = scmp.ne.s32.totalorder %s878, %s879
      %p890 = scmp.eq.s32.totalorder %s108, 0
      %p891 = por %p889, %p890
      %p892 = scmp.ne.s32.totalorder %s878, %s879
      %p893 = scmp.eq.s32.totalorder %s109, 3
      %p894 = por %p892, %p893
      %p896 = scmp.ne.s32.totalorder %s879, %s895
      %p897 = scmp.eq.s32.totalorder %s109, 0
      %p898 = por %p896, %p897
      %s899 = ssub.s32 %s110, %s122
      %p900 = scmp.eq.s32.totalorder %s899, 0
      %s902 = sadd.s32 %s901, 1
      %s903 = scalar_select %p900, %s901, %s902
      %p906 = pneg %p900
      %p907 = scmp.eq.s32.totalorder %s103, 3
      %p908 = por %p906, %p907
      %p909 = scmp.ne.s32.totalorder %s901, %s904
      %p910 = scmp.eq.s32.totalorder %s103, 0
      %p911 = por %p909, %p910
      %p912 = scmp.ne.s32.totalorder %s901, %s904
      %p913 = scmp.eq.s32.totalorder %s108, 3
      %p914 = por %p912, %p913
      %p915 = scmp.ne.s32.totalorder %s904, %s905
      %p916 = scmp.eq.s32.totalorder %s108, 0
      %p917 = por %p915, %p916
      %p918 = scmp.ne.s32.totalorder %s904, %s905
      %p919 = scmp.eq.s32.totalorder %s109, 3
      %p920 = por %p918, %p919
      %p922 = scmp.ne.s32.totalorder %s905, %s921
      %p923 = scmp.eq.s32.totalorder %s109, 0
      %p924 = por %p922, %p923
      %p925 = scmp.le.s32.totalorder 1, %s103
      %p926 = scmp.lt.s32.totalorder %s103, 5
      %p927 = pnand %p925, %p926
      %p928 = pneg %p927
      // Predicated region
      $region9: #{molecular_decoder_forward.1} parent=5 // pred_check
        _
      $region10: #{molecular_decoder_forward.1} parent=5 // pred_check_branch
        %930 = sbr.rel (%p927) target = $region12
      $region11: #{molecular_decoder_forward.1} parent=5 // pred_region
        %s931 = ssub.s32 %s103, 1
        // Predicated region
        $region13: #{molecular_decoder_forward.1} parent=11 // pred_check
          %p932 = pneg %p760
        $region14: #{molecular_decoder_forward.1} parent=11 // pred_check_branch
          %934 = sbr.rel (%p932) target = $region16
        $region15: #{molecular_decoder_forward.1} parent=11 // pred_region
          %s936 = ssub.s32 16, 16
          %937 = vsyncadd [#allocation28], %s936
          %s939 = sshll.u32 [#allocation27], 4
          %s940 = int_to_ptr.vmem [resolvable:$true] %s939
          %942 = dma.hbm_to_vmem [thread:$0]  %s49, 16, %s940, [#allocation28]
        $region16: #{molecular_decoder_forward.1} parent=11 // pred_fallthru
          _
        // Predicated region
        $region17: #{molecular_decoder_forward.1} parent=11 // pred_check
          %p943 = pneg %p781
        $region18: #{molecular_decoder_forward.1} parent=11 // pred_check_branch
          %945 = sbr.rel (%p943) target = $region20
        $region19: #{molecular_decoder_forward.1} parent=11 // pred_region
          %s947 = ssub.s32 16, 16
          %948 = vsyncadd [#allocation28], %s947
          %s950 = sshll.u32 [#allocation29], 4
          %s951 = int_to_ptr.vmem [resolvable:$true] %s950
          %953 = dma.hbm_to_vmem [thread:$0]  %s51, 16, %s951, [#allocation28]
        $region20: #{molecular_decoder_forward.1} parent=11 // pred_fallthru
          _
        // Predicated region
        $region21: #{molecular_decoder_forward.1} parent=11 // pred_check
          %p954 = pneg %p802
        $region22: #{molecular_decoder_forward.1} parent=11 // pred_check_branch
          %956 = sbr.rel (%p954) target = $region24
        $region23: #{molecular_decoder_forward.1} parent=11 // pred_region
          _
        $region24: #{molecular_decoder_forward.1} parent=11 // pred_fallthru
          _
        // Predicated region
        $region25: #{molecular_decoder_forward.1} parent=11 // pred_check
          %p957 = pneg %p823
        $region26: #{molecular_decoder_forward.1} parent=11 // pred_check_branch
          %959 = sbr.rel (%p957) target = $region28
        $region27: #{molecular_decoder_forward.1} parent=11 // pred_region
          %s961 = ssub.s32 16, 16
          %962 = vsyncadd [#allocation31], %s961
          %s964 = sshll.u32 [#allocation30], 4
          %s965 = int_to_ptr.vmem [resolvable:$true] %s964
          %967 = dma.hbm_to_vmem [thread:$0]  %s55, 16, %s965, [#allocation31]
        $region28: #{molecular_decoder_forward.1} parent=11 // pred_fallthru
          _
        // Predicated region
        $region29: #{molecular_decoder_forward.1} parent=11 // pred_check
          %p968 = pneg %p844
        $region30: #{molecular_decoder_forward.1} parent=11 // pred_check_branch
          %970 = sbr.rel (%p968) target = $region32
        $region31: #{molecular_decoder_forward.1} parent=11 // pred_region
          %s972 = ssub.s32 128, 128
          %973 = vsyncadd [#allocation31], %s972
          %s974 = sshll.u32 [#allocation32], 4
          %s975 = int_to_ptr.vmem [resolvable:$true] %s974
          %980 = dma.hbm_to_vmem [thread:$0]  %s57, 128, %s975, [#allocation31], 64, 64, 4
        $region32: #{molecular_decoder_forward.1} parent=11 // pred_fallthru
          _
        // Predicated region
        $region33: #{molecular_decoder_forward.1} parent=11 // pred_check
          %p981 = pneg %p865
        $region34: #{molecular_decoder_forward.1} parent=11 // pred_check_branch
          %983 = sbr.rel (%p981) target = $region36
        $region35: #{molecular_decoder_forward.1} parent=11 // pred_region
          %s985 = ssub.s32 16, 16
          %986 = vsyncadd [#allocation34], %s985
          %s988 = sshll.u32 [#allocation33], 4
          %s989 = int_to_ptr.vmem [resolvable:$true] %s988
          %991 = dma.hbm_to_vmem [thread:$0]  %s59, 16, %s989, [#allocation34]
        $region36: #{molecular_decoder_forward.1} parent=11 // pred_fallthru
          _
      $region12: #{molecular_decoder_forward.1} parent=5 // pred_fallthru
        _
      %p992 = scmp.lt.s32.totalorder %s103, 4
      // Predicated region
      $region37: #{molecular_decoder_forward.1} parent=5 // pred_check
        %p993 = pneg %p992
      $region38: #{molecular_decoder_forward.1} parent=5 // pred_check_branch
        %995 = sbr.rel (%p993) target = $region40
      $region39: #{molecular_decoder_forward.1} parent=5 // pred_region
        // Predicated region
        $region41: #{molecular_decoder_forward.1} parent=39 // pred_check
          %p996 = pneg %p135
        $region42: #{molecular_decoder_forward.1} parent=39 // pred_check_branch
          %998 = sbr.rel (%p996) target = $region44
        $region43: #{molecular_decoder_forward.1} parent=39 // pred_region
          %p999 = scmp.lt.s32.totalorder %s110, 1
          %s1000 = scalar_select %p999, %s110, 1
          %s1001 = smul.addr %s1000, 8
          %s1002 = scalar_lea.vmem %s1, %s1001
        $region44: #{molecular_decoder_forward.1} parent=39 // pred_fallthru
          _
        // Predicated region
        $region45: #{molecular_decoder_forward.1} parent=39 // pred_check
          %p1003 = pneg %p161
        $region46: #{molecular_decoder_forward.1} parent=39 // pred_check_branch
          %1005 = sbr.rel (%p1003) target = $region48
        $region47: #{molecular_decoder_forward.1} parent=39 // pred_region
          %p1006 = scmp.lt.s32.totalorder %s110, 1
          %s1007 = scalar_select %p1006, %s110, 1
          %s1008 = smul.addr %s1007, 4
          %s1009 = scalar_lea.vmem %s3, %s1008
        $region48: #{molecular_decoder_forward.1} parent=39 // pred_fallthru
          _
        // Predicated region
        $region49: #{molecular_decoder_forward.1} parent=39 // pred_check
          %p1010 = pneg %p187
        $region50: #{molecular_decoder_forward.1} parent=39 // pred_check_branch
          %1012 = sbr.rel (%p1010) target = $region52
        $region51: #{molecular_decoder_forward.1} parent=39 // pred_region
          %p1013 = scmp.lt.s32.totalorder %s110, 1
          %s1014 = scalar_select %p1013, %s110, 1
          %s1015 = smul.addr %s1014, 8
          %s1016 = scalar_lea.vmem %s5, %s1015
        $region52: #{molecular_decoder_forward.1} parent=39 // pred_fallthru
          _
        // Predicated region
        $region53: #{molecular_decoder_forward.1} parent=39 // pred_check
          %p1017 = pneg %p213
        $region54: #{molecular_decoder_forward.1} parent=39 // pred_check_branch
          %1019 = sbr.rel (%p1017) target = $region56
        $region55: #{molecular_decoder_forward.1} parent=39 // pred_region
          %s1020 = sand.u32 %s203, 1
          %s1021 = scalar_lea.sflag [#allocation4], %s1020
          %s1022 = sand.u32 %s203, 1
          %s1023 = scalar_lea.vmem [#allocation3], %s1022
          %s1025 = ssub.s32 16, 16
          %1026 = vsyncadd %s1021, %s1025
          %s1027 = smul.addr %s110, 16
          %s1028 = scalar_lea.hbm %s7, %s1027
          %s1030 = sshll.u32 %s1023, 4
          %s1031 = int_to_ptr.vmem [resolvable:$true] %s1030
          %1033 = dma.hbm_to_vmem [thread:$0]  %s1028, 16, %s1031, %s1021
        $region56: #{molecular_decoder_forward.1} parent=39 // pred_fallthru
          _
        // Predicated region
        $region57: #{molecular_decoder_forward.1} parent=39 // pred_check
          %p1034 = pneg %p239
        $region58: #{molecular_decoder_forward.1} parent=39 // pred_check_branch
          %1036 = sbr.rel (%p1034) target = $region60
        $region59: #{molecular_decoder_forward.1} parent=39 // pred_region
          %s1037 = sand.u32 %s103, 1
          %s1038 = scalar_lea.sflag [#allocation7], %s1037
          %s1039 = sand.u32 %s229, 1
          %s1040 = scalar_lea.vmem [#allocation6], %s1039
          %s1042 = ssub.s32 16, 16
          %1043 = vsyncadd %s1038, %s1042
          %s1044 = smul.addr %s111, 16
          %s1045 = scalar_lea.hbm %s9, %s1044
          %s1047 = sshll.u32 %s1040, 4
          %s1048 = int_to_ptr.vmem [resolvable:$true] %s1047
          %1050 = dma.hbm_to_vmem [thread:$0]  %s1045, 16, %s1048, %s1038
        $region60: #{molecular_decoder_forward.1} parent=39 // pred_fallthru
          _
        // Predicated region
        $region61: #{molecular_decoder_forward.1} parent=39 // pred_check
          %p1051 = pneg %p265
        $region62: #{molecular_decoder_forward.1} parent=39 // pred_check_branch
          %1053 = sbr.rel (%p1051) target = $region64
        $region63: #{molecular_decoder_forward.1} parent=39 // pred_region
          %s1054 = sand.u32 %s103, 1
          %s1055 = scalar_lea.sflag [#allocation7], %s1054
          %s1056 = sand.u32 %s255, 1
          %s1057 = scalar_lea.vmem [#allocation8], %s1056
          %s1059 = ssub.s32 16, 16
          %1060 = vsyncadd %s1055, %s1059
          %s1061 = smul.addr %s111, 16
          %s1062 = scalar_lea.hbm %s11, %s1061
          %s1064 = sshll.u32 %s1057, 4
          %s1065 = int_to_ptr.vmem [resolvable:$true] %s1064
          %1067 = dma.hbm_to_vmem [thread:$0]  %s1062, 16, %s1065, %s1055
        $region64: #{molecular_decoder_forward.1} parent=39 // pred_fallthru
          _
        // Predicated region
        $region65: #{molecular_decoder_forward.1} parent=39 // pred_check
          %p1068 = pneg %p291
        $region66: #{molecular_decoder_forward.1} parent=39 // pred_check_branch
          %1070 = sbr.rel (%p1068) target = $region68
        $region67: #{molecular_decoder_forward.1} parent=39 // pred_region
          %p1071 = scmp.lt.s32.totalorder %s111, 1
          %s1072 = scalar_select %p1071, %s111, 1
          %s1073 = smul.addr %s1072, 4
          %s1074 = smul.addr %s1073, 4
          %s1075 = scalar_lea.vmem %s13, %s1074
        $region68: #{molecular_decoder_forward.1} parent=39 // pred_fallthru
          _
        // Predicated region
        $region69: #{molecular_decoder_forward.1} parent=39 // pred_check
          %p1076 = pneg %p317
        $region70: #{molecular_decoder_forward.1} parent=39 // pred_check_branch
          %1078 = sbr.rel (%p1076) target = $region72
        $region71: #{molecular_decoder_forward.1} parent=39 // pred_region
          %s1079 = sand.u32 %s103, 1
          %s1080 = scalar_lea.sflag [#allocation10], %s1079
          %s1081 = sand.u32 %s307, 1
          %s1082 = scalar_lea.vmem [#allocation9], %s1081
          %s1084 = ssub.s32 16, 16
          %1085 = vsyncadd %s1080, %s1084
          %s1086 = smul.addr %s111, 16
          %s1087 = scalar_lea.hbm %s15, %s1086
          %s1089 = sshll.u32 %s1082, 4
          %s1090 = int_to_ptr.vmem [resolvable:$true] %s1089
          %1092 = dma.hbm_to_vmem [thread:$0]  %s1087, 16, %s1090, %s1080
        $region72: #{molecular_decoder_forward.1} parent=39 // pred_fallthru
          _
        // Predicated region
        $region73: #{molecular_decoder_forward.1} parent=39 // pred_check
          %p1093 = pneg %p343
        $region74: #{molecular_decoder_forward.1} parent=39 // pred_check_branch
          %1095 = sbr.rel (%p1093) target = $region76
        $region75: #{molecular_decoder_forward.1} parent=39 // pred_region
          %p1096 = scmp.lt.s32.totalorder %s111, 1
          %s1097 = scalar_select %p1096, %s111, 1
          %s1098 = smul.addr %s1097, 4
          %s1099 = smul.addr %s1098, 4
          %s1100 = scalar_lea.vmem %s17, %s1099
        $region76: #{molecular_decoder_forward.1} parent=39 // pred_fallthru
          _
        // Predicated region
        $region77: #{molecular_decoder_forward.1} parent=39 // pred_check
          %p1101 = pneg %p369
        $region78: #{molecular_decoder_forward.1} parent=39 // pred_check_branch
          %1103 = sbr.rel (%p1101) target = $region80
        $region79: #{molecular_decoder_forward.1} parent=39 // pred_region
          %s1104 = sand.u32 %s103, 1
          %s1105 = scalar_lea.sflag [#allocation10], %s1104
          %s1106 = sand.u32 %s359, 1
          %s1107 = scalar_lea.vmem [#allocation11], %s1106
          %s1109 = ssub.s32 16, 16
          %1110 = vsyncadd %s1105, %s1109
          %s1111 = smul.addr %s111, 16
          %s1112 = scalar_lea.hbm %s19, %s1111
          %s1114 = sshll.u32 %s1107, 4
          %s1115 = int_to_ptr.vmem [resolvable:$true] %s1114
          %1117 = dma.hbm_to_vmem [thread:$0]  %s1112, 16, %s1115, %s1105
        $region80: #{molecular_decoder_forward.1} parent=39 // pred_fallthru
          _
        // Predicated region
        $region81: #{molecular_decoder_forward.1} parent=39 // pred_check
          %p1118 = pneg %p395
        $region82: #{molecular_decoder_forward.1} parent=39 // pred_check_branch
          %1120 = sbr.rel (%p1118) target = $region84
        $region83: #{molecular_decoder_forward.1} parent=39 // pred_region
          %s1121 = sand.u32 %s103, 1
          %s1122 = scalar_lea.sflag [#allocation13], %s1121
          %s1123 = sand.u32 %s385, 1
          %s1124 = scalar_lea.vmem [#allocation12], %s1123
          %s1126 = ssub.s32 16, 16
          %1127 = vsyncadd %s1122, %s1126
          %s1128 = smul.addr %s111, 16
          %s1129 = scalar_lea.hbm %s21, %s1128
          %s1131 = sshll.u32 %s1124, 4
          %s1132 = int_to_ptr.vmem [resolvable:$true] %s1131
          %1134 = dma.hbm_to_vmem [thread:$0]  %s1129, 16, %s1132, %s1122
        $region84: #{molecular_decoder_forward.1} parent=39 // pred_fallthru
          _
        // Predicated region
        $region85: #{molecular_decoder_forward.1} parent=39 // pred_check
          %p1135 = pneg %p421
        $region86: #{molecular_decoder_forward.1} parent=39 // pred_check_branch
          %1137 = sbr.rel (%p1135) target = $region88
        $region87: #{molecular_decoder_forward.1} parent=39 // pred_region
          %s1138 = sand.u32 %s103, 1
          %s1139 = scalar_lea.sflag [#allocation13], %s1138
          %s1140 = sand.u32 %s411, 1
          %s1141 = scalar_lea.vmem [#allocation14], %s1140
          %s1143 = ssub.s32 16, 16
          %1144 = vsyncadd %s1139, %s1143
          %s1145 = smul.addr %s111, 16
          %s1146 = scalar_lea.hbm %s23, %s1145
          %s1148 = sshll.u32 %s1141, 4
          %s1149 = int_to_ptr.vmem [resolvable:$true] %s1148
          %1151 = dma.hbm_to_vmem [thread:$0]  %s1146, 16, %s1149, %s1139
        $region88: #{molecular_decoder_forward.1} parent=39 // pred_fallthru
          _
        // Predicated region
        $region89: #{molecular_decoder_forward.1} parent=39 // pred_check
          %p1152 = pneg %p447
        $region90: #{molecular_decoder_forward.1} parent=39 // pred_check_branch
          %1154 = sbr.rel (%p1152) target = $region92
        $region91: #{molecular_decoder_forward.1} parent=39 // pred_region
          %p1155 = scmp.lt.s32.totalorder %s111, 1
          %s1156 = scalar_select %p1155, %s111, 1
          %s1157 = smul.addr %s1156, 4
          %s1158 = smul.addr %s1157, 4
          %s1159 = scalar_lea.vmem %s25, %s1158
        $region92: #{molecular_decoder_forward.1} parent=39 // pred_fallthru
          _
        // Predicated region
        $region93: #{molecular_decoder_forward.1} parent=39 // pred_check
          %p1160 = pneg %p473
        $region94: #{molecular_decoder_forward.1} parent=39 // pred_check_branch
          %1162 = sbr.rel (%p1160) target = $region96
        $region95: #{molecular_decoder_forward.1} parent=39 // pred_region
          %s1163 = sand.u32 %s103, 1
          %s1164 = scalar_lea.sflag [#allocation16], %s1163
          %s1165 = sand.u32 %s463, 1
          %s1166 = scalar_lea.vmem [#allocation15], %s1165
          %s1168 = ssub.s32 16, 16
          %1169 = vsyncadd %s1164, %s1168
          %s1170 = smul.addr %s111, 16
          %s1171 = scalar_lea.hbm %s27, %s1170
          %s1173 = sshll.u32 %s1166, 4
          %s1174 = int_to_ptr.vmem [resolvable:$true] %s1173
          %1176 = dma.hbm_to_vmem [thread:$0]  %s1171, 16, %s1174, %s1164
        $region96: #{molecular_decoder_forward.1} parent=39 // pred_fallthru
          _
        // Predicated region
        $region97: #{molecular_decoder_forward.1} parent=39 // pred_check
          %p1177 = pneg %p499
        $region98: #{molecular_decoder_forward.1} parent=39 // pred_check_branch
          %1179 = sbr.rel (%p1177) target = $region100
        $region99: #{molecular_decoder_forward.1} parent=39 // pred_region
          %p1180 = scmp.lt.s32.totalorder %s111, 1
          %s1181 = scalar_select %p1180, %s111, 1
          %s1182 = smul.addr %s1181, 4
          %s1183 = smul.addr %s1182, 4
          %s1184 = scalar_lea.vmem %s29, %s1183
        $region100: #{molecular_decoder_forward.1} parent=39 // pred_fallthru
          _
        // Predicated region
        $region101: #{molecular_decoder_forward.1} parent=39 // pred_check
          %p1185 = pneg %p525
        $region102: #{molecular_decoder_forward.1} parent=39 // pred_check_branch
          %1187 = sbr.rel (%p1185) target = $region104
        $region103: #{molecular_decoder_forward.1} parent=39 // pred_region
          %s1188 = sand.u32 %s103, 1
          %s1189 = scalar_lea.sflag [#allocation16], %s1188
          %s1190 = sand.u32 %s515, 1
          %s1191 = scalar_lea.vmem [#allocation17], %s1190
          %s1193 = ssub.s32 16, 16
          %1194 = vsyncadd %s1189, %s1193
          %s1195 = smul.addr %s111, 16
          %s1196 = scalar_lea.hbm %s31, %s1195
          %s1198 = sshll.u32 %s1191, 4
          %s1199 = int_to_ptr.vmem [resolvable:$true] %s1198
          %1201 = dma.hbm_to_vmem [thread:$0]  %s1196, 16, %s1199, %s1189
        $region104: #{molecular_decoder_forward.1} parent=39 // pred_fallthru
          _
        // Predicated region
        $region105: #{molecular_decoder_forward.1} parent=39 // pred_check
          %p1202 = pneg %p551
        $region106: #{molecular_decoder_forward.1} parent=39 // pred_check_branch
          %1204 = sbr.rel (%p1202) target = $region108
        $region107: #{molecular_decoder_forward.1} parent=39 // pred_region
          %p1205 = scmp.lt.s32.totalorder %s111, 1
          %s1206 = scalar_select %p1205, %s111, 1
          %s1207 = smul.addr %s1206, 4
          %s1208 = smul.addr %s1207, 4
          %s1209 = scalar_lea.vmem %s33, %s1208
        $region108: #{molecular_decoder_forward.1} parent=39 // pred_fallthru
          _
        // Predicated region
        $region109: #{molecular_decoder_forward.1} parent=39 // pred_check
          %p1210 = pneg %p577
        $region110: #{molecular_decoder_forward.1} parent=39 // pred_check_branch
          %1212 = sbr.rel (%p1210) target = $region112
        $region111: #{molecular_decoder_forward.1} parent=39 // pred_region
          %s1213 = sand.u32 %s103, 1
          %s1214 = scalar_lea.sflag [#allocation19], %s1213
          %s1215 = sand.u32 %s567, 1
          %s1216 = scalar_lea.vmem [#allocation18], %s1215
          %s1218 = ssub.s32 16, 16
          %1219 = vsyncadd %s1214, %s1218
          %s1220 = smul.addr %s111, 16
          %s1221 = scalar_lea.hbm %s35, %s1220
          %s1223 = sshll.u32 %s1216, 4
          %s1224 = int_to_ptr.vmem [resolvable:$true] %s1223
          %1226 = dma.hbm_to_vmem [thread:$0]  %s1221, 16, %s1224, %s1214
        $region112: #{molecular_decoder_forward.1} parent=39 // pred_fallthru
          _
        // Predicated region
        $region113: #{molecular_decoder_forward.1} parent=39 // pred_check
          %p1227 = pneg %p603
        $region114: #{molecular_decoder_forward.1} parent=39 // pred_check_branch
          %1229 = sbr.rel (%p1227) target = $region116
        $region115: #{molecular_decoder_forward.1} parent=39 // pred_region
          %s1230 = sand.u32 %s103, 1
          %s1231 = scalar_lea.sflag [#allocation19], %s1230
          %s1232 = sand.u32 %s593, 1
          %s1233 = scalar_lea.vmem [#allocation20], %s1232
          %s1235 = ssub.s32 16, 16
          %1236 = vsyncadd %s1231, %s1235
          %s1237 = smul.addr %s111, 16
          %s1238 = scalar_lea.hbm %s37, %s1237
          %s1240 = sshll.u32 %s1233, 4
          %s1241 = int_to_ptr.vmem [resolvable:$true] %s1240
          %1243 = dma.hbm_to_vmem [thread:$0]  %s1238, 16, %s1241, %s1231
        $region116: #{molecular_decoder_forward.1} parent=39 // pred_fallthru
          _
        // Predicated region
        $region117: #{molecular_decoder_forward.1} parent=39 // pred_check
          %p1244 = pneg %p629
        $region118: #{molecular_decoder_forward.1} parent=39 // pred_check_branch
          %1246 = sbr.rel (%p1244) target = $region120
        $region119: #{molecular_decoder_forward.1} parent=39 // pred_region
          %s1247 = sand.u32 %s103, 1
          %s1248 = scalar_lea.sflag [#allocation22], %s1247
          %s1249 = sand.u32 %s619, 1
          %s1250 = scalar_lea.vmem [#allocation21], %s1249
          %s1252 = ssub.s32 16, 16
          %1253 = vsyncadd %s1248, %s1252
          %s1254 = smul.addr %s111, 16
          %s1255 = scalar_lea.hbm %s39, %s1254
          %s1257 = sshll.u32 %s1250, 4
          %s1258 = int_to_ptr.vmem [resolvable:$true] %s1257
          %1260 = dma.hbm_to_vmem [thread:$0]  %s1255, 16, %s1258, %s1248
        $region120: #{molecular_decoder_forward.1} parent=39 // pred_fallthru
          _
        // Predicated region
        $region121: #{molecular_decoder_forward.1} parent=39 // pred_check
          %p1261 = pneg %p655
        $region122: #{molecular_decoder_forward.1} parent=39 // pred_check_branch
          %1263 = sbr.rel (%p1261) target = $region124
        $region123: #{molecular_decoder_forward.1} parent=39 // pred_region
          %s1264 = sand.u32 %s103, 1
          %s1265 = scalar_lea.sflag [#allocation22], %s1264
          %s1266 = sand.u32 %s645, 1
          %s1267 = smul.addr %s1266, 16
          %s1268 = scalar_lea.vmem [#allocation23], %s1267
          %s1270 = ssub.s32 256, 256
          %1271 = vsyncadd %s1265, %s1270
          %s1272 = smul.addr %s111, 4
          %s1273 = smul.addr %s1272, 64
          %s1274 = scalar_lea.hbm %s41, %s1273
          %s1275 = sshll.u32 %s1268, 4
          %s1276 = int_to_ptr.vmem [resolvable:$true] %s1275
          %1281 = dma.hbm_to_vmem [thread:$0]  %s1274, 256, %s1276, %s1265, 64, 64, 4
        $region124: #{molecular_decoder_forward.1} parent=39 // pred_fallthru
          _
        // Predicated region
        $region125: #{molecular_decoder_forward.1} parent=39 // pred_check
          %p1282 = pneg %p681
        $region126: #{molecular_decoder_forward.1} parent=39 // pred_check_branch
          %1284 = sbr.rel (%p1282) target = $region128
        $region127: #{molecular_decoder_forward.1} parent=39 // pred_region
          %s1285 = sand.u32 %s103, 1
          %s1286 = scalar_lea.sflag [#allocation25], %s1285
          %s1287 = sand.u32 %s671, 1
          %s1288 = scalar_lea.vmem [#allocation24], %s1287
          %s1290 = ssub.s32 16, 16
          %1291 = vsyncadd %s1286, %s1290
          %s1292 = smul.addr %s111, 16
          %s1293 = scalar_lea.hbm %s43, %s1292
          %s1295 = sshll.u32 %s1288, 4
          %s1296 = int_to_ptr.vmem [resolvable:$true] %s1295
          %1298 = dma.hbm_to_vmem [thread:$0]  %s1293, 16, %s1296, %s1286
        $region128: #{molecular_decoder_forward.1} parent=39 // pred_fallthru
          _
        // Predicated region
        $region129: #{molecular_decoder_forward.1} parent=39 // pred_check
          %p1299 = pneg %p707
        $region130: #{molecular_decoder_forward.1} parent=39 // pred_check_branch
          %1301 = sbr.rel (%p1299) target = $region132
        $region131: #{molecular_decoder_forward.1} parent=39 // pred_region
          %p1302 = scmp.lt.s32.totalorder %s111, 1
          %s1303 = scalar_select %p1302, %s111, 1
          %s1304 = smul.addr %s1303, 8
          %s1305 = smul.addr %s1304, 4
          %s1306 = scalar_lea.vmem %s45, %s1305
        $region132: #{molecular_decoder_forward.1} parent=39 // pred_fallthru
          _
        // Predicated region
        $region133: #{molecular_decoder_forward.1} parent=39 // pred_check
          %p1307 = pneg %p733
        $region134: #{molecular_decoder_forward.1} parent=39 // pred_check_branch
          %1309 = sbr.rel (%p1307) target = $region136
        $region135: #{molecular_decoder_forward.1} parent=39 // pred_region
          %s1310 = sand.u32 %s103, 1
          %s1311 = scalar_lea.sflag [#allocation25], %s1310
          %s1312 = sand.u32 %s723, 1
          %s1313 = scalar_lea.vmem [#allocation26], %s1312
          %s1315 = ssub.s32 16, 16
          %1316 = vsyncadd %s1311, %s1315
          %s1317 = smul.addr %s111, 16
          %s1318 = scalar_lea.hbm %s47, %s1317
          %s1320 = sshll.u32 %s1313, 4
          %s1321 = int_to_ptr.vmem [resolvable:$true] %s1320
          %1323 = dma.hbm_to_vmem [thread:$0]  %s1318, 16, %s1321, %s1311
        $region136: #{molecular_decoder_forward.1} parent=39 // pred_fallthru
          _
      $region40: #{molecular_decoder_forward.1} parent=5 // pred_fallthru
        _
      %p1324 = scmp.le.s32.totalorder 1, %s103
      %p1325 = scmp.lt.s32.totalorder %s103, 5
      %p1326 = pnand %p1324, %p1325
      %p1327 = pneg %p1326
      // Predicated region
      $region137: #{molecular_decoder_forward.1} parent=5 // pred_check
        _
      $region138: #{molecular_decoder_forward.1} parent=5 // pred_check_branch
        %1329 = sbr.rel (%p1326) target = $region140
      $region139: #{molecular_decoder_forward.1} parent=5 // pred_region
        %s1330 = ssub.s32 %s103, 1
        %s1331 = sand.u32 %s206, 1
        %s1332 = scalar_lea.sflag [#allocation4], %s1331
        %s1333 = sand.u32 %s206, 1
        %s1334 = scalar_lea.vmem [#allocation3], %s1333
        // Predicated region
        $region141: #{molecular_decoder_forward.1} parent=139 // pred_check
          %p1335 = pneg %p219
        $region142: #{molecular_decoder_forward.1} parent=139 // pred_check_branch
          %1337 = sbr.rel (%p1335) target = $region144
        $region143: #{molecular_decoder_forward.1} parent=139 // pred_region
          %1338 = dma.done %s1332, 16
        $region144: #{molecular_decoder_forward.1} parent=139 // pred_fallthru
          _
        %s1339 = sand.u32 %s108, 1
        %s1340 = scalar_lea.sflag [#allocation7], %s1339
        %s1341 = sand.u32 %s232, 1
        %s1342 = scalar_lea.vmem [#allocation6], %s1341
        // Predicated region
        $region145: #{molecular_decoder_forward.1} parent=139 // pred_check
          %p1343 = pneg %p245
        $region146: #{molecular_decoder_forward.1} parent=139 // pred_check_branch
          %1345 = sbr.rel (%p1343) target = $region148
        $region147: #{molecular_decoder_forward.1} parent=139 // pred_region
          %1346 = dma.done %s1340, 16
        $region148: #{molecular_decoder_forward.1} parent=139 // pred_fallthru
          _
        %s1347 = sand.u32 %s108, 1
        %s1348 = scalar_lea.sflag [#allocation7], %s1347
        %s1349 = sand.u32 %s258, 1
        %s1350 = scalar_lea.vmem [#allocation8], %s1349
        // Predicated region
        $region149: #{molecular_decoder_forward.1} parent=139 // pred_check
          %p1351 = pneg %p271
        $region150: #{molecular_decoder_forward.1} parent=139 // pred_check_branch
          %1353 = sbr.rel (%p1351) target = $region152
        $region151: #{molecular_decoder_forward.1} parent=139 // pred_region
          %1354 = dma.done %s1348, 16
        $region152: #{molecular_decoder_forward.1} parent=139 // pred_fallthru
          _
        %s1355 = sand.u32 %s108, 1
        %s1356 = scalar_lea.sflag [#allocation10], %s1355
        %s1357 = sand.u32 %s310, 1
        %s1358 = scalar_lea.vmem [#allocation9], %s1357
        // Predicated region
        $region153: #{molecular_decoder_forward.1} parent=139 // pred_check
          %p1359 = pneg %p323
        $region154: #{molecular_decoder_forward.1} parent=139 // pred_check_branch
          %1361 = sbr.rel (%p1359) target = $region156
        $region155: #{molecular_decoder_forward.1} parent=139 // pred_region
          %1362 = dma.done %s1356, 16
        $region156: #{molecular_decoder_forward.1} parent=139 // pred_fallthru
          _
        %s1363 = sand.u32 %s108, 1
        %s1364 = scalar_lea.sflag [#allocation10], %s1363
        %s1365 = sand.u32 %s362, 1
        %s1366 = scalar_lea.vmem [#allocation11], %s1365
        // Predicated region
        $region157: #{molecular_decoder_forward.1} parent=139 // pred_check
          %p1367 = pneg %p375
        $region158: #{molecular_decoder_forward.1} parent=139 // pred_check_branch
          %1369 = sbr.rel (%p1367) target = $region160
        $region159: #{molecular_decoder_forward.1} parent=139 // pred_region
          %1370 = dma.done %s1364, 16
        $region160: #{molecular_decoder_forward.1} parent=139 // pred_fallthru
          _
        %s1371 = sand.u32 %s108, 1
        %s1372 = scalar_lea.sflag [#allocation13], %s1371
        %s1373 = sand.u32 %s388, 1
        %s1374 = scalar_lea.vmem [#allocation12], %s1373
        // Predicated region
        $region161: #{molecular_decoder_forward.1} parent=139 // pred_check
          %p1375 = pneg %p401
        $region162: #{molecular_decoder_forward.1} parent=139 // pred_check_branch
          %1377 = sbr.rel (%p1375) target = $region164
        $region163: #{molecular_decoder_forward.1} parent=139 // pred_region
          %1378 = dma.done %s1372, 16
        $region164: #{molecular_decoder_forward.1} parent=139 // pred_fallthru
          _
        %s1379 = sand.u32 %s108, 1
        %s1380 = scalar_lea.sflag [#allocation13], %s1379
        %s1381 = sand.u32 %s414, 1
        %s1382 = scalar_lea.vmem [#allocation14], %s1381
        // Predicated region
        $region165: #{molecular_decoder_forward.1} parent=139 // pred_check
          %p1383 = pneg %p427
        $region166: #{molecular_decoder_forward.1} parent=139 // pred_check_branch
          %1385 = sbr.rel (%p1383) target = $region168
        $region167: #{molecular_decoder_forward.1} parent=139 // pred_region
          %1386 = dma.done %s1380, 16
        $region168: #{molecular_decoder_forward.1} parent=139 // pred_fallthru
          _
        %s1387 = sand.u32 %s108, 1
        %s1388 = scalar_lea.sflag [#allocation16], %s1387
        %s1389 = sand.u32 %s466, 1
        %s1390 = scalar_lea.vmem [#allocation15], %s1389
        // Predicated region
        $region169: #{molecular_decoder_forward.1} parent=139 // pred_check
          %p1391 = pneg %p479
        $region170: #{molecular_decoder_forward.1} parent=139 // pred_check_branch
          %1393 = sbr.rel (%p1391) target = $region172
        $region171: #{molecular_decoder_forward.1} parent=139 // pred_region
          %1394 = dma.done %s1388, 16
        $region172: #{molecular_decoder_forward.1} parent=139 // pred_fallthru
          _
        %s1395 = sand.u32 %s108, 1
        %s1396 = scalar_lea.sflag [#allocation16], %s1395
        %s1397 = sand.u32 %s518, 1
        %s1398 = scalar_lea.vmem [#allocation17], %s1397
        // Predicated region
        $region173: #{molecular_decoder_forward.1} parent=139 // pred_check
          %p1399 = pneg %p531
        $region174: #{molecular_decoder_forward.1} parent=139 // pred_check_branch
          %1401 = sbr.rel (%p1399) target = $region176
        $region175: #{molecular_decoder_forward.1} parent=139 // pred_region
          %1402 = dma.done %s1396, 16
        $region176: #{molecular_decoder_forward.1} parent=139 // pred_fallthru
          _
        %s1403 = sand.u32 %s108, 1
        %s1404 = scalar_lea.sflag [#allocation19], %s1403
        %s1405 = sand.u32 %s570, 1
        %s1406 = scalar_lea.vmem [#allocation18], %s1405
        // Predicated region
        $region177: #{molecular_decoder_forward.1} parent=139 // pred_check
          %p1407 = pneg %p583
        $region178: #{molecular_decoder_forward.1} parent=139 // pred_check_branch
          %1409 = sbr.rel (%p1407) target = $region180
        $region179: #{molecular_decoder_forward.1} parent=139 // pred_region
          %1410 = dma.done %s1404, 16
        $region180: #{molecular_decoder_forward.1} parent=139 // pred_fallthru
          _
        %s1411 = sand.u32 %s108, 1
        %s1412 = scalar_lea.sflag [#allocation19], %s1411
        %s1413 = sand.u32 %s596, 1
        %s1414 = scalar_lea.vmem [#allocation20], %s1413
        // Predicated region
        $region181: #{molecular_decoder_forward.1} parent=139 // pred_check
          %p1415 = pneg %p609
        $region182: #{molecular_decoder_forward.1} parent=139 // pred_check_branch
          %1417 = sbr.rel (%p1415) target = $region184
        $region183: #{molecular_decoder_forward.1} parent=139 // pred_region
          %1418 = dma.done %s1412, 16
        $region184: #{molecular_decoder_forward.1} parent=139 // pred_fallthru
          _
        %s1419 = sand.u32 %s108, 1
        %s1420 = scalar_lea.sflag [#allocation22], %s1419
        %s1421 = sand.u32 %s622, 1
        %s1422 = scalar_lea.vmem [#allocation21], %s1421
        // Predicated region
        $region185: #{molecular_decoder_forward.1} parent=139 // pred_check
          %p1423 = pneg %p635
        $region186: #{molecular_decoder_forward.1} parent=139 // pred_check_branch
          %1425 = sbr.rel (%p1423) target = $region188
        $region187: #{molecular_decoder_forward.1} parent=139 // pred_region
          %1426 = dma.done %s1420, 16
        $region188: #{molecular_decoder_forward.1} parent=139 // pred_fallthru
          _
        %s1427 = sand.u32 %s108, 1
        %s1428 = scalar_lea.sflag [#allocation22], %s1427
        %s1429 = sand.u32 %s648, 1
        %s1430 = smul.addr %s1429, 16
        %s1431 = scalar_lea.vmem [#allocation23], %s1430
        // Predicated region
        $region189: #{molecular_decoder_forward.1} parent=139 // pred_check
          %p1432 = pneg %p661
        $region190: #{molecular_decoder_forward.1} parent=139 // pred_check_branch
          %1434 = sbr.rel (%p1432) target = $region192
        $region191: #{molecular_decoder_forward.1} parent=139 // pred_region
          %1435 = dma.done %s1428, 256
        $region192: #{molecular_decoder_forward.1} parent=139 // pred_fallthru
          _
        %s1436 = sand.u32 %s108, 1
        %s1437 = scalar_lea.sflag [#allocation25], %s1436
        %s1438 = sand.u32 %s674, 1
        %s1439 = scalar_lea.vmem [#allocation24], %s1438
        // Predicated region
        $region193: #{molecular_decoder_forward.1} parent=139 // pred_check
          %p1440 = pneg %p687
        $region194: #{molecular_decoder_forward.1} parent=139 // pred_check_branch
          %1442 = sbr.rel (%p1440) target = $region196
        $region195: #{molecular_decoder_forward.1} parent=139 // pred_region
          %1443 = dma.done %s1437, 16
        $region196: #{molecular_decoder_forward.1} parent=139 // pred_fallthru
          _
        %s1444 = sand.u32 %s108, 1
        %s1445 = scalar_lea.sflag [#allocation25], %s1444
        %s1446 = sand.u32 %s726, 1
        %s1447 = scalar_lea.vmem [#allocation26], %s1446
        // Predicated region
        $region197: #{molecular_decoder_forward.1} parent=139 // pred_check
          %p1448 = pneg %p739
        $region198: #{molecular_decoder_forward.1} parent=139 // pred_check_branch
          %1450 = sbr.rel (%p1448) target = $region200
        $region199: #{molecular_decoder_forward.1} parent=139 // pred_region
          %1451 = dma.done %s1445, 16
        $region200: #{molecular_decoder_forward.1} parent=139 // pred_fallthru
          _
        // Predicated region
        $region201: #{molecular_decoder_forward.1} parent=139 // pred_check
          %p1452 = pneg %p760
        $region202: #{molecular_decoder_forward.1} parent=139 // pred_check_branch
          %1454 = sbr.rel (%p1452) target = $region204
        $region203: #{molecular_decoder_forward.1} parent=139 // pred_region
          %1455 = dma.done [#allocation28], 16
        $region204: #{molecular_decoder_forward.1} parent=139 // pred_fallthru
          _
        // Predicated region
        $region205: #{molecular_decoder_forward.1} parent=139 // pred_check
          %p1456 = pneg %p781
        $region206: #{molecular_decoder_forward.1} parent=139 // pred_check_branch
          %1458 = sbr.rel (%p1456) target = $region208
        $region207: #{molecular_decoder_forward.1} parent=139 // pred_region
          %1459 = dma.done [#allocation28], 16
        $region208: #{molecular_decoder_forward.1} parent=139 // pred_fallthru
          _
        // Predicated region
        $region209: #{molecular_decoder_forward.1} parent=139 // pred_check
          %p1460 = pneg %p823
        $region210: #{molecular_decoder_forward.1} parent=139 // pred_check_branch
          %1462 = sbr.rel (%p1460) target = $region212
        $region211: #{molecular_decoder_forward.1} parent=139 // pred_region
          %1463 = dma.done [#allocation31], 16
        $region212: #{molecular_decoder_forward.1} parent=139 // pred_fallthru
          _
        // Predicated region
        $region213: #{molecular_decoder_forward.1} parent=139 // pred_check
          %p1464 = pneg %p844
        $region214: #{molecular_decoder_forward.1} parent=139 // pred_check_branch
          %1466 = sbr.rel (%p1464) target = $region216
        $region215: #{molecular_decoder_forward.1} parent=139 // pred_region
          %1467 = dma.done [#allocation31], 128
        $region216: #{molecular_decoder_forward.1} parent=139 // pred_fallthru
          _
        // Predicated region
        $region217: #{molecular_decoder_forward.1} parent=139 // pred_check
          %p1468 = pneg %p865
        $region218: #{molecular_decoder_forward.1} parent=139 // pred_check_branch
          %1470 = sbr.rel (%p1468) target = $region220
        $region219: #{molecular_decoder_forward.1} parent=139 // pred_region
          %1471 = dma.done [#allocation34], 16
        $region220: #{molecular_decoder_forward.1} parent=139 // pred_fallthru
          _
        %p1472 = scmp.lt.s32.totalorder %s112, 1
        %s1473 = scalar_select %p1472, %s112, 1
        %s1474 = smul.addr %s1473, 8
        %s1475 = scalar_lea.vmem %s1, %s1474
        %p1476 = pneg %p141
        %p1477 = pneg %p138
        %p1478 = scmp.lt.s32.totalorder %s112, 1
        %s1479 = scalar_select %p1478, %s112, 1
        %s1480 = smul.addr %s1479, 4
        %s1481 = scalar_lea.vmem %s3, %s1480
        %p1482 = pneg %p167
        %p1483 = pneg %p164
        %p1484 = scmp.lt.s32.totalorder %s112, 1
        %s1485 = scalar_select %p1484, %s112, 1
        %s1486 = smul.addr %s1485, 8
        %s1487 = scalar_lea.vmem %s5, %s1486
        %p1488 = pneg %p193
        %p1489 = pneg %p190
        %s1490 = sand.u32 %s206, 1
        %s1491 = scalar_lea.sflag [#allocation4], %s1490
        %s1492 = sand.u32 %s206, 1
        %s1493 = scalar_lea.vmem [#allocation3], %s1492
        %p1494 = pneg %p219
        %p1495 = pneg %p216
        %s1496 = sand.u32 %s108, 1
        %s1497 = scalar_lea.sflag [#allocation7], %s1496
        %s1498 = sand.u32 %s232, 1
        %s1499 = scalar_lea.vmem [#allocation6], %s1498
        %p1500 = pneg %p245
        %p1501 = pneg %p242
        %s1502 = sand.u32 %s108, 1
        %s1503 = scalar_lea.sflag [#allocation7], %s1502
        %s1504 = sand.u32 %s258, 1
        %s1505 = scalar_lea.vmem [#allocation8], %s1504
        %p1506 = pneg %p271
        %p1507 = pneg %p268
        %p1508 = scmp.lt.s32.totalorder %s113, 1
        %s1509 = scalar_select %p1508, %s113, 1
        %s1510 = smul.addr %s1509, 4
        %s1511 = smul.addr %s1510, 4
        %s1512 = scalar_lea.vmem %s13, %s1511
        %p1513 = pneg %p297
        %p1514 = pneg %p294
        %s1515 = sand.u32 %s108, 1
        %s1516 = scalar_lea.sflag [#allocation10], %s1515
        %s1517 = sand.u32 %s310, 1
        %s1518 = scalar_lea.vmem [#allocation9], %s1517
        %p1519 = pneg %p323
        %p1520 = pneg %p320
        %p1521 = scmp.lt.s32.totalorder %s113, 1
        %s1522 = scalar_select %p1521, %s113, 1
        %s1523 = smul.addr %s1522, 4
        %s1524 = smul.addr %s1523, 4
        %s1525 = scalar_lea.vmem %s17, %s1524
        %p1526 = pneg %p349
        %p1527 = pneg %p346
        %s1528 = sand.u32 %s108, 1
        %s1529 = scalar_lea.sflag [#allocation10], %s1528
        %s1530 = sand.u32 %s362, 1
        %s1531 = scalar_lea.vmem [#allocation11], %s1530
        %p1532 = pneg %p375
        %p1533 = pneg %p372
        %s1534 = sand.u32 %s108, 1
        %s1535 = scalar_lea.sflag [#allocation13], %s1534
        %s1536 = sand.u32 %s388, 1
        %s1537 = scalar_lea.vmem [#allocation12], %s1536
        %p1538 = pneg %p401
        %p1539 = pneg %p398
        %s1540 = sand.u32 %s108, 1
        %s1541 = scalar_lea.sflag [#allocation13], %s1540
        %s1542 = sand.u32 %s414, 1
        %s1543 = scalar_lea.vmem [#allocation14], %s1542
        %p1544 = pneg %p427
        %p1545 = pneg %p424
        %p1546 = scmp.lt.s32.totalorder %s113, 1
        %s1547 = scalar_select %p1546, %s113, 1
        %s1548 = smul.addr %s1547, 4
        %s1549 = smul.addr %s1548, 4
        %s1550 = scalar_lea.vmem %s25, %s1549
        %p1551 = pneg %p453
        %p1552 = pneg %p450
        %s1553 = sand.u32 %s108, 1
        %s1554 = scalar_lea.sflag [#allocation16], %s1553
        %s1555 = sand.u32 %s466, 1
        %s1556 = scalar_lea.vmem [#allocation15], %s1555
        %p1557 = pneg %p479
        %p1558 = pneg %p476
        %p1559 = scmp.lt.s32.totalorder %s113, 1
        %s1560 = scalar_select %p1559, %s113, 1
        %s1561 = smul.addr %s1560, 4
        %s1562 = smul.addr %s1561, 4
        %s1563 = scalar_lea.vmem %s29, %s1562
        %p1564 = pneg %p505
        %p1565 = pneg %p502
        %s1566 = sand.u32 %s108, 1
        %s1567 = scalar_lea.sflag [#allocation16], %s1566
        %s1568 = sand.u32 %s518, 1
        %s1569 = scalar_lea.vmem [#allocation17], %s1568
        %p1570 = pneg %p531
        %p1571 = pneg %p528
        %p1572 = scmp.lt.s32.totalorder %s113, 1
        %s1573 = scalar_select %p1572, %s113, 1
        %s1574 = smul.addr %s1573, 4
        %s1575 = smul.addr %s1574, 4
        %s1576 = scalar_lea.vmem %s33, %s1575
        %p1577 = pneg %p557
        %p1578 = pneg %p554
        %s1579 = sand.u32 %s108, 1
        %s1580 = scalar_lea.sflag [#allocation19], %s1579
        %s1581 = sand.u32 %s570, 1
        %s1582 = scalar_lea.vmem [#allocation18], %s1581
        %p1583 = pneg %p583
        %p1584 = pneg %p580
        %s1585 = sand.u32 %s108, 1
        %s1586 = scalar_lea.sflag [#allocation19], %s1585
        %s1587 = sand.u32 %s596, 1
        %s1588 = scalar_lea.vmem [#allocation20], %s1587
        %p1589 = pneg %p609
        %p1590 = pneg %p606
        %s1591 = sand.u32 %s108, 1
        %s1592 = scalar_lea.sflag [#allocation22], %s1591
        %s1593 = sand.u32 %s622, 1
        %s1594 = scalar_lea.vmem [#allocation21], %s1593
        %p1595 = pneg %p635
        %p1596 = pneg %p632
        %s1597 = sand.u32 %s108, 1
        %s1598 = scalar_lea.sflag [#allocation22], %s1597
        %s1599 = sand.u32 %s648, 1
        %s1600 = smul.addr %s1599, 16
        %s1601 = scalar_lea.vmem [#allocation23], %s1600
        %p1602 = pneg %p661
        %p1603 = pneg %p658
        %s1604 = sand.u32 %s108, 1
        %s1605 = scalar_lea.sflag [#allocation25], %s1604
        %s1606 = sand.u32 %s674, 1
        %s1607 = scalar_lea.vmem [#allocation24], %s1606
        %p1608 = pneg %p687
        %p1609 = pneg %p684
        %p1610 = scmp.lt.s32.totalorder %s113, 1
        %s1611 = scalar_select %p1610, %s113, 1
        %s1612 = smul.addr %s1611, 8
        %s1613 = smul.addr %s1612, 4
        %s1614 = scalar_lea.vmem %s45, %s1613
        %p1615 = pneg %p713
        %p1616 = pneg %p710
        %s1617 = sand.u32 %s108, 1
        %s1618 = scalar_lea.sflag [#allocation25], %s1617
        %s1619 = sand.u32 %s726, 1
        %s1620 = scalar_lea.vmem [#allocation26], %s1619
        %p1621 = pneg %p739
        %p1622 = pneg %p736
        %p1623 = pneg %p760
        %p1624 = pneg %p757
        %p1625 = pneg %p781
        %p1626 = pneg %p778
        %p1627 = pneg %p802
        %p1628 = pneg %p799
        %p1629 = pneg %p823
        %p1630 = pneg %p820
        %p1631 = pneg %p844
        %p1632 = pneg %p841
        %p1633 = pneg %p865
        %p1634 = pneg %p862
        %p1635 = pneg %p891
        %p1636 = pneg %p888
        %s1637 = sand.u32 %s878, 1
        %s1638 = scalar_lea.sflag [#allocation5], %s1637
        %s1639 = sand.u32 %s878, 1
        %s1640 = smul.addr %s1639, 8
        %s1641 = scalar_lea.vmem [#allocation35], %s1640
        %p1642 = pneg %p917
        %p1643 = pneg %p914
        %s1644 = sand.u32 %s904, 1
        %s1645 = scalar_lea.sflag [#allocation37], %s1644
        %s1646 = sand.u32 %s904, 1
        %s1647 = smul.addr %s1646, 8
        %s1648 = scalar_lea.vmem [#allocation36], %s1647
        %p1649 = scmp.lt.s32.totalorder %s112, 1
        %s1650 = scalar_select %p1649, %s112, 1
        %s1651 = smul.addr %s1650, 8
        %s1652 = scalar_lea.vmem %s1, %s1651
        %p1653 = scmp.lt.s32.totalorder %s112, 1
        %s1654 = scalar_select %p1653, %s112, 1
        %s1655 = smul.addr %s1654, 4
        %s1656 = scalar_lea.vmem %s3, %s1655
        %p1657 = scmp.lt.s32.totalorder %s112, 1
        %s1658 = scalar_select %p1657, %s112, 1
        %s1659 = smul.addr %s1658, 8
        %s1660 = scalar_lea.vmem %s5, %s1659
        %p1661 = scmp.lt.s32.totalorder %s113, 1
        %s1662 = scalar_select %p1661, %s113, 1
        %s1663 = smul.addr %s1662, 4
        %s1664 = smul.addr %s1663, 4
        %s1665 = scalar_lea.vmem %s13, %s1664
        %p1666 = scmp.lt.s32.totalorder %s113, 1
        %s1667 = scalar_select %p1666, %s113, 1
        %s1668 = smul.addr %s1667, 4
        %s1669 = smul.addr %s1668, 4
        %s1670 = scalar_lea.vmem %s17, %s1669
        %p1671 = scmp.lt.s32.totalorder %s113, 1
        %s1672 = scalar_select %p1671, %s113, 1
        %s1673 = smul.addr %s1672, 4
        %s1674 = smul.addr %s1673, 4
        %s1675 = scalar_lea.vmem %s25, %s1674
        %p1676 = scmp.lt.s32.totalorder %s113, 1
        %s1677 = scalar_select %p1676, %s113, 1
        %s1678 = smul.addr %s1677, 4
        %s1679 = smul.addr %s1678, 4
        %s1680 = scalar_lea.vmem %s29, %s1679
        %p1681 = scmp.lt.s32.totalorder %s113, 1
        %s1682 = scalar_select %p1681, %s113, 1
        %s1683 = smul.addr %s1682, 4
        %s1684 = smul.addr %s1683, 4
        %s1685 = scalar_lea.vmem %s33, %s1684
        %p1686 = scmp.lt.s32.totalorder %s113, 1
        %s1687 = scalar_select %p1686, %s113, 1
        %s1688 = smul.addr %s1687, 8
        %s1689 = smul.addr %s1688, 4
        %s1690 = scalar_lea.vmem %s45, %s1689
        %p1692 = scmp.eq.s32.totalorder %s113, 0
        // Predicated region
        $region221: #{molecular_decoder_forward.1} parent=139 // pred_check
          %p1693 = pneg %p1692
        $region222: #{molecular_decoder_forward.1} parent=139 // pred_check_branch
          %1695 = sbr.rel (%p1693) target = $region224
        $region223: #{molecular_decoder_forward.1} parent=139 // pred_region
          %v1696 = vld [vmem:[%s1652] sm:$0xff]
          %vm1697 = vcmask 261120
          %1698 = vst.msk [vmem:[%s1641] sm:$0xff] %vm1697, %v1696
        $region224: #{molecular_decoder_forward.1} parent=139 // pred_fallthru
          _
        %v1699 = vld [vmem:[%s1641] sm:$0xff]
        %v1700 = vld [vmem:[%s1656] sm:$0xf]
        %v1701 = vld [vmem:[%s1660] sm:$0xff]
        %v1702 = vld [vmem:[%s1334] sm:$0x1]
        %v1703 = vld [vmem:[%s1342] sm:$0x1]
        %v1704 = vld [vmem:[%s1350] sm:$0x1]
        %vm1705 = vcmask 261120
        %v1706 = vsel %vm1705, %v1699, 0.0
        %1707 = vadd.xlane.f32.xlu0 %v1706
        %v1708 = vpop.xlane.xlu0 %1707
        %v1709 = vrcp.pop 32.0
        %v1710 = vmul.f32 %v1708, %v1709
        %v1711 = vsub.f32 %v1699, %v1710
        %v1712 = vmul.f32 %v1711, %v1711
        %v1713 = vsel %vm1705, %v1712, 0.0
        %1714 = vadd.xlane.f32.xlu0 %v1713
        %v1715 = vpop.xlane.xlu0 %1714
        %v1716 = vrcp.pop 31.0
        %v1717 = vmul.f32 %v1715, %v1716
        %v1719 = vlaneseq
        %v1720 = vshrl.u32 %v1719, 7
        %v1721 = vsub.s32 0, %v1720
        %v1722 = vrot.slane %v1703, %v1721
        %v1724 = vmul.f32 %v1722, %v1711
        %v1725 = vrsqrt.pop %v1717
        %v1726 = vmul.f32 %v1717, %v1725
        %vm1727 = vcmp.eq.f32.partialorder %v1717, inf
        %v1728 = vsel %vm1727, %v1717, %v1726
        %vm1729 = vcmp.eq.f32.partialorder %v1717, 0.0
        %v1730 = vand.u32 %v1717, 2147483648
        %v1731 = vsel %vm1729, %v1730, %v1728
        %v1732 = vadd.f32 %v1731, 1e-06
        %v1733 = vrcp.pop %v1732
        %v1734 = vmul.f32 %v1724, %v1733
        %v1736 = vlaneseq
        %v1737 = vshrl.u32 %v1736, 7
        %v1738 = vsub.s32 0, %v1737
        %v1739 = vrot.slane %v1704, %v1738
        %v1741 = vadd.f32 %v1734, %v1739
        %v1742 = vpack.c.bf16 %v1741, %v1741
        %v1743 = vld [vmem:[%s1665] sm:$0xf]
        %v1744 = vld [vmem:[%s1665 + $0x4] sm:$0xf]
        %v1745 = vld [vmem:[%s1665 + $0x8] sm:$0xf]
        %v1746 = vld [vmem:[%s1665 + $0xc] sm:$0xf]
        %v1747 = vld [vmem:[%s1358] sm:$0x1]
        %v1749 = vlaneseq
        %v1750 = vshrl.u32 %v1749, 7
        %v1751 = vsub.s32 0, %v1750
        %v1752 = vrot.slane %v1747, %v1751
        %v1758 = vunpack.c.l.b16 %v1743
        %v1759 = vunpack.c.l.b16 %v1744
        %v1760 = vunpack.c.l.b16 %v1745
        %v1761 = vunpack.c.l.b16 %v1746
        %v1762 = vpack.c.b16 %v1759, %v1758
        %v1763 = vpack.c.b16 %v1761, %v1760
        %v1767 = vsel %vm1705, %v1742, 0
        %1769 = vmatprep.subr.bf16.mxu0 0
        %1770 = vmatpush1.bf16.msra.mxu0 %v1762
        %1771 = vmatprep.subr.bf16.mxu0 0
        %1772 = vmatpush1.bf16.msra.mxu0 %v1763
        %1773 = vmatprep.subr.bf16.mxu0 0
        %1774 = vmatpush1.bf16.msra.mxu0 0
        %1775 = vmatprep.subr.bf16.mxu0 0
        %1776 = vmatpush1.bf16.msra.mxu0 0
        %1777 = vmatprep.subr.bf16.mxu0 0
        %1778 = vmatpush1.bf16.msra.mxu0 0
        %1779 = vmatprep.subr.bf16.mxu0 0
        %1780 = vmatpush1.bf16.msra.mxu0 0
        %1781 = vmatprep.subr.bf16.mxu0 0
        %1782 = vmatpush1.bf16.msra.mxu0 0
        %1783 = vmatprep.subr.bf16.mxu0 0
        %1784 = vmatpush1.bf16.msra.mxu0 0
        %1785 = vmatprep.subr.bf16.mxu0 0
        %1786 = vmatpush1.bf16.msra.mxu0 0
        %1787 = vmatprep.subr.bf16.mxu0 0
        %1788 = vmatpush1.bf16.msra.mxu0 0
        %1789 = vmatprep.subr.bf16.mxu0 0
        %1790 = vmatpush1.bf16.msra.mxu0 0
        %1791 = vmatprep.subr.bf16.mxu0 0
        %1792 = vmatpush1.bf16.msra.mxu0 0
        %1793 = vmatprep.subr.bf16.mxu0 0
        %1794 = vmatpush1.bf16.msra.mxu0 0
        %1795 = vmatprep.subr.bf16.mxu0 0
        %1796 = vmatpush1.bf16.msra.mxu0 0
        %1797 = vmatprep.subr.bf16.mxu0 0
        %1798 = vmatpush1.bf16.msra.mxu0 0
        %1799 = vmatprep.subr.bf16.mxu0 0
        %1800 = vmatpush1.bf16.msra.mxu0 0
        %1801 = vmatprep.mubr.bf16.mxu0 0
        %1802 = vmatmul.mubr.bf16.gmra.mrb[0].mxu0 %v1767
        %v1803 = vpop.f32.mrb[0].mxu0
        %v1804 = vadd.f32 %v1752, %v1803
        %v1805 = vpop.f32.mrb[0].mxu0
        %v1806 = vpop.f32.mrb[0].mxu0
        %v1807 = vpop.f32.mrb[0].mxu0
        %1808 = vdwg.mxu0
        %1810 = vrot.lane.b32.xlu0 %v1804, 120
        %v1811 = vpop.permute.xlu0 %1810
        %1813 = vrot.lane.b32.xlu0 %v1804, 112
        %v1814 = vpop.permute.xlu0 %1813
        %1816 = vrot.lane.b32.xlu0 %v1804, 104
        %v1817 = vpop.permute.xlu0 %1816
        %v1819 = vpack.c.bf16 %v1804, %v1804
        %v1820 = vpack.c.bf16 %v1811, %v1811
        %v1821 = vpack.c.bf16 %v1814, %v1814
        %v1822 = vpack.c.bf16 %v1817, %v1817
        %1824 = vrot.lane.b32.xlu0 %v1819, 96
        %v1825 = vpop.permute.xlu0 %1824
        %vm1826 = vcmask 64512
        %v1828 = vsel %vm1826, %v1819, 0
        %v1831 = vsel %vm1826, %v1825, 0
        %1833 = vmatprep.subr.bf16.mxu0 0
        %1834 = vmatpush1.bf16.xpose.msra.mxu0 %v1831
        %1835 = vmatprep.subr.bf16.mxu0 0
        %1836 = vmatpush1.bf16.xpose.msra.mxu0 0
        %1837 = vmatprep.subr.bf16.mxu0 0
        %1838 = vmatpush1.bf16.xpose.msra.mxu0 0
        %1839 = vmatprep.subr.bf16.mxu0 0
        %1840 = vmatpush1.bf16.xpose.msra.mxu0 0
        %1841 = vmatprep.subr.bf16.mxu0 0
        %1842 = vmatpush1.bf16.xpose.msra.mxu0 0
        %1843 = vmatprep.subr.bf16.mxu0 0
        %1844 = vmatpush1.bf16.xpose.msra.mxu0 0
        %1845 = vmatprep.subr.bf16.mxu0 0
        %1846 = vmatpush1.bf16.xpose.msra.mxu0 0
        %1847 = vmatprep.subr.bf16.mxu0 0
        %1848 = vmatpush1.bf16.xpose.msra.mxu0 0
        %1849 = vmatprep.subr.bf16.mxu0 0
        %1850 = vmatpush1.bf16.xpose.msra.mxu0 0
        %1851 = vmatprep.subr.bf16.mxu0 0
        %1852 = vmatpush1.bf16.xpose.msra.mxu0 0
        %1853 = vmatprep.subr.bf16.mxu0 0
        %1854 = vmatpush1.bf16.xpose.msra.mxu0 0
        %1855 = vmatprep.subr.bf16.mxu0 0
        %1856 = vmatpush1.bf16.xpose.msra.mxu0 0
        %1857 = vmatprep.subr.bf16.mxu0 0
        %1858 = vmatpush1.bf16.xpose.msra.mxu0 0
        %1859 = vmatprep.subr.bf16.mxu0 0
        %1860 = vmatpush1.bf16.xpose.msra.mxu0 0
        %1861 = vmatprep.subr.bf16.mxu0 0
        %1862 = vmatpush1.bf16.xpose.msra.mxu0 0
        %1863 = vmatprep.subr.bf16.mxu0 0
        %1864 = vmatpush1.bf16.xpose.msra.mxu0 0
        %1865 = vmatprep.mubr.bf16.mxu0 0
        %1866 = vmatmul.mubr.bf16.gmra.mrb[0].mxu0 %v1828
        %v1867 = vpop.f32.mrb[0].mxu0
        %v1868 = vadd.f32 0.0, %v1867
        %v1869 = vpop.f32.mrb[0].mxu0
        %v1870 = vpop.f32.mrb[0].mxu0
        %v1871 = vpop.f32.mrb[0].mxu0
        %1872 = vdwg.mxu0
        %1874 = vrot.lane.b32.xlu0 %v1820, 96
        %v1875 = vpop.permute.xlu0 %1874
        %v1877 = vsel %vm1826, %v1820, 0
        %v1880 = vsel %vm1826, %v1875, 0
        %1882 = vmatprep.subr.bf16.mxu0 0
        %1883 = vmatpush1.bf16.xpose.msra.mxu0 %v1880
        %1884 = vmatprep.subr.bf16.mxu0 0
        %1885 = vmatpush1.bf16.xpose.msra.mxu0 0
        %1886 = vmatprep.subr.bf16.mxu0 0
        %1887 = vmatpush1.bf16.xpose.msra.mxu0 0
        %1888 = vmatprep.subr.bf16.mxu0 0
        %1889 = vmatpush1.bf16.xpose.msra.mxu0 0
        %1890 = vmatprep.subr.bf16.mxu0 0
        %1891 = vmatpush1.bf16.xpose.msra.mxu0 0
        %1892 = vmatprep.subr.bf16.mxu0 0
        %1893 = vmatpush1.bf16.xpose.msra.mxu0 0
        %1894 = vmatprep.subr.bf16.mxu0 0
        %1895 = vmatpush1.bf16.xpose.msra.mxu0 0
        %1896 = vmatprep.subr.bf16.mxu0 0
        %1897 = vmatpush1.bf16.xpose.msra.mxu0 0
        %1898 = vmatprep.subr.bf16.mxu0 0
        %1899 = vmatpush1.bf16.xpose.msra.mxu0 0
        %1900 = vmatprep.subr.bf16.mxu0 0
        %1901 = vmatpush1.bf16.xpose.msra.mxu0 0
        %1902 = vmatprep.subr.bf16.mxu0 0
        %1903 = vmatpush1.bf16.xpose.msra.mxu0 0
        %1904 = vmatprep.subr.bf16.mxu0 0
        %1905 = vmatpush1.bf16.xpose.msra.mxu0 0
        %1906 = vmatprep.subr.bf16.mxu0 0
        %1907 = vmatpush1.bf16.xpose.msra.mxu0 0
        %1908 = vmatprep.subr.bf16.mxu0 0
        %1909 = vmatpush1.bf16.xpose.msra.mxu0 0
        %1910 = vmatprep.subr.bf16.mxu0 0
        %1911 = vmatpush1.bf16.xpose.msra.mxu0 0
        %1912 = vmatprep.subr.bf16.mxu0 0
        %1913 = vmatpush1.bf16.xpose.msra.mxu0 0
        %1914 = vmatprep.mubr.bf16.mxu0 0
        %1915 = vmatmul.mubr.bf16.gmra.mrb[0].mxu0 %v1877
        %v1916 = vpop.f32.mrb[0].mxu0
        %v1917 = vadd.f32 0.0, %v1916
        %v1918 = vpop.f32.mrb[0].mxu0
        %v1919 = vpop.f32.mrb[0].mxu0
        %v1920 = vpop.f32.mrb[0].mxu0
        %1921 = vdwg.mxu0
        %1923 = vrot.lane.b32.xlu0 %v1821, 96
        %v1924 = vpop.permute.xlu0 %1923
        %v1926 = vsel %vm1826, %v1821, 0
        %v1929 = vsel %vm1826, %v1924, 0
        %1931 = vmatprep.subr.bf16.mxu0 0
        %1932 = vmatpush1.bf16.xpose.msra.mxu0 %v1929
        %1933 = vmatprep.subr.bf16.mxu0 0
        %1934 = vmatpush1.bf16.xpose.msra.mxu0 0
        %1935 = vmatprep.subr.bf16.mxu0 0
        %1936 = vmatpush1.bf16.xpose.msra.mxu0 0
        %1937 = vmatprep.subr.bf16.mxu0 0
        %1938 = vmatpush1.bf16.xpose.msra.mxu0 0
        %1939 = vmatprep.subr.bf16.mxu0 0
        %1940 = vmatpush1.bf16.xpose.msra.mxu0 0
        %1941 = vmatprep.subr.bf16.mxu0 0
        %1942 = vmatpush1.bf16.xpose.msra.mxu0 0
        %1943 = vmatprep.subr.bf16.mxu0 0
        %1944 = vmatpush1.bf16.xpose.msra.mxu0 0
        %1945 = vmatprep.subr.bf16.mxu0 0
        %1946 = vmatpush1.bf16.xpose.msra.mxu0 0
        %1947 = vmatprep.subr.bf16.mxu0 0
        %1948 = vmatpush1.bf16.xpose.msra.mxu0 0
        %1949 = vmatprep.subr.bf16.mxu0 0
        %1950 = vmatpush1.bf16.xpose.msra.mxu0 0
        %1951 = vmatprep.subr.bf16.mxu0 0
        %1952 = vmatpush1.bf16.xpose.msra.mxu0 0
        %1953 = vmatprep.subr.bf16.mxu0 0
        %1954 = vmatpush1.bf16.xpose.msra.mxu0 0
        %1955 = vmatprep.subr.bf16.mxu0 0
        %1956 = vmatpush1.bf16.xpose.msra.mxu0 0
        %1957 = vmatprep.subr.bf16.mxu0 0
        %1958 = vmatpush1.bf16.xpose.msra.mxu0 0
        %1959 = vmatprep.subr.bf16.mxu0 0
        %1960 = vmatpush1.bf16.xpose.msra.mxu0 0
        %1961 = vmatprep.subr.bf16.mxu0 0
        %1962 = vmatpush1.bf16.xpose.msra.mxu0 0
        %1963 = vmatprep.mubr.bf16.mxu0 0
        %1964 = vmatmul.mubr.bf16.gmra.mrb[0].mxu0 %v1926
        %v1965 = vpop.f32.mrb[0].mxu0
        %v1966 = vadd.f32 0.0, %v1965
        %v1967 = vpop.f32.mrb[0].mxu0
        %v1968 = vpop.f32.mrb[0].mxu0
        %v1969 = vpop.f32.mrb[0].mxu0
        %1970 = vdwg.mxu0
        %1972 = vrot.lane.b32.xlu0 %v1822, 96
        %v1973 = vpop.permute.xlu0 %1972
        %v1975 = vsel %vm1826, %v1822, 0
        %v1978 = vsel %vm1826, %v1973, 0
        %1980 = vmatprep.subr.bf16.mxu0 0
        %1981 = vmatpush1.bf16.xpose.msra.mxu0 %v1978
        %1982 = vmatprep.subr.bf16.mxu0 0
        %1983 = vmatpush1.bf16.xpose.msra.mxu0 0
        %1984 = vmatprep.subr.bf16.mxu0 0
        %1985 = vmatpush1.bf16.xpose.msra.mxu0 0
        %1986 = vmatprep.subr.bf16.mxu0 0
        %1987 = vmatpush1.bf16.xpose.msra.mxu0 0
        %1988 = vmatprep.subr.bf16.mxu0 0
        %1989 = vmatpush1.bf16.xpose.msra.mxu0 0
        %1990 = vmatprep.subr.bf16.mxu0 0
        %1991 = vmatpush1.bf16.xpose.msra.mxu0 0
        %1992 = vmatprep.subr.bf16.mxu0 0
        %1993 = vmatpush1.bf16.xpose.msra.mxu0 0
        %1994 = vmatprep.subr.bf16.mxu0 0
        %1995 = vmatpush1.bf16.xpose.msra.mxu0 0
        %1996 = vmatprep.subr.bf16.mxu0 0
        %1997 = vmatpush1.bf16.xpose.msra.mxu0 0
        %1998 = vmatprep.subr.bf16.mxu0 0
        %1999 = vmatpush1.bf16.xpose.msra.mxu0 0
        %2000 = vmatprep.subr.bf16.mxu0 0
        %2001 = vmatpush1.bf16.xpose.msra.mxu0 0
        %2002 = vmatprep.subr.bf16.mxu0 0
        %2003 = vmatpush1.bf16.xpose.msra.mxu0 0
        %2004 = vmatprep.subr.bf16.mxu0 0
        %2005 = vmatpush1.bf16.xpose.msra.mxu0 0
        %2006 = vmatprep.subr.bf16.mxu0 0
        %2007 = vmatpush1.bf16.xpose.msra.mxu0 0
        %2008 = vmatprep.subr.bf16.mxu0 0
        %2009 = vmatpush1.bf16.xpose.msra.mxu0 0
        %2010 = vmatprep.subr.bf16.mxu0 0
        %2011 = vmatpush1.bf16.xpose.msra.mxu0 0
        %2012 = vmatprep.mubr.bf16.mxu0 0
        %2013 = vmatmul.mubr.bf16.gmra.mrb[0].mxu0 %v1975
        %v2014 = vpop.f32.mrb[0].mxu0
        %v2015 = vadd.f32 0.0, %v2014
        %v2016 = vpop.f32.mrb[0].mxu0
        %v2017 = vpop.f32.mrb[0].mxu0
        %v2018 = vpop.f32.mrb[0].mxu0
        %2019 = vdwg.mxu0
        %v2020 = vmul.f32 %v1868, 0.35355338
        %v2021 = vmul.f32 %v1917, 0.35355338
        %v2022 = vmul.f32 %v1966, 0.35355338
        %v2023 = vmul.f32 %v2015, 0.35355338
        %vm2024 = vcmp.ne.s32.totalorder %v1701, 0
        %v2025 = vsel %vm2024, 1, 0
        %vm2026 = vcmp.eq.s32.totalorder %v2025, 1
        %v2027 = vsel %vm2026, %v2020, -1e+09
        %v2028 = vsel %vm2026, %v2021, -1e+09
        %v2029 = vsel %vm2026, %v2022, -1e+09
        %v2030 = vsel %vm2026, %v2023, -1e+09
        %v2031 = vsel %vm1826, %v2027, -inf
        %2032 = vmax.xlane.f32.xlu0 %v2031
        %v2033 = vpop.xlane.xlu0 %2032
        %v2034 = vsel %vm1826, %v2028, -inf
        %2035 = vmax.xlane.f32.xlu0 %v2034
        %v2036 = vpop.xlane.xlu0 %2035
        %v2037 = vsel %vm1826, %v2029, -inf
        %2038 = vmax.xlane.f32.xlu0 %v2037
        %v2039 = vpop.xlane.xlu0 %2038
        %v2040 = vsel %vm1826, %v2030, -inf
        %2041 = vmax.xlane.f32.xlu0 %v2040
        %v2042 = vpop.xlane.xlu0 %2041
        %v2043 = vsub.f32 %v2027, %v2033
        %v2044 = vsub.f32 %v2028, %v2036
        %v2045 = vsub.f32 %v2029, %v2039
        %v2046 = vsub.f32 %v2030, %v2042
        %v2047 = vmul.f32 %v2043, 1.442695
        %v2048 = vpow.pop %v2047
        %v2049 = vmul.f32 %v2044, 1.442695
        %v2050 = vpow.pop %v2049
        %v2051 = vmul.f32 %v2045, 1.442695
        %v2052 = vpow.pop %v2051
        %v2053 = vmul.f32 %v2046, 1.442695
        %v2054 = vpow.pop %v2053
        %v2055 = vsel %vm1826, %v2048, 0.0
        %2056 = vadd.xlane.f32.xlu0 %v2055
        %v2057 = vpop.xlane.xlu0 %2056
        %v2058 = vsel %vm1826, %v2050, 0.0
        %2059 = vadd.xlane.f32.xlu0 %v2058
        %v2060 = vpop.xlane.xlu0 %2059
        %v2061 = vsel %vm1826, %v2052, 0.0
        %2062 = vadd.xlane.f32.xlu0 %v2061
        %v2063 = vpop.xlane.xlu0 %2062
        %v2064 = vsel %vm1826, %v2054, 0.0
        %2065 = vadd.xlane.f32.xlu0 %v2064
        %v2066 = vpop.xlane.xlu0 %2065
        %v2067 = vrcp.pop %v2057
        %v2068 = vrcp.pop %v2060
        %v2069 = vrcp.pop %v2063
        %v2070 = vrcp.pop %v2066
        %v2071 = vmul.f32 %v2048, %v2067
        %v2072 = vmul.f32 %v2050, %v2068
        %v2073 = vmul.f32 %v2052, %v2069
        %v2074 = vmul.f32 %v2054, %v2070
        %v2075 = vpack.c.bf16 %v2071, %v2071
        %v2076 = vpack.c.bf16 %v2072, %v2072
        %v2077 = vpack.c.bf16 %v2073, %v2073
        %v2078 = vpack.c.bf16 %v2074, %v2074
        %2079 = vrot.lane.b32.xlu0 %v1819, 64
        %v2080 = vpop.permute.xlu0 %2079
        %v2082 = vsel %vm1826, %v2075, 0
        %vm2084 = vcmask 1043456
        %v2086 = vsel %vm2084, %v2080, 0
        %2088 = vmatprep.subr.bf16.mxu0 0
        %2089 = vmatpush1.bf16.msra.mxu0 %v2086
        %2090 = vmatprep.subr.bf16.mxu0 0
        %2091 = vmatpush1.bf16.msra.mxu0 0
        %2092 = vmatprep.subr.bf16.mxu0 0
        %2093 = vmatpush1.bf16.msra.mxu0 0
        %2094 = vmatprep.subr.bf16.mxu0 0
        %2095 = vmatpush1.bf16.msra.mxu0 0
        %2096 = vmatprep.subr.bf16.mxu0 0
        %2097 = vmatpush1.bf16.msra.mxu0 0
        %2098 = vmatprep.subr.bf16.mxu0 0
        %2099 = vmatpush1.bf16.msra.mxu0 0
        %2100 = vmatprep.subr.bf16.mxu0 0
        %2101 = vmatpush1.bf16.msra.mxu0 0
        %2102 = vmatprep.subr.bf16.mxu0 0
        %2103 = vmatpush1.bf16.msra.mxu0 0
        %2104 = vmatprep.subr.bf16.mxu0 0
        %2105 = vmatpush1.bf16.msra.mxu0 0
        %2106 = vmatprep.subr.bf16.mxu0 0
        %2107 = vmatpush1.bf16.msra.mxu0 0
        %2108 = vmatprep.subr.bf16.mxu0 0
        %2109 = vmatpush1.bf16.msra.mxu0 0
        %2110 = vmatprep.subr.bf16.mxu0 0
        %2111 = vmatpush1.bf16.msra.mxu0 0
        %2112 = vmatprep.subr.bf16.mxu0 0
        %2113 = vmatpush1.bf16.msra.mxu0 0
        %2114 = vmatprep.subr.bf16.mxu0 0
        %2115 = vmatpush1.bf16.msra.mxu0 0
        %2116 = vmatprep.subr.bf16.mxu0 0
        %2117 = vmatpush1.bf16.msra.mxu0 0
        %2118 = vmatprep.subr.bf16.mxu0 0
        %2119 = vmatpush1.bf16.msra.mxu0 0
        %2120 = vmatprep.mubr.bf16.mxu0 0
        %2121 = vmatmul.mubr.bf16.gmra.mrb[0].mxu0 %v2082
        %v2122 = vpop.f32.mrb[0].mxu0
        %v2123 = vadd.f32 0.0, %v2122
        %v2124 = vpop.f32.mrb[0].mxu0
        %v2125 = vpop.f32.mrb[0].mxu0
        %v2126 = vpop.f32.mrb[0].mxu0
        %2127 = vdwg.mxu0
        %2128 = vrot.lane.b32.xlu0 %v1820, 64
        %v2129 = vpop.permute.xlu0 %2128
        %v2131 = vsel %vm1826, %v2076, 0
        %v2134 = vsel %vm2084, %v2129, 0
        %2136 = vmatprep.subr.bf16.mxu0 0
        %2137 = vmatpush1.bf16.msra.mxu0 %v2134
        %2138 = vmatprep.subr.bf16.mxu0 0
        %2139 = vmatpush1.bf16.msra.mxu0 0
        %2140 = vmatprep.subr.bf16.mxu0 0
        %2141 = vmatpush1.bf16.msra.mxu0 0
        %2142 = vmatprep.subr.bf16.mxu0 0
        %2143 = vmatpush1.bf16.msra.mxu0 0
        %2144 = vmatprep.subr.bf16.mxu0 0
        %2145 = vmatpush1.bf16.msra.mxu0 0
        %2146 = vmatprep.subr.bf16.mxu0 0
        %2147 = vmatpush1.bf16.msra.mxu0 0
        %2148 = vmatprep.subr.bf16.mxu0 0
        %2149 = vmatpush1.bf16.msra.mxu0 0
        %2150 = vmatprep.subr.bf16.mxu0 0
        %2151 = vmatpush1.bf16.msra.mxu0 0
        %2152 = vmatprep.subr.bf16.mxu0 0
        %2153 = vmatpush1.bf16.msra.mxu0 0
        %2154 = vmatprep.subr.bf16.mxu0 0
        %2155 = vmatpush1.bf16.msra.mxu0 0
        %2156 = vmatprep.subr.bf16.mxu0 0
        %2157 = vmatpush1.bf16.msra.mxu0 0
        %2158 = vmatprep.subr.bf16.mxu0 0
        %2159 = vmatpush1.bf16.msra.mxu0 0
        %2160 = vmatprep.subr.bf16.mxu0 0
        %2161 = vmatpush1.bf16.msra.mxu0 0
        %2162 = vmatprep.subr.bf16.mxu0 0
        %2163 = vmatpush1.bf16.msra.mxu0 0
        %2164 = vmatprep.subr.bf16.mxu0 0
        %2165 = vmatpush1.bf16.msra.mxu0 0
        %2166 = vmatprep.subr.bf16.mxu0 0
        %2167 = vmatpush1.bf16.msra.mxu0 0
        %2168 = vmatprep.mubr.bf16.mxu0 0
        %2169 = vmatmul.mubr.bf16.gmra.mrb[0].mxu0 %v2131
        %v2170 = vpop.f32.mrb[0].mxu0
        %v2171 = vadd.f32 0.0, %v2170
        %v2172 = vpop.f32.mrb[0].mxu0
        %v2173 = vpop.f32.mrb[0].mxu0
        %v2174 = vpop.f32.mrb[0].mxu0
        %2175 = vdwg.mxu0
        %2176 = vrot.lane.b32.xlu0 %v1821, 64
        %v2177 = vpop.permute.xlu0 %2176
        %v2179 = vsel %vm1826, %v2077, 0
        %v2182 = vsel %vm2084, %v2177, 0
        %2184 = vmatprep.subr.bf16.mxu0 0
        %2185 = vmatpush1.bf16.msra.mxu0 %v2182
        %2186 = vmatprep.subr.bf16.mxu0 0
        %2187 = vmatpush1.bf16.msra.mxu0 0
        %2188 = vmatprep.subr.bf16.mxu0 0
        %2189 = vmatpush1.bf16.msra.mxu0 0
        %2190 = vmatprep.subr.bf16.mxu0 0
        %2191 = vmatpush1.bf16.msra.mxu0 0
        %2192 = vmatprep.subr.bf16.mxu0 0
        %2193 = vmatpush1.bf16.msra.mxu0 0
        %2194 = vmatprep.subr.bf16.mxu0 0
        %2195 = vmatpush1.bf16.msra.mxu0 0
        %2196 = vmatprep.subr.bf16.mxu0 0
        %2197 = vmatpush1.bf16.msra.mxu0 0
        %2198 = vmatprep.subr.bf16.mxu0 0
        %2199 = vmatpush1.bf16.msra.mxu0 0
        %2200 = vmatprep.subr.bf16.mxu0 0
        %2201 = vmatpush1.bf16.msra.mxu0 0
        %2202 = vmatprep.subr.bf16.mxu0 0
        %2203 = vmatpush1.bf16.msra.mxu0 0
        %2204 = vmatprep.subr.bf16.mxu0 0
        %2205 = vmatpush1.bf16.msra.mxu0 0
        %2206 = vmatprep.subr.bf16.mxu0 0
        %2207 = vmatpush1.bf16.msra.mxu0 0
        %2208 = vmatprep.subr.bf16.mxu0 0
        %2209 = vmatpush1.bf16.msra.mxu0 0
        %2210 = vmatprep.subr.bf16.mxu0 0
        %2211 = vmatpush1.bf16.msra.mxu0 0
        %2212 = vmatprep.subr.bf16.mxu0 0
        %2213 = vmatpush1.bf16.msra.mxu0 0
        %2214 = vmatprep.subr.bf16.mxu0 0
        %2215 = vmatpush1.bf16.msra.mxu0 0
        %2216 = vmatprep.mubr.bf16.mxu0 0
        %2217 = vmatmul.mubr.bf16.gmra.mrb[0].mxu0 %v2179
        %v2218 = vpop.f32.mrb[0].mxu0
        %v2219 = vadd.f32 0.0, %v2218
        %v2220 = vpop.f32.mrb[0].mxu0
        %v2221 = vpop.f32.mrb[0].mxu0
        %v2222 = vpop.f32.mrb[0].mxu0
        %2223 = vdwg.mxu0
        %2224 = vrot.lane.b32.xlu0 %v1822, 64
        %v2225 = vpop.permute.xlu0 %2224
        %v2227 = vsel %vm1826, %v2078, 0
        %v2230 = vsel %vm2084, %v2225, 0
        %2232 = vmatprep.subr.bf16.mxu0 0
        %2233 = vmatpush1.bf16.msra.mxu0 %v2230
        %2234 = vmatprep.subr.bf16.mxu0 0
        %2235 = vmatpush1.bf16.msra.mxu0 0
        %2236 = vmatprep.subr.bf16.mxu0 0
        %2237 = vmatpush1.bf16.msra.mxu0 0
        %2238 = vmatprep.subr.bf16.mxu0 0
        %2239 = vmatpush1.bf16.msra.mxu0 0
        %2240 = vmatprep.subr.bf16.mxu0 0
        %2241 = vmatpush1.bf16.msra.mxu0 0
        %2242 = vmatprep.subr.bf16.mxu0 0
        %2243 = vmatpush1.bf16.msra.mxu0 0
        %2244 = vmatprep.subr.bf16.mxu0 0
        %2245 = vmatpush1.bf16.msra.mxu0 0
        %2246 = vmatprep.subr.bf16.mxu0 0
        %2247 = vmatpush1.bf16.msra.mxu0 0
        %2248 = vmatprep.subr.bf16.mxu0 0
        %2249 = vmatpush1.bf16.msra.mxu0 0
        %2250 = vmatprep.subr.bf16.mxu0 0
        %2251 = vmatpush1.bf16.msra.mxu0 0
        %2252 = vmatprep.subr.bf16.mxu0 0
        %2253 = vmatpush1.bf16.msra.mxu0 0
        %2254 = vmatprep.subr.bf16.mxu0 0
        %2255 = vmatpush1.bf16.msra.mxu0 0
        %2256 = vmatprep.subr.bf16.mxu0 0
        %2257 = vmatpush1.bf16.msra.mxu0 0
        %2258 = vmatprep.subr.bf16.mxu0 0
        %2259 = vmatpush1.bf16.msra.mxu0 0
        %2260 = vmatprep.subr.bf16.mxu0 0
        %2261 = vmatpush1.bf16.msra.mxu0 0
        %2262 = vmatprep.subr.bf16.mxu0 0
        %2263 = vmatpush1.bf16.msra.mxu0 0
        %2264 = vmatprep.mubr.bf16.mxu0 0
        %2265 = vmatmul.mubr.bf16.gmra.mrb[0].mxu0 %v2227
        %v2266 = vpop.f32.mrb[0].mxu0
        %v2267 = vadd.f32 0.0, %v2266
        %v2268 = vpop.f32.mrb[0].mxu0
        %v2269 = vpop.f32.mrb[0].mxu0
        %v2270 = vpop.f32.mrb[0].mxu0
        %2271 = vdwg.mxu0
        %v2272 = vld [vmem:[%s1670] sm:$0xf]
        %v2273 = vld [vmem:[%s1670 + $0x4] sm:$0xf]
        %v2274 = vld [vmem:[%s1670 + $0x8] sm:$0xf]
        %v2275 = vld [vmem:[%s1670 + $0xc] sm:$0xf]
        %v2276 = vld [vmem:[%s1366] sm:$0x1]
        %2277 = vst.msk [vmem:[#allocation2] sm:$0xff] %vm1826, %v2123
        %2279 = vrot.lane.b32.xlu0 %v2171, 8
        %v2280 = vpop.permute.xlu0 %2279
        %vm2282 = vcmask 130112
        %2283 = vst.msk [vmem:[#allocation2] sm:$0xff] %vm2282, %v2280
        %2285 = vrot.lane.b32.xlu0 %v2219, 16
        %v2286 = vpop.permute.xlu0 %2285
        %vm2288 = vcmask 195712
        %2289 = vst.msk [vmem:[#allocation2] sm:$0xff] %vm2288, %v2286
        %2291 = vrot.lane.b32.xlu0 %v2267, 24
        %v2292 = vpop.permute.xlu0 %2291
        %vm2294 = vcmask 261312
        %2295 = vst.msk [vmem:[#allocation2] sm:$0xff] %vm2294, %v2292
        %v2296 = vld [vmem:[#allocation2] sm:$0xff]
        %v2297 = vpack.c.bf16 %v2296, %v2296
        %v2299 = vlaneseq
        %v2300 = vshrl.u32 %v2299, 7
        %v2301 = vsub.s32 0, %v2300
        %v2302 = vrot.slane %v2276, %v2301
        %v2308 = vunpack.c.l.b16 %v2272
        %v2309 = vunpack.c.l.b16 %v2273
        %v2310 = vunpack.c.l.b16 %v2274
        %v2311 = vunpack.c.l.b16 %v2275
        %v2312 = vpack.c.b16 %v2309, %v2308
        %v2313 = vpack.c.b16 %v2311, %v2310
        %v2317 = vsel %vm1705, %v2297, 0
        %2319 = vmatprep.subr.bf16.mxu0 0
        %2320 = vmatpush1.bf16.msra.mxu0 %v2312
        %2321 = vmatprep.subr.bf16.mxu0 0
        %2322 = vmatpush1.bf16.msra.mxu0 %v2313
        %2323 = vmatprep.subr.bf16.mxu0 0
        %2324 = vmatpush1.bf16.msra.mxu0 0
        %2325 = vmatprep.subr.bf16.mxu0 0
        %2326 = vmatpush1.bf16.msra.mxu0 0
        %2327 = vmatprep.subr.bf16.mxu0 0
        %2328 = vmatpush1.bf16.msra.mxu0 0
        %2329 = vmatprep.subr.bf16.mxu0 0
        %2330 = vmatpush1.bf16.msra.mxu0 0
        %2331 = vmatprep.subr.bf16.mxu0 0
        %2332 = vmatpush1.bf16.msra.mxu0 0
        %2333 = vmatprep.subr.bf16.mxu0 0
        %2334 = vmatpush1.bf16.msra.mxu0 0
        %2335 = vmatprep.subr.bf16.mxu0 0
        %2336 = vmatpush1.bf16.msra.mxu0 0
        %2337 = vmatprep.subr.bf16.mxu0 0
        %2338 = vmatpush1.bf16.msra.mxu0 0
        %2339 = vmatprep.subr.bf16.mxu0 0
        %2340 = vmatpush1.bf16.msra.mxu0 0
        %2341 = vmatprep.subr.bf16.mxu0 0
        %2342 = vmatpush1.bf16.msra.mxu0 0
        %2343 = vmatprep.subr.bf16.mxu0 0
        %2344 = vmatpush1.bf16.msra.mxu0 0
        %2345 = vmatprep.subr.bf16.mxu0 0
        %2346 = vmatpush1.bf16.msra.mxu0 0
        %2347 = vmatprep.subr.bf16.mxu0 0
        %2348 = vmatpush1.bf16.msra.mxu0 0
        %2349 = vmatprep.subr.bf16.mxu0 0
        %2350 = vmatpush1.bf16.msra.mxu0 0
        %2351 = vmatprep.mubr.bf16.mxu0 0
        %2352 = vmatmul.mubr.bf16.gmra.mrb[0].mxu0 %v2317
        %v2353 = vpop.f32.mrb[0].mxu0
        %v2354 = vadd.f32 %v2302, %v2353
        %v2355 = vpop.f32.mrb[0].mxu0
        %v2356 = vpop.f32.mrb[0].mxu0
        %v2357 = vpop.f32.mrb[0].mxu0
        %2358 = vdwg.mxu0
        %v2359 = vadd.f32 %v1699, %v2354
        %v2360 = vld [vmem:[%s1374] sm:$0x1]
        %v2361 = vld [vmem:[%s1382] sm:$0x1]
        %v2362 = vsel %vm1705, %v2359, 0.0
        %2363 = vadd.xlane.f32.xlu0 %v2362
        %v2364 = vpop.xlane.xlu0 %2363
        %v2365 = vmul.f32 %v2364, %v1709
        %v2366 = vsub.f32 %v2359, %v2365
        %v2367 = vmul.f32 %v2366, %v2366
        %v2368 = vsel %vm1705, %v2367, 0.0
        %2369 = vadd.xlane.f32.xlu0 %v2368
        %v2370 = vpop.xlane.xlu0 %2369
        %v2371 = vmul.f32 %v2370, %v1716
        %v2373 = vlaneseq
        %v2374 = vshrl.u32 %v2373, 7
        %v2375 = vsub.s32 0, %v2374
        %v2376 = vrot.slane %v2360, %v2375
        %v2378 = vmul.f32 %v2376, %v2366
        %v2379 = vrsqrt.pop %v2371
        %v2380 = vmul.f32 %v2371, %v2379
        %vm2381 = vcmp.eq.f32.partialorder %v2371, inf
        %v2382 = vsel %vm2381, %v2371, %v2380
        %vm2383 = vcmp.eq.f32.partialorder %v2371, 0.0
        %v2384 = vand.u32 %v2371, 2147483648
        %v2385 = vsel %vm2383, %v2384, %v2382
        %v2386 = vadd.f32 %v2385, 1e-06
        %v2387 = vrcp.pop %v2386
        %v2388 = vmul.f32 %v2378, %v2387
        %v2390 = vlaneseq
        %v2391 = vshrl.u32 %v2390, 7
        %v2392 = vsub.s32 0, %v2391
        %v2393 = vrot.slane %v2361, %v2392
        %v2395 = vadd.f32 %v2388, %v2393
        %v2396 = vpack.c.bf16 %v2395, %v2395
        %v2397 = vld [vmem:[%s1675] sm:$0xf]
        %v2398 = vld [vmem:[%s1675 + $0x4] sm:$0xf]
        %v2399 = vld [vmem:[%s1675 + $0x8] sm:$0xf]
        %v2400 = vld [vmem:[%s1675 + $0xc] sm:$0xf]
        %v2401 = vld [vmem:[%s1390] sm:$0x1]
        %v2403 = vlaneseq
        %v2404 = vshrl.u32 %v2403, 7
        %v2405 = vsub.s32 0, %v2404
        %v2406 = vrot.slane %v2401, %v2405
        %v2412 = vunpack.c.l.b16 %v2397
        %v2413 = vunpack.c.l.b16 %v2398
        %v2414 = vunpack.c.l.b16 %v2399
        %v2415 = vunpack.c.l.b16 %v2400
        %v2416 = vpack.c.b16 %v2413, %v2412
        %v2417 = vpack.c.b16 %v2415, %v2414
        %v2421 = vsel %vm1705, %v2396, 0
        %2423 = vmatprep.subr.bf16.mxu0 0
        %2424 = vmatpush1.bf16.msra.mxu0 %v2416
        %2425 = vmatprep.subr.bf16.mxu0 0
        %2426 = vmatpush1.bf16.msra.mxu0 %v2417
        %2427 = vmatprep.subr.bf16.mxu0 0
        %2428 = vmatpush1.bf16.msra.mxu0 0
        %2429 = vmatprep.subr.bf16.mxu0 0
        %2430 = vmatpush1.bf16.msra.mxu0 0
        %2431 = vmatprep.subr.bf16.mxu0 0
        %2432 = vmatpush1.bf16.msra.mxu0 0
        %2433 = vmatprep.subr.bf16.mxu0 0
        %2434 = vmatpush1.bf16.msra.mxu0 0
        %2435 = vmatprep.subr.bf16.mxu0 0
        %2436 = vmatpush1.bf16.msra.mxu0 0
        %2437 = vmatprep.subr.bf16.mxu0 0
        %2438 = vmatpush1.bf16.msra.mxu0 0
        %2439 = vmatprep.subr.bf16.mxu0 0
        %2440 = vmatpush1.bf16.msra.mxu0 0
        %2441 = vmatprep.subr.bf16.mxu0 0
        %2442 = vmatpush1.bf16.msra.mxu0 0
        %2443 = vmatprep.subr.bf16.mxu0 0
        %2444 = vmatpush1.bf16.msra.mxu0 0
        %2445 = vmatprep.subr.bf16.mxu0 0
        %2446 = vmatpush1.bf16.msra.mxu0 0
        %2447 = vmatprep.subr.bf16.mxu0 0
        %2448 = vmatpush1.bf16.msra.mxu0 0
        %2449 = vmatprep.subr.bf16.mxu0 0
        %2450 = vmatpush1.bf16.msra.mxu0 0
        %2451 = vmatprep.subr.bf16.mxu0 0
        %2452 = vmatpush1.bf16.msra.mxu0 0
        %2453 = vmatprep.subr.bf16.mxu0 0
        %2454 = vmatpush1.bf16.msra.mxu0 0
        %2455 = vmatprep.mubr.bf16.mxu0 0
        %2456 = vmatmul.mubr.bf16.gmra.mrb[0].mxu0 %v2421
        %v2457 = vpop.f32.mrb[0].mxu0
        %v2458 = vadd.f32 %v2406, %v2457
        %v2459 = vpop.f32.mrb[0].mxu0
        %v2460 = vpop.f32.mrb[0].mxu0
        %v2461 = vpop.f32.mrb[0].mxu0
        %2462 = vdwg.mxu0
        %v2463 = vld [vmem:[%s1680] sm:$0xf]
        %v2464 = vld [vmem:[%s1680 + $0x4] sm:$0xf]
        %v2465 = vld [vmem:[%s1680 + $0x8] sm:$0xf]
        %v2466 = vld [vmem:[%s1680 + $0xc] sm:$0xf]
        %v2467 = vld [vmem:[%s1398] sm:$0x1]
        %v2469 = vlaneseq
        %v2470 = vshrl.u32 %v2469, 7
        %v2471 = vsub.s32 0, %v2470
        %v2472 = vrot.slane %v2467, %v2471
        %v2478 = vunpack.c.l.b16 %v2463
        %v2479 = vunpack.c.l.b16 %v2464
        %v2480 = vunpack.c.l.b16 %v2465
        %v2481 = vunpack.c.l.b16 %v2466
        %v2482 = vpack.c.b16 %v2479, %v2478
        %v2483 = vpack.c.b16 %v2481, %v2480
        %v2487 = vsel %vm1705, %v1700, 0
        %2489 = vmatprep.subr.bf16.mxu0 0
        %2490 = vmatpush1.bf16.msra.mxu0 %v2482
        %2491 = vmatprep.subr.bf16.mxu0 0
        %2492 = vmatpush1.bf16.msra.mxu0 %v2483
        %2493 = vmatprep.subr.bf16.mxu0 0
        %2494 = vmatpush1.bf16.msra.mxu0 0
        %2495 = vmatprep.subr.bf16.mxu0 0
        %2496 = vmatpush1.bf16.msra.mxu0 0
        %2497 = vmatprep.subr.bf16.mxu0 0
        %2498 = vmatpush1.bf16.msra.mxu0 0
        %2499 = vmatprep.subr.bf16.mxu0 0
        %2500 = vmatpush1.bf16.msra.mxu0 0
        %2501 = vmatprep.subr.bf16.mxu0 0
        %2502 = vmatpush1.bf16.msra.mxu0 0
        %2503 = vmatprep.subr.bf16.mxu0 0
        %2504 = vmatpush1.bf16.msra.mxu0 0
        %2505 = vmatprep.subr.bf16.mxu0 0
        %2506 = vmatpush1.bf16.msra.mxu0 0
        %2507 = vmatprep.subr.bf16.mxu0 0
        %2508 = vmatpush1.bf16.msra.mxu0 0
        %2509 = vmatprep.subr.bf16.mxu0 0
        %2510 = vmatpush1.bf16.msra.mxu0 0
        %2511 = vmatprep.subr.bf16.mxu0 0
        %2512 = vmatpush1.bf16.msra.mxu0 0
        %2513 = vmatprep.subr.bf16.mxu0 0
        %2514 = vmatpush1.bf16.msra.mxu0 0
        %2515 = vmatprep.subr.bf16.mxu0 0
        %2516 = vmatpush1.bf16.msra.mxu0 0
        %2517 = vmatprep.subr.bf16.mxu0 0
        %2518 = vmatpush1.bf16.msra.mxu0 0
        %2519 = vmatprep.subr.bf16.mxu0 0
        %2520 = vmatpush1.bf16.msra.mxu0 0
        %2521 = vmatprep.mubr.bf16.mxu0 0
        %2522 = vmatmul.mubr.bf16.gmra.mrb[0].mxu0 %v2487
        %v2523 = vpop.f32.mrb[0].mxu0
        %v2524 = vadd.f32 %v2472, %v2523
        %v2525 = vpop.f32.mrb[0].mxu0
        %v2526 = vpop.f32.mrb[0].mxu0
        %v2527 = vpop.f32.mrb[0].mxu0
        %2528 = vdwg.mxu0
        %2530 = vrot.lane.b32.xlu0 %v2458, 120
        %v2531 = vpop.permute.xlu0 %2530
        %2533 = vrot.lane.b32.xlu0 %v2458, 112
        %v2534 = vpop.permute.xlu0 %2533
        %2536 = vrot.lane.b32.xlu0 %v2458, 104
        %v2537 = vpop.permute.xlu0 %2536
        %v2539 = vpack.c.bf16 %v2458, %v2458
        %v2540 = vpack.c.bf16 %v2531, %v2531
        %v2541 = vpack.c.bf16 %v2534, %v2534
        %v2542 = vpack.c.bf16 %v2537, %v2537
        %2544 = vrot.lane.b32.xlu0 %v2524, 120
        %v2545 = vpop.permute.xlu0 %2544
        %2547 = vrot.lane.b32.xlu0 %v2524, 112
        %v2548 = vpop.permute.xlu0 %2547
        %2550 = vrot.lane.b32.xlu0 %v2524, 104
        %v2551 = vpop.permute.xlu0 %2550
        %v2553 = vpack.c.bf16 %v2524, %v2524
        %v2554 = vpack.c.bf16 %v2545, %v2545
        %v2555 = vpack.c.bf16 %v2548, %v2548
        %v2556 = vpack.c.bf16 %v2551, %v2551
        %v2558 = vsel %vm1826, %v2539, 0
        %v2561 = vsel %vm1826, %v2553, 0
        %2563 = vmatprep.subr.bf16.mxu0 0
        %2564 = vmatpush1.bf16.xpose.msra.mxu0 %v2561
        %2565 = vmatprep.subr.bf16.mxu0 0
        %2566 = vmatpush1.bf16.xpose.msra.mxu0 0
        %2567 = vmatprep.subr.bf16.mxu0 0
        %2568 = vmatpush1.bf16.xpose.msra.mxu0 0
        %2569 = vmatprep.subr.bf16.mxu0 0
        %2570 = vmatpush1.bf16.xpose.msra.mxu0 0
        %2571 = vmatprep.subr.bf16.mxu0 0
        %2572 = vmatpush1.bf16.xpose.msra.mxu0 0
        %2573 = vmatprep.subr.bf16.mxu0 0
        %2574 = vmatpush1.bf16.xpose.msra.mxu0 0
        %2575 = vmatprep.subr.bf16.mxu0 0
        %2576 = vmatpush1.bf16.xpose.msra.mxu0 0
        %2577 = vmatprep.subr.bf16.mxu0 0
        %2578 = vmatpush1.bf16.xpose.msra.mxu0 0
        %2579 = vmatprep.subr.bf16.mxu0 0
        %2580 = vmatpush1.bf16.xpose.msra.mxu0 0
        %2581 = vmatprep.subr.bf16.mxu0 0
        %2582 = vmatpush1.bf16.xpose.msra.mxu0 0
        %2583 = vmatprep.subr.bf16.mxu0 0
        %2584 = vmatpush1.bf16.xpose.msra.mxu0 0
        %2585 = vmatprep.subr.bf16.mxu0 0
        %2586 = vmatpush1.bf16.xpose.msra.mxu0 0
        %2587 = vmatprep.subr.bf16.mxu0 0
        %2588 = vmatpush1.bf16.xpose.msra.mxu0 0
        %2589 = vmatprep.subr.bf16.mxu0 0
        %2590 = vmatpush1.bf16.xpose.msra.mxu0 0
        %2591 = vmatprep.subr.bf16.mxu0 0
        %2592 = vmatpush1.bf16.xpose.msra.mxu0 0
        %2593 = vmatprep.subr.bf16.mxu0 0
        %2594 = vmatpush1.bf16.xpose.msra.mxu0 0
        %2595 = vmatprep.mubr.bf16.mxu0 0
        %2596 = vmatmul.mubr.bf16.gmra.mrb[0].mxu0 %v2558
        %v2597 = vpop.f32.mrb[0].mxu0
        %v2598 = vadd.f32 0.0, %v2597
        %v2599 = vpop.f32.mrb[0].mxu0
        %v2600 = vpop.f32.mrb[0].mxu0
        %v2601 = vpop.f32.mrb[0].mxu0
        %2602 = vdwg.mxu0
        %v2604 = vsel %vm1826, %v2540, 0
        %v2607 = vsel %vm1826, %v2554, 0
        %2609 = vmatprep.subr.bf16.mxu0 0
        %2610 = vmatpush1.bf16.xpose.msra.mxu0 %v2607
        %2611 = vmatprep.subr.bf16.mxu0 0
        %2612 = vmatpush1.bf16.xpose.msra.mxu0 0
        %2613 = vmatprep.subr.bf16.mxu0 0
        %2614 = vmatpush1.bf16.xpose.msra.mxu0 0
        %2615 = vmatprep.subr.bf16.mxu0 0
        %2616 = vmatpush1.bf16.xpose.msra.mxu0 0
        %2617 = vmatprep.subr.bf16.mxu0 0
        %2618 = vmatpush1.bf16.xpose.msra.mxu0 0
        %2619 = vmatprep.subr.bf16.mxu0 0
        %2620 = vmatpush1.bf16.xpose.msra.mxu0 0
        %2621 = vmatprep.subr.bf16.mxu0 0
        %2622 = vmatpush1.bf16.xpose.msra.mxu0 0
        %2623 = vmatprep.subr.bf16.mxu0 0
        %2624 = vmatpush1.bf16.xpose.msra.mxu0 0
        %2625 = vmatprep.subr.bf16.mxu0 0
        %2626 = vmatpush1.bf16.xpose.msra.mxu0 0
        %2627 = vmatprep.subr.bf16.mxu0 0
        %2628 = vmatpush1.bf16.xpose.msra.mxu0 0
        %2629 = vmatprep.subr.bf16.mxu0 0
        %2630 = vmatpush1.bf16.xpose.msra.mxu0 0
        %2631 = vmatprep.subr.bf16.mxu0 0
        %2632 = vmatpush1.bf16.xpose.msra.mxu0 0
        %2633 = vmatprep.subr.bf16.mxu0 0
        %2634 = vmatpush1.bf16.xpose.msra.mxu0 0
        %2635 = vmatprep.subr.bf16.mxu0 0
        %2636 = vmatpush1.bf16.xpose.msra.mxu0 0
        %2637 = vmatprep.subr.bf16.mxu0 0
        %2638 = vmatpush1.bf16.xpose.msra.mxu0 0
        %2639 = vmatprep.subr.bf16.mxu0 0
        %2640 = vmatpush1.bf16.xpose.msra.mxu0 0
        %2641 = vmatprep.mubr.bf16.mxu0 0
        %2642 = vmatmul.mubr.bf16.gmra.mrb[0].mxu0 %v2604
        %v2643 = vpop.f32.mrb[0].mxu0
        %v2644 = vadd.f32 0.0, %v2643
        %v2645 = vpop.f32.mrb[0].mxu0
        %v2646 = vpop.f32.mrb[0].mxu0
        %v2647 = vpop.f32.mrb[0].mxu0
        %2648 = vdwg.mxu0
        %v2650 = vsel %vm1826, %v2541, 0
        %v2653 = vsel %vm1826, %v2555, 0
        %2655 = vmatprep.subr.bf16.mxu0 0
        %2656 = vmatpush1.bf16.xpose.msra.mxu0 %v2653
        %2657 = vmatprep.subr.bf16.mxu0 0
        %2658 = vmatpush1.bf16.xpose.msra.mxu0 0
        %2659 = vmatprep.subr.bf16.mxu0 0
        %2660 = vmatpush1.bf16.xpose.msra.mxu0 0
        %2661 = vmatprep.subr.bf16.mxu0 0
        %2662 = vmatpush1.bf16.xpose.msra.mxu0 0
        %2663 = vmatprep.subr.bf16.mxu0 0
        %2664 = vmatpush1.bf16.xpose.msra.mxu0 0
        %2665 = vmatprep.subr.bf16.mxu0 0
        %2666 = vmatpush1.bf16.xpose.msra.mxu0 0
        %2667 = vmatprep.subr.bf16.mxu0 0
        %2668 = vmatpush1.bf16.xpose.msra.mxu0 0
        %2669 = vmatprep.subr.bf16.mxu0 0
        %2670 = vmatpush1.bf16.xpose.msra.mxu0 0
        %2671 = vmatprep.subr.bf16.mxu0 0
        %2672 = vmatpush1.bf16.xpose.msra.mxu0 0
        %2673 = vmatprep.subr.bf16.mxu0 0
        %2674 = vmatpush1.bf16.xpose.msra.mxu0 0
        %2675 = vmatprep.subr.bf16.mxu0 0
        %2676 = vmatpush1.bf16.xpose.msra.mxu0 0
        %2677 = vmatprep.subr.bf16.mxu0 0
        %2678 = vmatpush1.bf16.xpose.msra.mxu0 0
        %2679 = vmatprep.subr.bf16.mxu0 0
        %2680 = vmatpush1.bf16.xpose.msra.mxu0 0
        %2681 = vmatprep.subr.bf16.mxu0 0
        %2682 = vmatpush1.bf16.xpose.msra.mxu0 0
        %2683 = vmatprep.subr.bf16.mxu0 0
        %2684 = vmatpush1.bf16.xpose.msra.mxu0 0
        %2685 = vmatprep.subr.bf16.mxu0 0
        %2686 = vmatpush1.bf16.xpose.msra.mxu0 0
        %2687 = vmatprep.mubr.bf16.mxu0 0
        %2688 = vmatmul.mubr.bf16.gmra.mrb[0].mxu0 %v2650
        %v2689 = vpop.f32.mrb[0].mxu0
        %v2690 = vadd.f32 0.0, %v2689
        %v2691 = vpop.f32.mrb[0].mxu0
        %v2692 = vpop.f32.mrb[0].mxu0
        %v2693 = vpop.f32.mrb[0].mxu0
        %2694 = vdwg.mxu0
        %v2696 = vsel %vm1826, %v2542, 0
        %v2699 = vsel %vm1826, %v2556, 0
        %2701 = vmatprep.subr.bf16.mxu0 0
        %2702 = vmatpush1.bf16.xpose.msra.mxu0 %v2699
        %2703 = vmatprep.subr.bf16.mxu0 0
        %2704 = vmatpush1.bf16.xpose.msra.mxu0 0
        %2705 = vmatprep.subr.bf16.mxu0 0
        %2706 = vmatpush1.bf16.xpose.msra.mxu0 0
        %2707 = vmatprep.subr.bf16.mxu0 0
        %2708 = vmatpush1.bf16.xpose.msra.mxu0 0
        %2709 = vmatprep.subr.bf16.mxu0 0
        %2710 = vmatpush1.bf16.xpose.msra.mxu0 0
        %2711 = vmatprep.subr.bf16.mxu0 0
        %2712 = vmatpush1.bf16.xpose.msra.mxu0 0
        %2713 = vmatprep.subr.bf16.mxu0 0
        %2714 = vmatpush1.bf16.xpose.msra.mxu0 0
        %2715 = vmatprep.subr.bf16.mxu0 0
        %2716 = vmatpush1.bf16.xpose.msra.mxu0 0
        %2717 = vmatprep.subr.bf16.mxu0 0
        %2718 = vmatpush1.bf16.xpose.msra.mxu0 0
        %2719 = vmatprep.subr.bf16.mxu0 0
        %2720 = vmatpush1.bf16.xpose.msra.mxu0 0
        %2721 = vmatprep.subr.bf16.mxu0 0
        %2722 = vmatpush1.bf16.xpose.msra.mxu0 0
        %2723 = vmatprep.subr.bf16.mxu0 0
        %2724 = vmatpush1.bf16.xpose.msra.mxu0 0
        %2725 = vmatprep.subr.bf16.mxu0 0
        %2726 = vmatpush1.bf16.xpose.msra.mxu0 0
        %2727 = vmatprep.subr.bf16.mxu0 0
        %2728 = vmatpush1.bf16.xpose.msra.mxu0 0
        %2729 = vmatprep.subr.bf16.mxu0 0
        %2730 = vmatpush1.bf16.xpose.msra.mxu0 0
        %2731 = vmatprep.subr.bf16.mxu0 0
        %2732 = vmatpush1.bf16.xpose.msra.mxu0 0
        %2733 = vmatprep.mubr.bf16.mxu0 0
        %2734 = vmatmul.mubr.bf16.gmra.mrb[0].mxu0 %v2696
        %v2735 = vpop.f32.mrb[0].mxu0
        %v2736 = vadd.f32 0.0, %v2735
        %v2737 = vpop.f32.mrb[0].mxu0
        %v2738 = vpop.f32.mrb[0].mxu0
        %v2739 = vpop.f32.mrb[0].mxu0
        %2740 = vdwg.mxu0
        %v2741 = vmul.f32 %v2598, 0.35355338
        %v2742 = vmul.f32 %v2644, 0.35355338
        %v2743 = vmul.f32 %v2690, 0.35355338
        %v2744 = vmul.f32 %v2736, 0.35355338
        %vm2745 = vcmp.ne.s32.totalorder %v1702, 0
        %v2746 = vsel %vm2745, 1, 0
        %v2747 = vlaneseq
        %v2748 = vshrl.u32 %v2747, 7
        %v2749 = vsub.s32 0, %v2748
        %v2750 = vrot.slane %v2746, %v2749
        %vm2751 = vcmp.eq.s32.totalorder %v2750, 1
        %v2752 = vsel %vm2751, %v2741, -1e+09
        %v2753 = vsel %vm2751, %v2742, -1e+09
        %v2754 = vsel %vm2751, %v2743, -1e+09
        %v2755 = vsel %vm2751, %v2744, -1e+09
        %v2756 = vsel %vm1826, %v2752, -inf
        %2757 = vmax.xlane.f32.xlu0 %v2756
        %v2758 = vpop.xlane.xlu0 %2757
        %v2759 = vsel %vm1826, %v2753, -inf
        %2760 = vmax.xlane.f32.xlu0 %v2759
        %v2761 = vpop.xlane.xlu0 %2760
        %v2762 = vsel %vm1826, %v2754, -inf
        %2763 = vmax.xlane.f32.xlu0 %v2762
        %v2764 = vpop.xlane.xlu0 %2763
        %v2765 = vsel %vm1826, %v2755, -inf
        %2766 = vmax.xlane.f32.xlu0 %v2765
        %v2767 = vpop.xlane.xlu0 %2766
        %v2768 = vsub.f32 %v2752, %v2758
        %v2769 = vsub.f32 %v2753, %v2761
        %v2770 = vsub.f32 %v2754, %v2764
        %v2771 = vsub.f32 %v2755, %v2767
        %v2772 = vmul.f32 %v2768, 1.442695
        %v2773 = vpow.pop %v2772
        %v2774 = vmul.f32 %v2769, 1.442695
        %v2775 = vpow.pop %v2774
        %v2776 = vmul.f32 %v2770, 1.442695
        %v2777 = vpow.pop %v2776
        %v2778 = vmul.f32 %v2771, 1.442695
        %v2779 = vpow.pop %v2778
        %v2780 = vsel %vm1826, %v2773, 0.0
        %2781 = vadd.xlane.f32.xlu0 %v2780
        %v2782 = vpop.xlane.xlu0 %2781
        %v2783 = vsel %vm1826, %v2775, 0.0
        %2784 = vadd.xlane.f32.xlu0 %v2783
        %v2785 = vpop.xlane.xlu0 %2784
        %v2786 = vsel %vm1826, %v2777, 0.0
        %2787 = vadd.xlane.f32.xlu0 %v2786
        %v2788 = vpop.xlane.xlu0 %2787
        %v2789 = vsel %vm1826, %v2779, 0.0
        %2790 = vadd.xlane.f32.xlu0 %v2789
        %v2791 = vpop.xlane.xlu0 %2790
        %v2792 = vrcp.pop %v2782
        %v2793 = vrcp.pop %v2785
        %v2794 = vrcp.pop %v2788
        %v2795 = vrcp.pop %v2791
        %v2796 = vmul.f32 %v2773, %v2792
        %v2797 = vmul.f32 %v2775, %v2793
        %v2798 = vmul.f32 %v2777, %v2794
        %v2799 = vmul.f32 %v2779, %v2795
        %v2800 = vpack.c.bf16 %v2796, %v2796
        %v2801 = vpack.c.bf16 %v2797, %v2797
        %v2802 = vpack.c.bf16 %v2798, %v2798
        %v2803 = vpack.c.bf16 %v2799, %v2799
        %2805 = vrot.lane.b32.xlu0 %v2553, 96
        %v2806 = vpop.permute.xlu0 %2805
        %v2808 = vsel %vm1826, %v2800, 0
        %v2811 = vsel %vm2084, %v2806, 0
        %2813 = vmatprep.subr.bf16.mxu0 0
        %2814 = vmatpush1.bf16.msra.mxu0 %v2811
        %2815 = vmatprep.subr.bf16.mxu0 0
        %2816 = vmatpush1.bf16.msra.mxu0 0
        %2817 = vmatprep.subr.bf16.mxu0 0
        %2818 = vmatpush1.bf16.msra.mxu0 0
        %2819 = vmatprep.subr.bf16.mxu0 0
        %2820 = vmatpush1.bf16.msra.mxu0 0
        %2821 = vmatprep.subr.bf16.mxu0 0
        %2822 = vmatpush1.bf16.msra.mxu0 0
        %2823 = vmatprep.subr.bf16.mxu0 0
        %2824 = vmatpush1.bf16.msra.mxu0 0
        %2825 = vmatprep.subr.bf16.mxu0 0
        %2826 = vmatpush1.bf16.msra.mxu0 0
        %2827 = vmatprep.subr.bf16.mxu0 0
        %2828 = vmatpush1.bf16.msra.mxu0 0
        %2829 = vmatprep.subr.bf16.mxu0 0
        %2830 = vmatpush1.bf16.msra.mxu0 0
        %2831 = vmatprep.subr.bf16.mxu0 0
        %2832 = vmatpush1.bf16.msra.mxu0 0
        %2833 = vmatprep.subr.bf16.mxu0 0
        %2834 = vmatpush1.bf16.msra.mxu0 0
        %2835 = vmatprep.subr.bf16.mxu0 0
        %2836 = vmatpush1.bf16.msra.mxu0 0
        %2837 = vmatprep.subr.bf16.mxu0 0
        %2838 = vmatpush1.bf16.msra.mxu0 0
        %2839 = vmatprep.subr.bf16.mxu0 0
        %2840 = vmatpush1.bf16.msra.mxu0 0
        %2841 = vmatprep.subr.bf16.mxu0 0
        %2842 = vmatpush1.bf16.msra.mxu0 0
        %2843 = vmatprep.subr.bf16.mxu0 0
        %2844 = vmatpush1.bf16.msra.mxu0 0
        %2845 = vmatprep.mubr.bf16.mxu0 0
        %2846 = vmatmul.mubr.bf16.gmra.mrb[0].mxu0 %v2808
        %v2847 = vpop.f32.mrb[0].mxu0
        %v2848 = vadd.f32 0.0, %v2847
        %v2849 = vpop.f32.mrb[0].mxu0
        %v2850 = vpop.f32.mrb[0].mxu0
        %v2851 = vpop.f32.mrb[0].mxu0
        %2852 = vdwg.mxu0
        %2854 = vrot.lane.b32.xlu0 %v2554, 96
        %v2855 = vpop.permute.xlu0 %2854
        %v2857 = vsel %vm1826, %v2801, 0
        %v2860 = vsel %vm2084, %v2855, 0
        %2862 = vmatprep.subr.bf16.mxu0 0
        %2863 = vmatpush1.bf16.msra.mxu0 %v2860
        %2864 = vmatprep.subr.bf16.mxu0 0
        %2865 = vmatpush1.bf16.msra.mxu0 0
        %2866 = vmatprep.subr.bf16.mxu0 0
        %2867 = vmatpush1.bf16.msra.mxu0 0
        %2868 = vmatprep.subr.bf16.mxu0 0
        %2869 = vmatpush1.bf16.msra.mxu0 0
        %2870 = vmatprep.subr.bf16.mxu0 0
        %2871 = vmatpush1.bf16.msra.mxu0 0
        %2872 = vmatprep.subr.bf16.mxu0 0
        %2873 = vmatpush1.bf16.msra.mxu0 0
        %2874 = vmatprep.subr.bf16.mxu0 0
        %2875 = vmatpush1.bf16.msra.mxu0 0
        %2876 = vmatprep.subr.bf16.mxu0 0
        %2877 = vmatpush1.bf16.msra.mxu0 0
        %2878 = vmatprep.subr.bf16.mxu0 0
        %2879 = vmatpush1.bf16.msra.mxu0 0
        %2880 = vmatprep.subr.bf16.mxu0 0
        %2881 = vmatpush1.bf16.msra.mxu0 0
        %2882 = vmatprep.subr.bf16.mxu0 0
        %2883 = vmatpush1.bf16.msra.mxu0 0
        %2884 = vmatprep.subr.bf16.mxu0 0
        %2885 = vmatpush1.bf16.msra.mxu0 0
        %2886 = vmatprep.subr.bf16.mxu0 0
        %2887 = vmatpush1.bf16.msra.mxu0 0
        %2888 = vmatprep.subr.bf16.mxu0 0
        %2889 = vmatpush1.bf16.msra.mxu0 0
        %2890 = vmatprep.subr.bf16.mxu0 0
        %2891 = vmatpush1.bf16.msra.mxu0 0
        %2892 = vmatprep.subr.bf16.mxu0 0
        %2893 = vmatpush1.bf16.msra.mxu0 0
        %2894 = vmatprep.mubr.bf16.mxu0 0
        %2895 = vmatmul.mubr.bf16.gmra.mrb[0].mxu0 %v2857
        %v2896 = vpop.f32.mrb[0].mxu0
        %v2897 = vadd.f32 0.0, %v2896
        %v2898 = vpop.f32.mrb[0].mxu0
        %v2899 = vpop.f32.mrb[0].mxu0
        %v2900 = vpop.f32.mrb[0].mxu0
        %2901 = vdwg.mxu0
        %2903 = vrot.lane.b32.xlu0 %v2555, 96
        %v2904 = vpop.permute.xlu0 %2903
        %v2906 = vsel %vm1826, %v2802, 0
        %v2909 = vsel %vm2084, %v2904, 0
        %2911 = vmatprep.subr.bf16.mxu0 0
        %2912 = vmatpush1.bf16.msra.mxu0 %v2909
        %2913 = vmatprep.subr.bf16.mxu0 0
        %2914 = vmatpush1.bf16.msra.mxu0 0
        %2915 = vmatprep.subr.bf16.mxu0 0
        %2916 = vmatpush1.bf16.msra.mxu0 0
        %2917 = vmatprep.subr.bf16.mxu0 0
        %2918 = vmatpush1.bf16.msra.mxu0 0
        %2919 = vmatprep.subr.bf16.mxu0 0
        %2920 = vmatpush1.bf16.msra.mxu0 0
        %2921 = vmatprep.subr.bf16.mxu0 0
        %2922 = vmatpush1.bf16.msra.mxu0 0
        %2923 = vmatprep.subr.bf16.mxu0 0
        %2924 = vmatpush1.bf16.msra.mxu0 0
        %2925 = vmatprep.subr.bf16.mxu0 0
        %2926 = vmatpush1.bf16.msra.mxu0 0
        %2927 = vmatprep.subr.bf16.mxu0 0
        %2928 = vmatpush1.bf16.msra.mxu0 0
        %2929 = vmatprep.subr.bf16.mxu0 0
        %2930 = vmatpush1.bf16.msra.mxu0 0
        %2931 = vmatprep.subr.bf16.mxu0 0
        %2932 = vmatpush1.bf16.msra.mxu0 0
        %2933 = vmatprep.subr.bf16.mxu0 0
        %2934 = vmatpush1.bf16.msra.mxu0 0
        %2935 = vmatprep.subr.bf16.mxu0 0
        %2936 = vmatpush1.bf16.msra.mxu0 0
        %2937 = vmatprep.subr.bf16.mxu0 0
        %2938 = vmatpush1.bf16.msra.mxu0 0
        %2939 = vmatprep.subr.bf16.mxu0 0
        %2940 = vmatpush1.bf16.msra.mxu0 0
        %2941 = vmatprep.subr.bf16.mxu0 0
        %2942 = vmatpush1.bf16.msra.mxu0 0
        %2943 = vmatprep.mubr.bf16.mxu0 0
        %2944 = vmatmul.mubr.bf16.gmra.mrb[0].mxu0 %v2906
        %v2945 = vpop.f32.mrb[0].mxu0
        %v2946 = vadd.f32 0.0, %v2945
        %v2947 = vpop.f32.mrb[0].mxu0
        %v2948 = vpop.f32.mrb[0].mxu0
        %v2949 = vpop.f32.mrb[0].mxu0
        %2950 = vdwg.mxu0
        %2952 = vrot.lane.b32.xlu0 %v2556, 96
        %v2953 = vpop.permute.xlu0 %2952
        %v2955 = vsel %vm1826, %v2803, 0
        %v2958 = vsel %vm2084, %v2953, 0
        %2960 = vmatprep.subr.bf16.mxu0 0
        %2961 = vmatpush1.bf16.msra.mxu0 %v2958
        %2962 = vmatprep.subr.bf16.mxu0 0
        %2963 = vmatpush1.bf16.msra.mxu0 0
        %2964 = vmatprep.subr.bf16.mxu0 0
        %2965 = vmatpush1.bf16.msra.mxu0 0
        %2966 = vmatprep.subr.bf16.mxu0 0
        %2967 = vmatpush1.bf16.msra.mxu0 0
        %2968 = vmatprep.subr.bf16.mxu0 0
        %2969 = vmatpush1.bf16.msra.mxu0 0
        %2970 = vmatprep.subr.bf16.mxu0 0
        %2971 = vmatpush1.bf16.msra.mxu0 0
        %2972 = vmatprep.subr.bf16.mxu0 0
        %2973 = vmatpush1.bf16.msra.mxu0 0
        %2974 = vmatprep.subr.bf16.mxu0 0
        %2975 = vmatpush1.bf16.msra.mxu0 0
        %2976 = vmatprep.subr.bf16.mxu0 0
        %2977 = vmatpush1.bf16.msra.mxu0 0
        %2978 = vmatprep.subr.bf16.mxu0 0
        %2979 = vmatpush1.bf16.msra.mxu0 0
        %2980 = vmatprep.subr.bf16.mxu0 0
        %2981 = vmatpush1.bf16.msra.mxu0 0
        %2982 = vmatprep.subr.bf16.mxu0 0
        %2983 = vmatpush1.bf16.msra.mxu0 0
        %2984 = vmatprep.subr.bf16.mxu0 0
        %2985 = vmatpush1.bf16.msra.mxu0 0
        %2986 = vmatprep.subr.bf16.mxu0 0
        %2987 = vmatpush1.bf16.msra.mxu0 0
        %2988 = vmatprep.subr.bf16.mxu0 0
        %2989 = vmatpush1.bf16.msra.mxu0 0
        %2990 = vmatprep.subr.bf16.mxu0 0
        %2991 = vmatpush1.bf16.msra.mxu0 0
        %2992 = vmatprep.mubr.bf16.mxu0 0
        %2993 = vmatmul.mubr.bf16.gmra.mrb[0].mxu0 %v2955
        %v2994 = vpop.f32.mrb[0].mxu0
        %v2995 = vadd.f32 0.0, %v2994
        %v2996 = vpop.f32.mrb[0].mxu0
        %v2997 = vpop.f32.mrb[0].mxu0
        %v2998 = vpop.f32.mrb[0].mxu0
        %2999 = vdwg.mxu0
        %v3000 = vld [vmem:[%s1685] sm:$0xf]
        %v3001 = vld [vmem:[%s1685 + $0x4] sm:$0xf]
        %v3002 = vld [vmem:[%s1685 + $0x8] sm:$0xf]
        %v3003 = vld [vmem:[%s1685 + $0xc] sm:$0xf]
        %v3004 = vld [vmem:[%s1406] sm:$0x1]
        %3005 = vst.msk [vmem:[#allocation2] sm:$0xff] %vm1826, %v2848
        %3007 = vrot.lane.b32.xlu0 %v2897, 8
        %v3008 = vpop.permute.xlu0 %3007
        %3010 = vst.msk [vmem:[#allocation2] sm:$0xff] %vm2282, %v3008
        %3012 = vrot.lane.b32.xlu0 %v2946, 16
        %v3013 = vpop.permute.xlu0 %3012
        %3015 = vst.msk [vmem:[#allocation2] sm:$0xff] %vm2288, %v3013
        %3017 = vrot.lane.b32.xlu0 %v2995, 24
        %v3018 = vpop.permute.xlu0 %3017
        %3020 = vst.msk [vmem:[#allocation2] sm:$0xff] %vm2294, %v3018
        %v3021 = vld [vmem:[#allocation2] sm:$0xff]
        %v3022 = vpack.c.bf16 %v3021, %v3021
        %v3024 = vlaneseq
        %v3025 = vshrl.u32 %v3024, 7
        %v3026 = vsub.s32 0, %v3025
        %v3027 = vrot.slane %v3004, %v3026
        %v3033 = vunpack.c.l.b16 %v3000
        %v3034 = vunpack.c.l.b16 %v3001
        %v3035 = vunpack.c.l.b16 %v3002
        %v3036 = vunpack.c.l.b16 %v3003
        %v3037 = vpack.c.b16 %v3034, %v3033
        %v3038 = vpack.c.b16 %v3036, %v3035
        %v3042 = vsel %vm1705, %v3022, 0
        %3044 = vmatprep.subr.bf16.mxu0 0
        %3045 = vmatpush1.bf16.msra.mxu0 %v3037
        %3046 = vmatprep.subr.bf16.mxu0 0
        %3047 = vmatpush1.bf16.msra.mxu0 %v3038
        %3048 = vmatprep.subr.bf16.mxu0 0
        %3049 = vmatpush1.bf16.msra.mxu0 0
        %3050 = vmatprep.subr.bf16.mxu0 0
        %3051 = vmatpush1.bf16.msra.mxu0 0
        %3052 = vmatprep.subr.bf16.mxu0 0
        %3053 = vmatpush1.bf16.msra.mxu0 0
        %3054 = vmatprep.subr.bf16.mxu0 0
        %3055 = vmatpush1.bf16.msra.mxu0 0
        %3056 = vmatprep.subr.bf16.mxu0 0
        %3057 = vmatpush1.bf16.msra.mxu0 0
        %3058 = vmatprep.subr.bf16.mxu0 0
        %3059 = vmatpush1.bf16.msra.mxu0 0
        %3060 = vmatprep.subr.bf16.mxu0 0
        %3061 = vmatpush1.bf16.msra.mxu0 0
        %3062 = vmatprep.subr.bf16.mxu0 0
        %3063 = vmatpush1.bf16.msra.mxu0 0
        %3064 = vmatprep.subr.bf16.mxu0 0
        %3065 = vmatpush1.bf16.msra.mxu0 0
        %3066 = vmatprep.subr.bf16.mxu0 0
        %3067 = vmatpush1.bf16.msra.mxu0 0
        %3068 = vmatprep.subr.bf16.mxu0 0
        %3069 = vmatpush1.bf16.msra.mxu0 0
        %3070 = vmatprep.subr.bf16.mxu0 0
        %3071 = vmatpush1.bf16.msra.mxu0 0
        %3072 = vmatprep.subr.bf16.mxu0 0
        %3073 = vmatpush1.bf16.msra.mxu0 0
        %3074 = vmatprep.subr.bf16.mxu0 0
        %3075 = vmatpush1.bf16.msra.mxu0 0
        %3076 = vmatprep.mubr.bf16.mxu0 0
        %3077 = vmatmul.mubr.bf16.gmra.mrb[0].mxu0 %v3042
        %v3078 = vpop.f32.mrb[0].mxu0
        %v3079 = vadd.f32 %v3027, %v3078
        %v3080 = vpop.f32.mrb[0].mxu0
        %v3081 = vpop.f32.mrb[0].mxu0
        %v3082 = vpop.f32.mrb[0].mxu0
        %3083 = vdwg.mxu0
        %v3084 = vadd.f32 %v2359, %v3079
        %v3085 = vld [vmem:[%s1414] sm:$0x1]
        %v3086 = vld [vmem:[%s1422] sm:$0x1]
        %v3087 = vsel %vm1705, %v3084, 0.0
        %3088 = vadd.xlane.f32.xlu0 %v3087
        %v3089 = vpop.xlane.xlu0 %3088
        %v3090 = vmul.f32 %v3089, %v1709
        %v3091 = vsub.f32 %v3084, %v3090
        %v3092 = vmul.f32 %v3091, %v3091
        %v3093 = vsel %vm1705, %v3092, 0.0
        %3094 = vadd.xlane.f32.xlu0 %v3093
        %v3095 = vpop.xlane.xlu0 %3094
        %v3096 = vmul.f32 %v3095, %v1716
        %v3098 = vlaneseq
        %v3099 = vshrl.u32 %v3098, 7
        %v3100 = vsub.s32 0, %v3099
        %v3101 = vrot.slane %v3085, %v3100
        %v3103 = vmul.f32 %v3101, %v3091
        %v3104 = vrsqrt.pop %v3096
        %v3105 = vmul.f32 %v3096, %v3104
        %vm3106 = vcmp.eq.f32.partialorder %v3096, inf
        %v3107 = vsel %vm3106, %v3096, %v3105
        %vm3108 = vcmp.eq.f32.partialorder %v3096, 0.0
        %v3109 = vand.u32 %v3096, 2147483648
        %v3110 = vsel %vm3108, %v3109, %v3107
        %v3111 = vadd.f32 %v3110, 1e-06
        %v3112 = vrcp.pop %v3111
        %v3113 = vmul.f32 %v3103, %v3112
        %v3115 = vlaneseq
        %v3116 = vshrl.u32 %v3115, 7
        %v3117 = vsub.s32 0, %v3116
        %v3118 = vrot.slane %v3086, %v3117
        %v3120 = vadd.f32 %v3113, %v3118
        %v3121 = vpack.c.bf16 %v3120, %v3120
        %v3122 = vld [vmem:[%s1431] sm:$0xf]
        %v3123 = vld [vmem:[%s1431 + $0x4] sm:$0xf]
        %v3124 = vld [vmem:[%s1431 + $0x8] sm:$0xf]
        %v3125 = vld [vmem:[%s1431 + $0xc] sm:$0xf]
        %v3126 = vld [vmem:[%s1439] sm:$0x1]
        %v3128 = vlaneseq
        %v3129 = vshrl.u32 %v3128, 7
        %v3130 = vsub.s32 0, %v3129
        %v3131 = vrot.slane %v3126, %v3130
        %v3137 = vunpack.c.l.b16 %v3122
        %v3138 = vunpack.c.l.b16 %v3123
        %v3139 = vunpack.c.l.b16 %v3124
        %v3140 = vunpack.c.l.b16 %v3125
        %v3141 = vpack.c.b16 %v3138, %v3137
        %v3142 = vpack.c.b16 %v3140, %v3139
        %v3146 = vsel %vm1705, %v3121, 0
        %3148 = vmatprep.subr.bf16.mxu0 0
        %3149 = vmatpush1.bf16.msra.mxu0 %v3141
        %3150 = vmatprep.subr.bf16.mxu0 0
        %3151 = vmatpush1.bf16.msra.mxu0 %v3142
        %3152 = vmatprep.subr.bf16.mxu0 0
        %3153 = vmatpush1.bf16.msra.mxu0 0
        %3154 = vmatprep.subr.bf16.mxu0 0
        %3155 = vmatpush1.bf16.msra.mxu0 0
        %3156 = vmatprep.subr.bf16.mxu0 0
        %3157 = vmatpush1.bf16.msra.mxu0 0
        %3158 = vmatprep.subr.bf16.mxu0 0
        %3159 = vmatpush1.bf16.msra.mxu0 0
        %3160 = vmatprep.subr.bf16.mxu0 0
        %3161 = vmatpush1.bf16.msra.mxu0 0
        %3162 = vmatprep.subr.bf16.mxu0 0
        %3163 = vmatpush1.bf16.msra.mxu0 0
        %3164 = vmatprep.subr.bf16.mxu0 0
        %3165 = vmatpush1.bf16.msra.mxu0 0
        %3166 = vmatprep.subr.bf16.mxu0 0
        %3167 = vmatpush1.bf16.msra.mxu0 0
        %3168 = vmatprep.subr.bf16.mxu0 0
        %3169 = vmatpush1.bf16.msra.mxu0 0
        %3170 = vmatprep.subr.bf16.mxu0 0
        %3171 = vmatpush1.bf16.msra.mxu0 0
        %3172 = vmatprep.subr.bf16.mxu0 0
        %3173 = vmatpush1.bf16.msra.mxu0 0
        %3174 = vmatprep.subr.bf16.mxu0 0
        %3175 = vmatpush1.bf16.msra.mxu0 0
        %3176 = vmatprep.subr.bf16.mxu0 0
        %3177 = vmatpush1.bf16.msra.mxu0 0
        %3178 = vmatprep.subr.bf16.mxu0 0
        %3179 = vmatpush1.bf16.msra.mxu0 0
        %3180 = vmatprep.mubr.bf16.mxu0 0
        %3181 = vmatmul.mubr.bf16.gmra.mrb[0].mxu0 %v3146
        %v3182 = vpop.f32.mrb[0].mxu0
        %v3183 = vadd.f32 %v3131, %v3182
        %v3184 = vpop.f32.mrb[0].mxu0
        %v3185 = vpop.f32.mrb[0].mxu0
        %v3186 = vpop.f32.mrb[0].mxu0
        %3187 = vdwg.mxu0
        %v3188 = vmax.f32 %v3183, 0.0
        %v3189 = vpack.c.bf16 %v3188, %v3188
        %v3190 = vld [vmem:[%s1690] sm:$0xf]
        %v3191 = vld [vmem:[%s1690 + $0x4] sm:$0xf]
        %v3192 = vld [vmem:[%s1690 + $0x8] sm:$0xf]
        %v3193 = vld [vmem:[%s1690 + $0xc] sm:$0xf]
        %v3194 = vld [vmem:[%s1690 + $0x10] sm:$0xf]
        %v3195 = vld [vmem:[%s1690 + $0x14] sm:$0xf]
        %v3196 = vld [vmem:[%s1690 + $0x18] sm:$0xf]
        %v3197 = vld [vmem:[%s1690 + $0x1c] sm:$0xf]
        %v3198 = vld [vmem:[%s1447] sm:$0x1]
        %v3200 = vlaneseq
        %v3201 = vshrl.u32 %v3200, 7
        %v3202 = vsub.s32 0, %v3201
        %v3203 = vrot.slane %v3198, %v3202
        %v3213 = vunpack.c.l.b16 %v3190
        %v3214 = vunpack.c.l.b16 %v3191
        %v3215 = vunpack.c.l.b16 %v3192
        %v3216 = vunpack.c.l.b16 %v3193
        %v3217 = vunpack.c.l.b16 %v3194
        %v3218 = vunpack.c.l.b16 %v3195
        %v3219 = vunpack.c.l.b16 %v3196
        %v3220 = vunpack.c.l.b16 %v3197
        %v3221 = vpack.c.b16 %v3214, %v3213
        %v3222 = vpack.c.b16 %v3216, %v3215
        %v3223 = vpack.c.b16 %v3218, %v3217
        %v3224 = vpack.c.b16 %v3220, %v3219
        %vm3229 = vcmask 523264
        %v3231 = vsel %vm3229, %v3189, 0
        %3233 = vmatprep.subr.bf16.mxu0 0
        %3234 = vmatpush1.bf16.msra.mxu0 %v3221
        %3235 = vmatprep.subr.bf16.mxu0 0
        %3236 = vmatpush1.bf16.msra.mxu0 %v3222
        %3237 = vmatprep.subr.bf16.mxu0 0
        %3238 = vmatpush1.bf16.msra.mxu0 %v3223
        %3239 = vmatprep.subr.bf16.mxu0 0
        %3240 = vmatpush1.bf16.msra.mxu0 %v3224
        %3241 = vmatprep.subr.bf16.mxu0 0
        %3242 = vmatpush1.bf16.msra.mxu0 0
        %3243 = vmatprep.subr.bf16.mxu0 0
        %3244 = vmatpush1.bf16.msra.mxu0 0
        %3245 = vmatprep.subr.bf16.mxu0 0
        %3246 = vmatpush1.bf16.msra.mxu0 0
        %3247 = vmatprep.subr.bf16.mxu0 0
        %3248 = vmatpush1.bf16.msra.mxu0 0
        %3249 = vmatprep.subr.bf16.mxu0 0
        %3250 = vmatpush1.bf16.msra.mxu0 0
        %3251 = vmatprep.subr.bf16.mxu0 0
        %3252 = vmatpush1.bf16.msra.mxu0 0
        %3253 = vmatprep.subr.bf16.mxu0 0
        %3254 = vmatpush1.bf16.msra.mxu0 0
        %3255 = vmatprep.subr.bf16.mxu0 0
        %3256 = vmatpush1.bf16.msra.mxu0 0
        %3257 = vmatprep.subr.bf16.mxu0 0
        %3258 = vmatpush1.bf16.msra.mxu0 0
        %3259 = vmatprep.subr.bf16.mxu0 0
        %3260 = vmatpush1.bf16.msra.mxu0 0
        %3261 = vmatprep.subr.bf16.mxu0 0
        %3262 = vmatpush1.bf16.msra.mxu0 0
        %3263 = vmatprep.subr.bf16.mxu0 0
        %3264 = vmatpush1.bf16.msra.mxu0 0
        %3265 = vmatprep.mubr.bf16.mxu0 0
        %3266 = vmatmul.mubr.bf16.gmra.mrb[0].mxu0 %v3231
        %v3267 = vpop.f32.mrb[0].mxu0
        %v3268 = vadd.f32 %v3203, %v3267
        %v3269 = vpop.f32.mrb[0].mxu0
        %v3270 = vpop.f32.mrb[0].mxu0
        %v3271 = vpop.f32.mrb[0].mxu0
        %3272 = vdwg.mxu0
        %v3273 = vadd.f32 %v3084, %v3268
        %3274 = vst.msk [vmem:[%s1641] sm:$0xff] %vm1705, %v3273
        %p3275 = scmp.eq.s32.totalorder %s113, 1
        // Predicated region
        $region225: #{molecular_decoder_forward.1} parent=139 // pred_check
          %p3276 = pneg %p3275
        $region226: #{molecular_decoder_forward.1} parent=139 // pred_check_branch
          %3278 = sbr.rel (%p3276) target = $region228
        $region227: #{molecular_decoder_forward.1} parent=139 // pred_region
          %v3279 = vld [vmem:[#allocation27] sm:$0x1]
          %v3280 = vld [vmem:[#allocation29] sm:$0x1]
          %v3281 = vsel %vm1705, %v3273, 0.0
          %3282 = vadd.xlane.f32.xlu0 %v3281
          %v3283 = vpop.xlane.xlu0 %3282
          %v3284 = vmul.f32 %v3283, %v1709
          %v3285 = vsub.f32 %v3273, %v3284
          %v3286 = vmul.f32 %v3285, %v3285
          %v3287 = vsel %vm1705, %v3286, 0.0
          %3288 = vadd.xlane.f32.xlu0 %v3287
          %v3289 = vpop.xlane.xlu0 %3288
          %v3290 = vmul.f32 %v3289, %v1716
          %v3292 = vlaneseq
          %v3293 = vshrl.u32 %v3292, 7
          %v3294 = vsub.s32 0, %v3293
          %v3295 = vrot.slane %v3279, %v3294
          %v3297 = vmul.f32 %v3295, %v3285
          %v3298 = vrsqrt.pop %v3290
          %v3299 = vmul.f32 %v3290, %v3298
          %vm3300 = vcmp.eq.f32.partialorder %v3290, inf
          %v3301 = vsel %vm3300, %v3290, %v3299
          %vm3302 = vcmp.eq.f32.partialorder %v3290, 0.0
          %v3303 = vand.u32 %v3290, 2147483648
          %v3304 = vsel %vm3302, %v3303, %v3301
          %v3305 = vadd.f32 %v3304, 1e-06
          %v3306 = vrcp.pop %v3305
          %v3307 = vmul.f32 %v3297, %v3306
          %v3309 = vlaneseq
          %v3310 = vshrl.u32 %v3309, 7
          %v3311 = vsub.s32 0, %v3310
          %v3312 = vrot.slane %v3280, %v3311
          %v3314 = vadd.f32 %v3307, %v3312
          %3315 = vst.msk [vmem:[%s1641] sm:$0xff] %vm1705, %v3314
          %v3316 = vpack.c.bf16 %v3314, %v3314
          %v3317 = vld [vmem:[%s53] sm:$0xf]
          %v3318 = vld [vmem:[%s53 + $0x4] sm:$0xf]
          %v3319 = vld [vmem:[%s53 + $0x8] sm:$0xf]
          %v3320 = vld [vmem:[%s53 + $0xc] sm:$0xf]
          %v3321 = vld [vmem:[#allocation30] sm:$0x1]
          %v3323 = vlaneseq
          %v3324 = vshrl.u32 %v3323, 7
          %v3325 = vsub.s32 0, %v3324
          %v3326 = vrot.slane %v3321, %v3325
          %v3332 = vunpack.c.l.b16 %v3317
          %v3333 = vunpack.c.l.b16 %v3318
          %v3334 = vunpack.c.l.b16 %v3319
          %v3335 = vunpack.c.l.b16 %v3320
          %v3336 = vpack.c.b16 %v3333, %v3332
          %v3337 = vpack.c.b16 %v3335, %v3334
          %v3341 = vsel %vm1705, %v3316, 0
          %3343 = vmatprep.subr.bf16.mxu0 0
          %3344 = vmatpush1.bf16.msra.mxu0 %v3336
          %3345 = vmatprep.subr.bf16.mxu0 0
          %3346 = vmatpush1.bf16.msra.mxu0 %v3337
          %3347 = vmatprep.subr.bf16.mxu0 0
          %3348 = vmatpush1.bf16.msra.mxu0 0
          %3349 = vmatprep.subr.bf16.mxu0 0
          %3350 = vmatpush1.bf16.msra.mxu0 0
          %3351 = vmatprep.subr.bf16.mxu0 0
          %3352 = vmatpush1.bf16.msra.mxu0 0
          %3353 = vmatprep.subr.bf16.mxu0 0
          %3354 = vmatpush1.bf16.msra.mxu0 0
          %3355 = vmatprep.subr.bf16.mxu0 0
          %3356 = vmatpush1.bf16.msra.mxu0 0
          %3357 = vmatprep.subr.bf16.mxu0 0
          %3358 = vmatpush1.bf16.msra.mxu0 0
          %3359 = vmatprep.subr.bf16.mxu0 0
          %3360 = vmatpush1.bf16.msra.mxu0 0
          %3361 = vmatprep.subr.bf16.mxu0 0
          %3362 = vmatpush1.bf16.msra.mxu0 0
          %3363 = vmatprep.subr.bf16.mxu0 0
          %3364 = vmatpush1.bf16.msra.mxu0 0
          %3365 = vmatprep.subr.bf16.mxu0 0
          %3366 = vmatpush1.bf16.msra.mxu0 0
          %3367 = vmatprep.subr.bf16.mxu0 0
          %3368 = vmatpush1.bf16.msra.mxu0 0
          %3369 = vmatprep.subr.bf16.mxu0 0
          %3370 = vmatpush1.bf16.msra.mxu0 0
          %3371 = vmatprep.subr.bf16.mxu0 0
          %3372 = vmatpush1.bf16.msra.mxu0 0
          %3373 = vmatprep.subr.bf16.mxu0 0
          %3374 = vmatpush1.bf16.msra.mxu0 0
          %3375 = vmatprep.mubr.bf16.mxu0 0
          %3376 = vmatmul.mubr.bf16.gmra.mrb[0].mxu0 %v3341
          %v3377 = vpop.f32.mrb[0].mxu0
          %v3378 = vadd.f32 %v3326, %v3377
          %v3379 = vpop.f32.mrb[0].mxu0
          %v3380 = vpop.f32.mrb[0].mxu0
          %v3381 = vpop.f32.mrb[0].mxu0
          %3382 = vdwg.mxu0
          %v3383 = vtanh.pop %v3378
          %v3384 = vpack.c.bf16 %v3383, %v3383
          %v3385 = vld [vmem:[#allocation32] sm:$0xf]
          %v3386 = vld [vmem:[#allocation32 + $0x4] sm:$0xf]
          %v3387 = vld [vmem:[#allocation33] sm:$0x1]
          %v3389 = vlaneseq
          %v3390 = vshrl.u32 %v3389, 7
          %v3391 = vsub.s32 0, %v3390
          %v3392 = vrot.slane %v3387, %v3391
          %v3396 = vunpack.c.l.b16 %v3385
          %v3397 = vunpack.c.l.b16 %v3386
          %v3398 = vpack.c.b16 %v3397, %v3396
          %vm3400 = vcmask 130048
          %v3402 = vsel %vm3400, %v3384, 0
          %3404 = vmatprep.subr.bf16.mxu0 0
          %3405 = vmatpush1.bf16.msra.mxu0 %v3398
          %3406 = vmatprep.subr.bf16.mxu0 0
          %3407 = vmatpush1.bf16.msra.mxu0 0
          %3408 = vmatprep.subr.bf16.mxu0 0
          %3409 = vmatpush1.bf16.msra.mxu0 0
          %3410 = vmatprep.subr.bf16.mxu0 0
          %3411 = vmatpush1.bf16.msra.mxu0 0
          %3412 = vmatprep.subr.bf16.mxu0 0
          %3413 = vmatpush1.bf16.msra.mxu0 0
          %3414 = vmatprep.subr.bf16.mxu0 0
          %3415 = vmatpush1.bf16.msra.mxu0 0
          %3416 = vmatprep.subr.bf16.mxu0 0
          %3417 = vmatpush1.bf16.msra.mxu0 0
          %3418 = vmatprep.subr.bf16.mxu0 0
          %3419 = vmatpush1.bf16.msra.mxu0 0
          %3420 = vmatprep.subr.bf16.mxu0 0
          %3421 = vmatpush1.bf16.msra.mxu0 0
          %3422 = vmatprep.subr.bf16.mxu0 0
          %3423 = vmatpush1.bf16.msra.mxu0 0
          %3424 = vmatprep.subr.bf16.mxu0 0
          %3425 = vmatpush1.bf16.msra.mxu0 0
          %3426 = vmatprep.subr.bf16.mxu0 0
          %3427 = vmatpush1.bf16.msra.mxu0 0
          %3428 = vmatprep.subr.bf16.mxu0 0
          %3429 = vmatpush1.bf16.msra.mxu0 0
          %3430 = vmatprep.subr.bf16.mxu0 0
          %3431 = vmatpush1.bf16.msra.mxu0 0
          %3432 = vmatprep.subr.bf16.mxu0 0
          %3433 = vmatpush1.bf16.msra.mxu0 0
          %3434 = vmatprep.subr.bf16.mxu0 0
          %3435 = vmatpush1.bf16.msra.mxu0 0
          %3436 = vmatprep.mubr.bf16.mxu0 0
          %3437 = vmatmul.mubr.bf16.gmra.mrb[0].mxu0 %v3402
          %v3438 = vpop.f32.mrb[0].mxu0
          %v3439 = vadd.f32 %v3392, %v3438
          %v3440 = vpop.f32.mrb[0].mxu0
          %v3441 = vpop.f32.mrb[0].mxu0
          %v3442 = vpop.f32.mrb[0].mxu0
          %3443 = vdwg.mxu0
          %3444 = vst.msk [vmem:[%s1648] sm:$0xff] %vm3400, %v3439
        $region228: #{molecular_decoder_forward.1} parent=139 // pred_fallthru
          _
        %s3445 = sand.u32 %s878, 1
        %s3446 = scalar_lea.sflag [#allocation5], %s3445
        %s3447 = sand.u32 %s878, 1
        %s3448 = smul.addr %s3447, 8
        %s3449 = scalar_lea.vmem [#allocation35], %s3448
        %s3450 = sand.u32 %s904, 1
        %s3451 = scalar_lea.sflag [#allocation37], %s3450
        %s3452 = sand.u32 %s904, 1
        %s3453 = smul.addr %s3452, 8
        %s3454 = scalar_lea.vmem [#allocation36], %s3453
        // Predicated region
        $region229: #{molecular_decoder_forward.1} parent=139 // pred_check
          %p3455 = pneg %p888
        $region230: #{molecular_decoder_forward.1} parent=139 // pred_check_branch
          %3457 = sbr.rel (%p3455) target = $region232
        $region231: #{molecular_decoder_forward.1} parent=139 // pred_region
          %s3459 = ssub.s32 128, 128
          %3460 = vsyncadd %s3446, %s3459
          %s3461 = smul.addr %s112, 128
          %s3462 = scalar_lea.hbm %s61, %s3461
          %s3464 = sshll.u32 %s3449, 4
          %s3465 = int_to_ptr.vmem [resolvable:$true] %s3464
          %3467 = dma.vmem_to_hbm [thread:$0]  %s3465, 128, %s3462, %s3446
        $region232: #{molecular_decoder_forward.1} parent=139 // pred_fallthru
          _
        // Predicated region
        $region233: #{molecular_decoder_forward.1} parent=139 // pred_check
          %p3468 = pneg %p914
        $region234: #{molecular_decoder_forward.1} parent=139 // pred_check_branch
          %3470 = sbr.rel (%p3468) target = $region236
        $region235: #{molecular_decoder_forward.1} parent=139 // pred_region
          %s3472 = ssub.s32 128, 128
          %3473 = vsyncadd %s3451, %s3472
          %s3474 = smul.addr %s112, 128
          %s3475 = scalar_lea.hbm %s63, %s3474
          %s3477 = sshll.u32 %s3454, 4
          %s3478 = int_to_ptr.vmem [resolvable:$true] %s3477
          %3480 = dma.vmem_to_hbm [thread:$0]  %s3478, 128, %s3475, %s3451
        $region236: #{molecular_decoder_forward.1} parent=139 // pred_fallthru
          _
      $region140: #{molecular_decoder_forward.1} parent=5 // pred_fallthru
        _
      %p3481 = scmp.le.s32.totalorder 2, %s103
      // Predicated region
      $region237: #{molecular_decoder_forward.1} parent=5 // pred_check
        %p3482 = pneg %p3481
      $region238: #{molecular_decoder_forward.1} parent=5 // pred_check_branch
        %3484 = sbr.rel (%p3482) target = $region240
      $region239: #{molecular_decoder_forward.1} parent=5 // pred_region
        %s3485 = ssub.s32 %s103, 2
        // Predicated region
        $region241: #{molecular_decoder_forward.1} parent=239 // pred_check
          %p3486 = pneg %p894
        $region242: #{molecular_decoder_forward.1} parent=239 // pred_check_branch
          %3488 = sbr.rel (%p3486) target = $region244
        $region243: #{molecular_decoder_forward.1} parent=239 // pred_region
          %s3489 = sand.u32 %s879, 1
          %s3490 = scalar_lea.sflag [#allocation5], %s3489
          %s3491 = sand.u32 %s879, 1
          %s3492 = smul.addr %s3491, 8
          %s3493 = scalar_lea.vmem [#allocation35], %s3492
          %3494 = dma.done %s3490, 128
        $region244: #{molecular_decoder_forward.1} parent=239 // pred_fallthru
          _
        // Predicated region
        $region245: #{molecular_decoder_forward.1} parent=239 // pred_check
          %p3495 = pneg %p920
        $region246: #{molecular_decoder_forward.1} parent=239 // pred_check_branch
          %3497 = sbr.rel (%p3495) target = $region248
        $region247: #{molecular_decoder_forward.1} parent=239 // pred_region
          %s3498 = sand.u32 %s905, 1
          %s3499 = scalar_lea.sflag [#allocation37], %s3498
          %s3500 = sand.u32 %s905, 1
          %s3501 = smul.addr %s3500, 8
          %s3502 = scalar_lea.vmem [#allocation36], %s3501
          %3503 = dma.done %s3499, 128
        $region248: #{molecular_decoder_forward.1} parent=239 // pred_fallthru
          _
      $region240: #{molecular_decoder_forward.1} parent=5 // pred_fallthru
        _
    $region6: #{molecular_decoder_forward.1} parent=1 // loop_footer
      %s107 = sadd.s32 1, %s103
    $region7: #{molecular_decoder_forward.1} parent=1 // loop_footer_branch
      %102 = sbr.rel target = $region3
    $region8: #{molecular_decoder_forward.1} parent=1 // loop_exit
      _
    %3504 = vsyncpa [#allocation4], 1
    %s3505 = scalar_lea.sflag [#allocation4], 1
    %3506 = vsyncpa %s3505, 1
    %3507 = vsyncpa [#allocation7], 1
    %s3508 = scalar_lea.sflag [#allocation7], 1
    %3509 = vsyncpa %s3508, 1
    %3510 = vsyncpa [#allocation10], 1
    %s3511 = scalar_lea.sflag [#allocation10], 1
    %3512 = vsyncpa %s3511, 1
    %3513 = vsyncpa [#allocation13], 1
    %s3514 = scalar_lea.sflag [#allocation13], 1
    %3515 = vsyncpa %s3514, 1
    %3516 = vsyncpa [#allocation16], 1
    %s3517 = scalar_lea.sflag [#allocation16], 1
    %3518 = vsyncpa %s3517, 1
    %3519 = vsyncpa [#allocation19], 1
    %s3520 = scalar_lea.sflag [#allocation19], 1
    %3521 = vsyncpa %s3520, 1
    %3522 = vsyncpa [#allocation22], 1
    %s3523 = scalar_lea.sflag [#allocation22], 1
    %3524 = vsyncpa %s3523, 1
    %3525 = vsyncpa [#allocation25], 1
    %s3526 = scalar_lea.sflag [#allocation25], 1
    %3527 = vsyncpa %s3526, 1
    %3528 = vsyncpa [#allocation28], 1
    %3529 = vsyncpa [#allocation31], 1
    %3530 = vsyncpa [#allocation34], 1
    %3531 = vsyncpa [#allocation5], 1
    %s3532 = scalar_lea.sflag [#allocation5], 1
    %3533 = vsyncpa %s3532, 1
    %3534 = vsyncpa [#allocation37], 1
    %s3535 = scalar_lea.sflag [#allocation37], 1
    %3536 = vsyncpa %s3535, 1

</llo_original>
